<compile_context>
chip_gen: v7x
topology: tpu7x:2x2x1
jax: 0.10.0
libtpu: 0.0.40
codegen_flags: <defaults>
</compile_context>

<pallas_src>
import jax
import jax.numpy as jnp
from jax.experimental import pallas as pl
from jax.experimental.pallas import tpu as pltpu

LENGTH = 6              # Conv1d input length
C_IN = 4                # Conv1d in_channels
C_OUT = 32              # Conv1d out_channels
KSIZE = 3               # Conv1d kernel_size
T = LENGTH - KSIZE + 1  # conv output length = 4
H1 = 128                # hidden width of fc1/fc2
F_IN = C_IN * LENGTH    # 24 raw flattened input features per sample
CHUNK = 128             # rows per inner sub-chunk == lanes per packed output row


def _round_up(v, m):
    return (v + m - 1) // m * m


def composed_net_kernel(x_ref, weff_ref, w2t_ref, consts_ref, out_ref):
    # x_ref:      (TM, F_IN)        raw inputs, one row per sample (flattened (C_IN, L))
    # weff_ref:   (F_IN, H1)        conv+flatten+fc1 folded onto the raw input
    # w2t_ref:    (H1, H1)          fc2 weight, pre-transposed
    # consts_ref: (8, H1)  f32      row 0: b1_eff, row 1: b2, row 2: w3, row 3 col 0: b3
    # out_ref:    (TM//CHUNK, CHUNK) lane-packed results: batch = global_row*CHUNK + lane
    b1 = consts_ref[0:1, :]
    b2 = consts_ref[1:2, :]
    w3 = consts_ref[2:3, :]
    b3 = consts_ref[3:4, 0:1]

    n_chunks = out_ref.shape[0]          # static (TM // CHUNK)
    for c in range(n_chunks):            # static unroll; keeps vreg pressure flat
        rows = x_ref[c * CHUNK:(c + 1) * CHUNK, :]                    # (CHUNK, F_IN)
        h1 = jnp.dot(rows, weff_ref[...], preferred_element_type=jnp.float32)
        h1 = jnp.maximum(h1 + b1, 0.0)
        h2 = jnp.dot(h1.astype(w2t_ref.dtype), w2t_ref[...],
                     preferred_element_type=jnp.float32)
        h2 = jnp.maximum(h2 + b2, 0.0)
        # fc3: contract the feature axis of (1,H1) x (CHUNK,H1) -> batch lands in lanes.
        val = jax.lax.dot_general(w3, h2, (((1,), (1,)), ((), ())),
                                  preferred_element_type=jnp.float32)  # (1, CHUNK)
        out_ref[c:c + 1, :] = val + b3


def composed_net(x, params, *, tm=1024, compute_dtype=jnp.float32):
    """x: (B, C_IN, LENGTH) float32 -> (B, 1) float32."""
    wc, bc, w1, b1, w2, b2, w3, b3 = params
    B = x.shape[0]

    # ---- fold conv + flatten + fc1 straight onto the raw input (all linear) ----
    # h1[b, j] = sum_{c, l} x[b, c, l] * Weff[c*L + l, j] + b1_eff[j]
    w1_r = w1.reshape(H1, C_OUT, T)                        # w1_r[j, o, t]
    shift = jax.nn.one_hot(
        jnp.arange(T)[:, None] + jnp.arange(KSIZE)[None, :],
        LENGTH, dtype=jnp.float32)                         # (T, K, L): [t + k == l]
    w_eff = jnp.einsum('ock,jot,tkl->clj', wc, w1_r, shift).reshape(F_IN, H1)
    b1_eff = b1 + jnp.einsum('o,jot->j', bc, w1_r)         # (H1,)

    # ---- batch tiling: lane-packed output needs tm % 1024 == 0 ----
    tm = max(1024, _round_up(tm, 1024))
    n_steps = max(2, pl.cdiv(B, tm))       # >= 2 (even) grid steps so v7x megacore splits
    n_steps += n_steps % 2
    b_pad = n_steps * tm

    x_flat = jnp.pad(x.reshape(B, F_IN), ((0, b_pad - B), (0, 0)))
    w2t = w2.T

    if compute_dtype != jnp.float32:       # bf16 path for v6e/v7x; keep f32 on v5e
        x_flat = x_flat.astype(compute_dtype)
        w_eff = w_eff.astype(compute_dtype)
        w2t = w2t.astype(compute_dtype)

    consts = jnp.zeros((8, H1), jnp.float32)
    consts = consts.at[0, :].set(b1_eff.astype(jnp.float32))
    consts = consts.at[1, :].set(b2.astype(jnp.float32))
    consts = consts.at[2, :].set(w3.reshape(H1).astype(jnp.float32))
    consts = consts.at[3, 0].set(b3.reshape(()).astype(jnp.float32))

    rows_out = b_pad // CHUNK
    out = pl.pallas_call(
        composed_net_kernel,
        out_shape=jax.ShapeDtypeStruct((rows_out, CHUNK), jnp.float32),
        grid=(n_steps,),
        in_specs=[
            pl.BlockSpec((tm, F_IN), lambda i: (i, 0)),      # streamed raw input
            pl.BlockSpec((F_IN, H1), lambda i: (0, 0)),      # folded conv+fc1 weight (resident)
            pl.BlockSpec((H1, H1), lambda i: (0, 0)),        # fc2 weight (resident)
            pl.BlockSpec((8, H1), lambda i: (0, 0)),         # merged biases + fc3 row
        ],
        out_specs=pl.BlockSpec((tm // CHUNK, CHUNK), lambda i: (i, 0)),
        compiler_params=pltpu.CompilerParams(
            dimension_semantics=("parallel",)),
    )(x_flat, w_eff, w2t, consts)

    # unpack lane-packed slab: batch index = row * 128 + lane
    return out.reshape(-1)[:B, None]


def reference(x, params):
    """Pure-JAX reference matching the PyTorch forward exactly."""
    wc, bc, w1, b1, w2, b2, w3, b3 = params
    B = x.shape[0]
    conv = jnp.stack(
        [jnp.einsum('bik,oik->bo', x[:, :, t:t + KSIZE], wc) + bc
         for t in range(T)], axis=-1)                    # (B, C_OUT, T)
    flat = conv.reshape(B, C_OUT * T)                    # (B, 128)
    h1 = jax.nn.relu(flat @ w1.T + b1)
    h2 = jax.nn.relu(h1 @ w2.T + b2)
    return h2 @ w3.T + b3                                # (B, 1)


def init_params(key):
    ks = jax.random.split(key, 8)
    wc = jax.random.normal(ks[0], (C_OUT, C_IN, KSIZE), jnp.float32) * 0.2
    bc = jax.random.normal(ks[1], (C_OUT,), jnp.float32) * 0.05
    w1 = jax.random.normal(ks[2], (H1, C_OUT * T), jnp.float32) * 0.08
    b1 = jax.random.normal(ks[3], (H1,), jnp.float32) * 0.05
    w2 = jax.random.normal(ks[4], (H1, H1), jnp.float32) * 0.08
    b2 = jax.random.normal(ks[5], (H1,), jnp.float32) * 0.05
    w3 = jax.random.normal(ks[6], (1, H1), jnp.float32) * 0.08
    b3 = jax.random.normal(ks[7], (1,), jnp.float32) * 0.05
    return (wc, bc, w1, b1, w2, b2, w3, b3)


if __name__ == "__main__":
    key = jax.random.PRNGKey(0)
    pkey, xkey = jax.random.split(key)
    params = init_params(pkey)
    B = 8
    x = jax.random.normal(xkey, (B, C_IN, LENGTH), jnp.float32)

    out = composed_net(x, params)       # f32 path (bf16 path: compute_dtype=jnp.bfloat16)
    out = jax.block_until_ready(out)

    ref = reference(x, params)
    assert out.shape == (B, 1), out.shape
    assert jnp.allclose(out, ref, atol=1e-4, rtol=1e-4), (
        "mismatch", float(jnp.max(jnp.abs(out - ref))))
    print("KERNEL_OK")
</pallas_src>

<mosaic_0001>
module attributes {stable_mosaic.version = 11 : i64} {
  func.func @composed_net_kernel(%arg0: i32, %arg1: memref<1024x24xf32, #tpu.memory_space<vmem>>, %arg2: memref<24x128xf32, #tpu.memory_space<vmem>>, %arg3: memref<128x128xf32, #tpu.memory_space<vmem>>, %arg4: memref<8x128xf32, #tpu.memory_space<vmem>>, %arg5: memref<8x128xf32, #tpu.memory_space<vmem>>) attributes {dimension_semantics = [#tpu.dimension_semantics<parallel>], iteration_bounds = array<i64: 2>, scalar_prefetch = 0 : i64, scratch_operands = 0 : i64, tpu.core_type = #tpu.core_type<tc>, window_params = [{transform_indices = @transform_0, window_bounds = array<i64: 1024, 24>}, {pipeline_mode = #tpu.pipeline_mode<synchronous>, transform_indices = @transform_1, window_bounds = array<i64: 24, 128>}, {pipeline_mode = #tpu.pipeline_mode<synchronous>, transform_indices = @transform_2, window_bounds = array<i64: 128, 128>}, {pipeline_mode = #tpu.pipeline_mode<synchronous>, transform_indices = @transform_3, window_bounds = array<i64: 8, 128>}, {transform_indices = @transform_4, window_bounds = array<i64: 8, 128>}]} {
    %c0 = arith.constant 0 : index
    %c0_0 = arith.constant 0 : index
    %0 = vector.load %arg4[%c0, %c0_0] : memref<8x128xf32, #tpu.memory_space<vmem>>, vector<1x128xf32>
    %c1 = arith.constant 1 : index
    %c0_1 = arith.constant 0 : index
    %1 = vector.load %arg4[%c1, %c0_1] : memref<8x128xf32, #tpu.memory_space<vmem>>, vector<1x128xf32>
    %c2 = arith.constant 2 : index
    %c0_2 = arith.constant 0 : index
    %2 = vector.load %arg4[%c2, %c0_2] : memref<8x128xf32, #tpu.memory_space<vmem>>, vector<1x128xf32>
    %c3 = arith.constant 3 : index
    %c0_3 = arith.constant 0 : index
    %3 = vector.load %arg4[%c3, %c0_3] : memref<8x128xf32, #tpu.memory_space<vmem>>, vector<1x1xf32>
    %c0_4 = arith.constant 0 : index
    %c0_5 = arith.constant 0 : index
    %4 = vector.load %arg1[%c0_4, %c0_5] : memref<1024x24xf32, #tpu.memory_space<vmem>>, vector<128x24xf32>
    %c0_6 = arith.constant 0 : index
    %c0_7 = arith.constant 0 : index
    %5 = vector.load %arg2[%c0_6, %c0_7] : memref<24x128xf32, #tpu.memory_space<vmem>>, vector<24x128xf32>
    %cst = arith.constant dense<0.000000e+00> : vector<128x128xf32>
    %6 = tpu.matmul %4, %5, %cst {dimension_numbers = #tpu.dot_dimension_numbers<[1], [0], [0], [1], [0, 0, 1, 1], [], []>} : vector<128x24xf32>, vector<24x128xf32>, vector<128x128xf32> -> vector<128x128xf32>
    %7 = vector.broadcast %0 : vector<1x128xf32> to vector<128x128xf32>
    %8 = arith.addf %6, %7 : vector<128x128xf32>
    %cst_8 = arith.constant 0.000000e+00 : f32
    %9 = vector.broadcast %cst_8 : f32 to vector<128x128xf32>
    %10 = arith.maximumf %8, %9 : vector<128x128xf32>
    %c0_9 = arith.constant 0 : index
    %c0_10 = arith.constant 0 : index
    %11 = vector.load %arg3[%c0_9, %c0_10] : memref<128x128xf32, #tpu.memory_space<vmem>>, vector<128x128xf32>
    %cst_11 = arith.constant dense<0.000000e+00> : vector<128x128xf32>
    %12 = tpu.matmul %10, %11, %cst_11 {dimension_numbers = #tpu.dot_dimension_numbers<[1], [0], [0], [1], [0, 0, 1, 1], [], []>} : vector<128x128xf32>, vector<128x128xf32>, vector<128x128xf32> -> vector<128x128xf32>
    %13 = vector.broadcast %1 : vector<1x128xf32> to vector<128x128xf32>
    %14 = arith.addf %12, %13 : vector<128x128xf32>
    %cst_12 = arith.constant 0.000000e+00 : f32
    %15 = vector.broadcast %cst_12 : f32 to vector<128x128xf32>
    %16 = arith.maximumf %14, %15 : vector<128x128xf32>
    %cst_13 = arith.constant dense<0.000000e+00> : vector<1x128xf32>
    %17 = tpu.matmul %2, %16, %cst_13 {dimension_numbers = #tpu.dot_dimension_numbers<[1], [1], [0], [0], [0, 0, 1, 0], [], []>} : vector<1x128xf32>, vector<128x128xf32>, vector<1x128xf32> -> vector<1x128xf32>
    %18 = vector.broadcast %3 : vector<1x1xf32> to vector<1x128xf32>
    %19 = arith.addf %17, %18 : vector<1x128xf32>
    %c0_14 = arith.constant 0 : index
    %c0_15 = arith.constant 0 : index
    %20 = vector.load %arg5[%c0_14, %c0_15] : memref<8x128xf32, #tpu.memory_space<vmem>>, vector<1x128xf32>
    tpu.vector_store %arg5[%c0_14, %c0_15], %19 {strides = array<i32>} : memref<8x128xf32, #tpu.memory_space<vmem>>, vector<1x128xf32>,
    %c128 = arith.constant 128 : index
    %c0_16 = arith.constant 0 : index
    %21 = vector.load %arg1[%c128, %c0_16] : memref<1024x24xf32, #tpu.memory_space<vmem>>, vector<128x24xf32>
    %c0_17 = arith.constant 0 : index
    %c0_18 = arith.constant 0 : index
    %22 = vector.load %arg2[%c0_17, %c0_18] : memref<24x128xf32, #tpu.memory_space<vmem>>, vector<24x128xf32>
    %cst_19 = arith.constant dense<0.000000e+00> : vector<128x128xf32>
    %23 = tpu.matmul %21, %22, %cst_19 {dimension_numbers = #tpu.dot_dimension_numbers<[1], [0], [0], [1], [0, 0, 1, 1], [], []>} : vector<128x24xf32>, vector<24x128xf32>, vector<128x128xf32> -> vector<128x128xf32>
    %24 = vector.broadcast %0 : vector<1x128xf32> to vector<128x128xf32>
    %25 = arith.addf %23, %24 : vector<128x128xf32>
    %cst_20 = arith.constant 0.000000e+00 : f32
    %26 = vector.broadcast %cst_20 : f32 to vector<128x128xf32>
    %27 = arith.maximumf %25, %26 : vector<128x128xf32>
    %c0_21 = arith.constant 0 : index
    %c0_22 = arith.constant 0 : index
    %28 = vector.load %arg3[%c0_21, %c0_22] : memref<128x128xf32, #tpu.memory_space<vmem>>, vector<128x128xf32>
    %cst_23 = arith.constant dense<0.000000e+00> : vector<128x128xf32>
    %29 = tpu.matmul %27, %28, %cst_23 {dimension_numbers = #tpu.dot_dimension_numbers<[1], [0], [0], [1], [0, 0, 1, 1], [], []>} : vector<128x128xf32>, vector<128x128xf32>, vector<128x128xf32> -> vector<128x128xf32>
    %30 = vector.broadcast %1 : vector<1x128xf32> to vector<128x128xf32>
    %31 = arith.addf %29, %30 : vector<128x128xf32>
    %cst_24 = arith.constant 0.000000e+00 : f32
    %32 = vector.broadcast %cst_24 : f32 to vector<128x128xf32>
    %33 = arith.maximumf %31, %32 : vector<128x128xf32>
    %cst_25 = arith.constant dense<0.000000e+00> : vector<1x128xf32>
    %34 = tpu.matmul %2, %33, %cst_25 {dimension_numbers = #tpu.dot_dimension_numbers<[1], [1], [0], [0], [0, 0, 1, 0], [], []>} : vector<1x128xf32>, vector<128x128xf32>, vector<1x128xf32> -> vector<1x128xf32>
    %35 = vector.broadcast %3 : vector<1x1xf32> to vector<1x128xf32>
    %36 = arith.addf %34, %35 : vector<1x128xf32>
    %c1_26 = arith.constant 1 : index
    %c0_27 = arith.constant 0 : index
    %37 = vector.load %arg5[%c1_26, %c0_27] : memref<8x128xf32, #tpu.memory_space<vmem>>, vector<1x128xf32>
    tpu.vector_store %arg5[%c1_26, %c0_27], %36 {strides = array<i32>} : memref<8x128xf32, #tpu.memory_space<vmem>>, vector<1x128xf32>,
    %c256 = arith.constant 256 : index
    %c0_28 = arith.constant 0 : index
    %38 = vector.load %arg1[%c256, %c0_28] : memref<1024x24xf32, #tpu.memory_space<vmem>>, vector<128x24xf32>
    %c0_29 = arith.constant 0 : index
    %c0_30 = arith.constant 0 : index
    %39 = vector.load %arg2[%c0_29, %c0_30] : memref<24x128xf32, #tpu.memory_space<vmem>>, vector<24x128xf32>
    %cst_31 = arith.constant dense<0.000000e+00> : vector<128x128xf32>
    %40 = tpu.matmul %38, %39, %cst_31 {dimension_numbers = #tpu.dot_dimension_numbers<[1], [0], [0], [1], [0, 0, 1, 1], [], []>} : vector<128x24xf32>, vector<24x128xf32>, vector<128x128xf32> -> vector<128x128xf32>
    %41 = vector.broadcast %0 : vector<1x128xf32> to vector<128x128xf32>
    %42 = arith.addf %40, %41 : vector<128x128xf32>
    %cst_32 = arith.constant 0.000000e+00 : f32
    %43 = vector.broadcast %cst_32 : f32 to vector<128x128xf32>
    %44 = arith.maximumf %42, %43 : vector<128x128xf32>
    %c0_33 = arith.constant 0 : index
    %c0_34 = arith.constant 0 : index
    %45 = vector.load %arg3[%c0_33, %c0_34] : memref<128x128xf32, #tpu.memory_space<vmem>>, vector<128x128xf32>
    %cst_35 = arith.constant dense<0.000000e+00> : vector<128x128xf32>
    %46 = tpu.matmul %44, %45, %cst_35 {dimension_numbers = #tpu.dot_dimension_numbers<[1], [0], [0], [1], [0, 0, 1, 1], [], []>} : vector<128x128xf32>, vector<128x128xf32>, vector<128x128xf32> -> vector<128x128xf32>
    %47 = vector.broadcast %1 : vector<1x128xf32> to vector<128x128xf32>
    %48 = arith.addf %46, %47 : vector<128x128xf32>
    %cst_36 = arith.constant 0.000000e+00 : f32
    %49 = vector.broadcast %cst_36 : f32 to vector<128x128xf32>
    %50 = arith.maximumf %48, %49 : vector<128x128xf32>
    %cst_37 = arith.constant dense<0.000000e+00> : vector<1x128xf32>
    %51 = tpu.matmul %2, %50, %cst_37 {dimension_numbers = #tpu.dot_dimension_numbers<[1], [1], [0], [0], [0, 0, 1, 0], [], []>} : vector<1x128xf32>, vector<128x128xf32>, vector<1x128xf32> -> vector<1x128xf32>
    %52 = vector.broadcast %3 : vector<1x1xf32> to vector<1x128xf32>
    %53 = arith.addf %51, %52 : vector<1x128xf32>
    %c2_38 = arith.constant 2 : index
    %c0_39 = arith.constant 0 : index
    %54 = vector.load %arg5[%c2_38, %c0_39] : memref<8x128xf32, #tpu.memory_space<vmem>>, vector<1x128xf32>
    tpu.vector_store %arg5[%c2_38, %c0_39], %53 {strides = array<i32>} : memref<8x128xf32, #tpu.memory_space<vmem>>, vector<1x128xf32>,
    %c384 = arith.constant 384 : index
    %c0_40 = arith.constant 0 : index
    %55 = vector.load %arg1[%c384, %c0_40] : memref<1024x24xf32, #tpu.memory_space<vmem>>, vector<128x24xf32>
    %c0_41 = arith.constant 0 : index
    %c0_42 = arith.constant 0 : index
    %56 = vector.load %arg2[%c0_41, %c0_42] : memref<24x128xf32, #tpu.memory_space<vmem>>, vector<24x128xf32>
    %cst_43 = arith.constant dense<0.000000e+00> : vector<128x128xf32>
    %57 = tpu.matmul %55, %56, %cst_43 {dimension_numbers = #tpu.dot_dimension_numbers<[1], [0], [0], [1], [0, 0, 1, 1], [], []>} : vector<128x24xf32>, vector<24x128xf32>, vector<128x128xf32> -> vector<128x128xf32>
    %58 = vector.broadcast %0 : vector<1x128xf32> to vector<128x128xf32>
    %59 = arith.addf %57, %58 : vector<128x128xf32>
    %cst_44 = arith.constant 0.000000e+00 : f32
    %60 = vector.broadcast %cst_44 : f32 to vector<128x128xf32>
    %61 = arith.maximumf %59, %60 : vector<128x128xf32>
    %c0_45 = arith.constant 0 : index
    %c0_46 = arith.constant 0 : index
    %62 = vector.load %arg3[%c0_45, %c0_46] : memref<128x128xf32, #tpu.memory_space<vmem>>, vector<128x128xf32>
    %cst_47 = arith.constant dense<0.000000e+00> : vector<128x128xf32>
    %63 = tpu.matmul %61, %62, %cst_47 {dimension_numbers = #tpu.dot_dimension_numbers<[1], [0], [0], [1], [0, 0, 1, 1], [], []>} : vector<128x128xf32>, vector<128x128xf32>, vector<128x128xf32> -> vector<128x128xf32>
    %64 = vector.broadcast %1 : vector<1x128xf32> to vector<128x128xf32>
    %65 = arith.addf %63, %64 : vector<128x128xf32>
    %cst_48 = arith.constant 0.000000e+00 : f32
    %66 = vector.broadcast %cst_48 : f32 to vector<128x128xf32>
    %67 = arith.maximumf %65, %66 : vector<128x128xf32>
    %cst_49 = arith.constant dense<0.000000e+00> : vector<1x128xf32>
    %68 = tpu.matmul %2, %67, %cst_49 {dimension_numbers = #tpu.dot_dimension_numbers<[1], [1], [0], [0], [0, 0, 1, 0], [], []>} : vector<1x128xf32>, vector<128x128xf32>, vector<1x128xf32> -> vector<1x128xf32>
    %69 = vector.broadcast %3 : vector<1x1xf32> to vector<1x128xf32>
    %70 = arith.addf %68, %69 : vector<1x128xf32>
    %c3_50 = arith.constant 3 : index
    %c0_51 = arith.constant 0 : index
    %71 = vector.load %arg5[%c3_50, %c0_51] : memref<8x128xf32, #tpu.memory_space<vmem>>, vector<1x128xf32>
    tpu.vector_store %arg5[%c3_50, %c0_51], %70 {strides = array<i32>} : memref<8x128xf32, #tpu.memory_space<vmem>>, vector<1x128xf32>,
    %c512 = arith.constant 512 : index
    %c0_52 = arith.constant 0 : index
    %72 = vector.load %arg1[%c512, %c0_52] : memref<1024x24xf32, #tpu.memory_space<vmem>>, vector<128x24xf32>
    %c0_53 = arith.constant 0 : index
    %c0_54 = arith.constant 0 : index
    %73 = vector.load %arg2[%c0_53, %c0_54] : memref<24x128xf32, #tpu.memory_space<vmem>>, vector<24x128xf32>
    %cst_55 = arith.constant dense<0.000000e+00> : vector<128x128xf32>
    %74 = tpu.matmul %72, %73, %cst_55 {dimension_numbers = #tpu.dot_dimension_numbers<[1], [0], [0], [1], [0, 0, 1, 1], [], []>} : vector<128x24xf32>, vector<24x128xf32>, vector<128x128xf32> -> vector<128x128xf32>
    %75 = vector.broadcast %0 : vector<1x128xf32> to vector<128x128xf32>
    %76 = arith.addf %74, %75 : vector<128x128xf32>
    %cst_56 = arith.constant 0.000000e+00 : f32
    %77 = vector.broadcast %cst_56 : f32 to vector<128x128xf32>
    %78 = arith.maximumf %76, %77 : vector<128x128xf32>
    %c0_57 = arith.constant 0 : index
    %c0_58 = arith.constant 0 : index
    %79 = vector.load %arg3[%c0_57, %c0_58] : memref<128x128xf32, #tpu.memory_space<vmem>>, vector<128x128xf32>
    %cst_59 = arith.constant dense<0.000000e+00> : vector<128x128xf32>
    %80 = tpu.matmul %78, %79, %cst_59 {dimension_numbers = #tpu.dot_dimension_numbers<[1], [0], [0], [1], [0, 0, 1, 1], [], []>} : vector<128x128xf32>, vector<128x128xf32>, vector<128x128xf32> -> vector<128x128xf32>
    %81 = vector.broadcast %1 : vector<1x128xf32> to vector<128x128xf32>
    %82 = arith.addf %80, %81 : vector<128x128xf32>
    %cst_60 = arith.constant 0.000000e+00 : f32
    %83 = vector.broadcast %cst_60 : f32 to vector<128x128xf32>
    %84 = arith.maximumf %82, %83 : vector<128x128xf32>
    %cst_61 = arith.constant dense<0.000000e+00> : vector<1x128xf32>
    %85 = tpu.matmul %2, %84, %cst_61 {dimension_numbers = #tpu.dot_dimension_numbers<[1], [1], [0], [0], [0, 0, 1, 0], [], []>} : vector<1x128xf32>, vector<128x128xf32>, vector<1x128xf32> -> vector<1x128xf32>
    %86 = vector.broadcast %3 : vector<1x1xf32> to vector<1x128xf32>
    %87 = arith.addf %85, %86 : vector<1x128xf32>
    %c4 = arith.constant 4 : index
    %c0_62 = arith.constant 0 : index
    %88 = vector.load %arg5[%c4, %c0_62] : memref<8x128xf32, #tpu.memory_space<vmem>>, vector<1x128xf32>
    tpu.vector_store %arg5[%c4, %c0_62], %87 {strides = array<i32>} : memref<8x128xf32, #tpu.memory_space<vmem>>, vector<1x128xf32>,
    %c640 = arith.constant 640 : index
    %c0_63 = arith.constant 0 : index
    %89 = vector.load %arg1[%c640, %c0_63] : memref<1024x24xf32, #tpu.memory_space<vmem>>, vector<128x24xf32>
    %c0_64 = arith.constant 0 : index
    %c0_65 = arith.constant 0 : index
    %90 = vector.load %arg2[%c0_64, %c0_65] : memref<24x128xf32, #tpu.memory_space<vmem>>, vector<24x128xf32>
    %cst_66 = arith.constant dense<0.000000e+00> : vector<128x128xf32>
    %91 = tpu.matmul %89, %90, %cst_66 {dimension_numbers = #tpu.dot_dimension_numbers<[1], [0], [0], [1], [0, 0, 1, 1], [], []>} : vector<128x24xf32>, vector<24x128xf32>, vector<128x128xf32> -> vector<128x128xf32>
    %92 = vector.broadcast %0 : vector<1x128xf32> to vector<128x128xf32>
    %93 = arith.addf %91, %92 : vector<128x128xf32>
    %cst_67 = arith.constant 0.000000e+00 : f32
    %94 = vector.broadcast %cst_67 : f32 to vector<128x128xf32>
    %95 = arith.maximumf %93, %94 : vector<128x128xf32>
    %c0_68 = arith.constant 0 : index
    %c0_69 = arith.constant 0 : index
    %96 = vector.load %arg3[%c0_68, %c0_69] : memref<128x128xf32, #tpu.memory_space<vmem>>, vector<128x128xf32>
    %cst_70 = arith.constant dense<0.000000e+00> : vector<128x128xf32>
    %97 = tpu.matmul %95, %96, %cst_70 {dimension_numbers = #tpu.dot_dimension_numbers<[1], [0], [0], [1], [0, 0, 1, 1], [], []>} : vector<128x128xf32>, vector<128x128xf32>, vector<128x128xf32> -> vector<128x128xf32>
    %98 = vector.broadcast %1 : vector<1x128xf32> to vector<128x128xf32>
    %99 = arith.addf %97, %98 : vector<128x128xf32>
    %cst_71 = arith.constant 0.000000e+00 : f32
    %100 = vector.broadcast %cst_71 : f32 to vector<128x128xf32>
    %101 = arith.maximumf %99, %100 : vector<128x128xf32>
    %cst_72 = arith.constant dense<0.000000e+00> : vector<1x128xf32>
    %102 = tpu.matmul %2, %101, %cst_72 {dimension_numbers = #tpu.dot_dimension_numbers<[1], [1], [0], [0], [0, 0, 1, 0], [], []>} : vector<1x128xf32>, vector<128x128xf32>, vector<1x128xf32> -> vector<1x128xf32>
    %103 = vector.broadcast %3 : vector<1x1xf32> to vector<1x128xf32>
    %104 = arith.addf %102, %103 : vector<1x128xf32>
    %c5 = arith.constant 5 : index
    %c0_73 = arith.constant 0 : index
    %105 = vector.load %arg5[%c5, %c0_73] : memref<8x128xf32, #tpu.memory_space<vmem>>, vector<1x128xf32>
    tpu.vector_store %arg5[%c5, %c0_73], %104 {strides = array<i32>} : memref<8x128xf32, #tpu.memory_space<vmem>>, vector<1x128xf32>,
    %c768 = arith.constant 768 : index
    %c0_74 = arith.constant 0 : index
    %106 = vector.load %arg1[%c768, %c0_74] : memref<1024x24xf32, #tpu.memory_space<vmem>>, vector<128x24xf32>
    %c0_75 = arith.constant 0 : index
    %c0_76 = arith.constant 0 : index
    %107 = vector.load %arg2[%c0_75, %c0_76] : memref<24x128xf32, #tpu.memory_space<vmem>>, vector<24x128xf32>
    %cst_77 = arith.constant dense<0.000000e+00> : vector<128x128xf32>
    %108 = tpu.matmul %106, %107, %cst_77 {dimension_numbers = #tpu.dot_dimension_numbers<[1], [0], [0], [1], [0, 0, 1, 1], [], []>} : vector<128x24xf32>, vector<24x128xf32>, vector<128x128xf32> -> vector<128x128xf32>
    %109 = vector.broadcast %0 : vector<1x128xf32> to vector<128x128xf32>
    %110 = arith.addf %108, %109 : vector<128x128xf32>
    %cst_78 = arith.constant 0.000000e+00 : f32
    %111 = vector.broadcast %cst_78 : f32 to vector<128x128xf32>
    %112 = arith.maximumf %110, %111 : vector<128x128xf32>
    %c0_79 = arith.constant 0 : index
    %c0_80 = arith.constant 0 : index
    %113 = vector.load %arg3[%c0_79, %c0_80] : memref<128x128xf32, #tpu.memory_space<vmem>>, vector<128x128xf32>
    %cst_81 = arith.constant dense<0.000000e+00> : vector<128x128xf32>
    %114 = tpu.matmul %112, %113, %cst_81 {dimension_numbers = #tpu.dot_dimension_numbers<[1], [0], [0], [1], [0, 0, 1, 1], [], []>} : vector<128x128xf32>, vector<128x128xf32>, vector<128x128xf32> -> vector<128x128xf32>
    %115 = vector.broadcast %1 : vector<1x128xf32> to vector<128x128xf32>
    %116 = arith.addf %114, %115 : vector<128x128xf32>
    %cst_82 = arith.constant 0.000000e+00 : f32
    %117 = vector.broadcast %cst_82 : f32 to vector<128x128xf32>
    %118 = arith.maximumf %116, %117 : vector<128x128xf32>
    %cst_83 = arith.constant dense<0.000000e+00> : vector<1x128xf32>
    %119 = tpu.matmul %2, %118, %cst_83 {dimension_numbers = #tpu.dot_dimension_numbers<[1], [1], [0], [0], [0, 0, 1, 0], [], []>} : vector<1x128xf32>, vector<128x128xf32>, vector<1x128xf32> -> vector<1x128xf32>
    %120 = vector.broadcast %3 : vector<1x1xf32> to vector<1x128xf32>
    %121 = arith.addf %119, %120 : vector<1x128xf32>
    %c6 = arith.constant 6 : index
    %c0_84 = arith.constant 0 : index
    %122 = vector.load %arg5[%c6, %c0_84] : memref<8x128xf32, #tpu.memory_space<vmem>>, vector<1x128xf32>
    tpu.vector_store %arg5[%c6, %c0_84], %121 {strides = array<i32>} : memref<8x128xf32, #tpu.memory_space<vmem>>, vector<1x128xf32>,
    %c896 = arith.constant 896 : index
    %c0_85 = arith.constant 0 : index
    %123 = vector.load %arg1[%c896, %c0_85] : memref<1024x24xf32, #tpu.memory_space<vmem>>, vector<128x24xf32>
    %c0_86 = arith.constant 0 : index
    %c0_87 = arith.constant 0 : index
    %124 = vector.load %arg2[%c0_86, %c0_87] : memref<24x128xf32, #tpu.memory_space<vmem>>, vector<24x128xf32>
    %cst_88 = arith.constant dense<0.000000e+00> : vector<128x128xf32>
    %125 = tpu.matmul %123, %124, %cst_88 {dimension_numbers = #tpu.dot_dimension_numbers<[1], [0], [0], [1], [0, 0, 1, 1], [], []>} : vector<128x24xf32>, vector<24x128xf32>, vector<128x128xf32> -> vector<128x128xf32>
    %126 = vector.broadcast %0 : vector<1x128xf32> to vector<128x128xf32>
    %127 = arith.addf %125, %126 : vector<128x128xf32>
    %cst_89 = arith.constant 0.000000e+00 : f32
    %128 = vector.broadcast %cst_89 : f32 to vector<128x128xf32>
    %129 = arith.maximumf %127, %128 : vector<128x128xf32>
    %c0_90 = arith.constant 0 : index
    %c0_91 = arith.constant 0 : index
    %130 = vector.load %arg3[%c0_90, %c0_91] : memref<128x128xf32, #tpu.memory_space<vmem>>, vector<128x128xf32>
    %cst_92 = arith.constant dense<0.000000e+00> : vector<128x128xf32>
    %131 = tpu.matmul %129, %130, %cst_92 {dimension_numbers = #tpu.dot_dimension_numbers<[1], [0], [0], [1], [0, 0, 1, 1], [], []>} : vector<128x128xf32>, vector<128x128xf32>, vector<128x128xf32> -> vector<128x128xf32>
    %132 = vector.broadcast %1 : vector<1x128xf32> to vector<128x128xf32>
    %133 = arith.addf %131, %132 : vector<128x128xf32>
    %cst_93 = arith.constant 0.000000e+00 : f32
    %134 = vector.broadcast %cst_93 : f32 to vector<128x128xf32>
    %135 = arith.maximumf %133, %134 : vector<128x128xf32>
    %cst_94 = arith.constant dense<0.000000e+00> : vector<1x128xf32>
    %136 = tpu.matmul %2, %135, %cst_94 {dimension_numbers = #tpu.dot_dimension_numbers<[1], [1], [0], [0], [0, 0, 1, 0], [], []>} : vector<1x128xf32>, vector<128x128xf32>, vector<1x128xf32> -> vector<1x128xf32>
    %137 = vector.broadcast %3 : vector<1x1xf32> to vector<1x128xf32>
    %138 = arith.addf %136, %137 : vector<1x128xf32>
    %c7 = arith.constant 7 : index
    %c0_95 = arith.constant 0 : index
    %139 = vector.load %arg5[%c7, %c0_95] : memref<8x128xf32, #tpu.memory_space<vmem>>, vector<1x128xf32>
    tpu.vector_store %arg5[%c7, %c0_95], %138 {strides = array<i32>} : memref<8x128xf32, #tpu.memory_space<vmem>>, vector<1x128xf32>,
    return
  }
  func.func @transform_0(%arg0: i32) -> (i32, i32) {
    %c0_i32 = arith.constant 0 : i32
    %c0_i32_0 = arith.constant 0 : i32
    return %arg0, %c0_i32 : i32, i32
  }
  func.func @transform_1(%arg0: i32) -> (i32, i32) {
    %c0_i32 = arith.constant 0 : i32
    %c0_i32_0 = arith.constant 0 : i32
    %c0_i32_1 = arith.constant 0 : i32
    return %c0_i32, %c0_i32_0 : i32, i32
  }
  func.func @transform_2(%arg0: i32) -> (i32, i32) {
    %c0_i32 = arith.constant 0 : i32
    %c0_i32_0 = arith.constant 0 : i32
    %c0_i32_1 = arith.constant 0 : i32
    return %c0_i32, %c0_i32_0 : i32, i32
  }
  func.func @transform_3(%arg0: i32) -> (i32, i32) {
    %c0_i32 = arith.constant 0 : i32
    %c0_i32_0 = arith.constant 0 : i32
    %c0_i32_1 = arith.constant 0 : i32
    return %c0_i32, %c0_i32_0 : i32, i32
  }
  func.func @transform_4(%arg0: i32) -> (i32, i32) {
    %c0_i32 = arith.constant 0 : i32
    %c0_i32_0 = arith.constant 0 : i32
    return %arg0, %c0_i32 : i32, i32
  }
}

</mosaic_0001>

<llo_original>
// kernel: tpu_custom_call.1
$region0: #{tpu_custom_call.1}
  #allocation0 [shape = 'u32[]', space=smem, size = 0x4, offset = 0x4, fixed_abs, tag = 'smem constant byte address 0x4 - core index']
  #allocation1 [shape = 'u32[144,128]{1,0:T(1,128)}', space=vmem, size = 0x12000, scoped, tag = 'internal scratch']
  %s0 = inlined_call_operand.vmem [shape: f32[2048,24], index: 0, kind: input, shape index: {}]
  %s1 = inlined_call_operand.vmem [shape: f32[24,128], index: 1, kind: input, shape index: {}]
  %s2 = inlined_call_operand.vmem [shape: f32[128,128], index: 2, kind: input, shape index: {}]
  %s3 = inlined_call_operand.vmem [shape: f32[8,128], index: 3, kind: input, shape index: {}]
  %s4 = inlined_call_operand.hbm [shape: f32[16,128], index: 4, kind: output, shape index: {}]
  %s5 = sld [smem:[#allocation0]]
  $region49: #{tpu_custom_call.1} parent=0
    _
  %s7 = ssub.s32 1, %s5
  %s8 = scalar_select 0, %s7, %s5
  $region1: #{tpu_custom_call.1} parent=0
    #allocation2 [shape = 'u8[8192]{0}', space=vmem, size = 0x2000, scoped, tag = 'output window, operand 0']
    #allocation3 [shape = 's32[2]{0}', space=sflag, size = 0x8, scoped, tag = 'scoped memory for tpu_custom_call.1']
    %9 = vsyncpa [#allocation3], 0
    %s10 = scalar_lea.sflag [#allocation3], 1
    %11 = vsyncpa %s10, 0
    loop: start=0, step=1, limit=4
    $region2: #{tpu_custom_call.1} parent=1 // loop_pre_header
      _
    $region3: #{tpu_custom_call.1} parent=1 // loop_header
      %s13 = sphi 0, %s17
      %p14 = scmp.ge.s32.totalorder %s13, 4
      %s23 = sphi 0, %s25
      %s26 = sphi 0, %s23
      %s27 = sphi 0, %s26
      %s43 = sphi 0, %s27
      %s47 = sphi 0, %s47
      %s49 = sphi 0, %s47
      %s50 = sphi 0, %s49
      %s64 = sphi 0, %s50
      %s68 = sphi 0, %s68
      %s70 = sphi 0, %s68
      %s71 = sphi 0, %s70
      %s85 = sphi 0, %s71
      %s89 = sphi 0, %s89
      %s91 = sphi 0, %s89
      %s92 = sphi 0, %s91
      %s106 = sphi 0, %s92
      %s112 = sphi 0, %s114
      %s115 = sphi 0, %s112
      %s116 = sphi 0, %s115
      %s132 = sphi 0, %s116
    $region4: #{tpu_custom_call.1} parent=1 // loop_header_branch
      %16 = sbr.rel (%p14) target = $region8
    $region5: #{tpu_custom_call.1} parent=1 // loop_body
      %s18 = ssub.s32 %s13, 1
      %s19 = ssub.s32 %s13, 2
      %s20 = sadd.s32 %s13, 1
      %s21 = ssub.s32 %s13, %s20
      %p22 = scmp.eq.s32.totalorder %s21, 0
      %s24 = sadd.s32 %s23, 1
      %s25 = scalar_select %p22, %s23, %s24
      %p28 = pneg %p22
      %p29 = scmp.eq.s32.totalorder %s13, 1
      %p30 = por %p28, %p29
      %p31 = scmp.ne.s32.totalorder %s23, %s26
      %p32 = scmp.eq.s32.totalorder %s13, 0
      %p33 = por %p31, %p32
      %p34 = scmp.ne.s32.totalorder %s23, %s26
      %p35 = scmp.eq.s32.totalorder %s18, 1
      %p36 = por %p34, %p35
      %p37 = scmp.ne.s32.totalorder %s26, %s27
      %p38 = scmp.eq.s32.totalorder %s18, 0
      %p39 = por %p37, %p38
      %p40 = scmp.ne.s32.totalorder %s26, %s27
      %p41 = scmp.eq.s32.totalorder %s19, 1
      %p42 = por %p40, %p41
      %p44 = scmp.ne.s32.totalorder %s27, %s43
      %p45 = scmp.eq.s32.totalorder %s19, 0
      %p46 = por %p44, %p45
      %s48 = sadd.s32 %s47, 1
      %p51 = scmp.eq.s32.totalorder %s13, 1
      %p52 = scmp.ne.s32.totalorder %s47, %s49
      %p53 = scmp.eq.s32.totalorder %s13, 0
      %p54 = por %p52, %p53
      %p55 = scmp.ne.s32.totalorder %s47, %s49
      %p56 = scmp.eq.s32.totalorder %s18, 1
      %p57 = por %p55, %p56
      %p58 = scmp.ne.s32.totalorder %s49, %s50
      %p59 = scmp.eq.s32.totalorder %s18, 0
      %p60 = por %p58, %p59
      %p61 = scmp.ne.s32.totalorder %s49, %s50
      %p62 = scmp.eq.s32.totalorder %s19, 1
      %p63 = por %p61, %p62
      %p65 = scmp.ne.s32.totalorder %s50, %s64
      %p66 = scmp.eq.s32.totalorder %s19, 0
      %p67 = por %p65, %p66
      %s69 = sadd.s32 %s68, 1
      %p72 = scmp.eq.s32.totalorder %s13, 1
      %p73 = scmp.ne.s32.totalorder %s68, %s70
      %p74 = scmp.eq.s32.totalorder %s13, 0
      %p75 = por %p73, %p74
      %p76 = scmp.ne.s32.totalorder %s68, %s70
      %p77 = scmp.eq.s32.totalorder %s18, 1
      %p78 = por %p76, %p77
      %p79 = scmp.ne.s32.totalorder %s70, %s71
      %p80 = scmp.eq.s32.totalorder %s18, 0
      %p81 = por %p79, %p80
      %p82 = scmp.ne.s32.totalorder %s70, %s71
      %p83 = scmp.eq.s32.totalorder %s19, 1
      %p84 = por %p82, %p83
      %p86 = scmp.ne.s32.totalorder %s71, %s85
      %p87 = scmp.eq.s32.totalorder %s19, 0
      %p88 = por %p86, %p87
      %s90 = sadd.s32 %s89, 1
      %p93 = scmp.eq.s32.totalorder %s13, 1
      %p94 = scmp.ne.s32.totalorder %s89, %s91
      %p95 = scmp.eq.s32.totalorder %s13, 0
      %p96 = por %p94, %p95
      %p97 = scmp.ne.s32.totalorder %s89, %s91
      %p98 = scmp.eq.s32.totalorder %s18, 1
      %p99 = por %p97, %p98
      %p100 = scmp.ne.s32.totalorder %s91, %s92
      %p101 = scmp.eq.s32.totalorder %s18, 0
      %p102 = por %p100, %p101
      %p103 = scmp.ne.s32.totalorder %s91, %s92
      %p104 = scmp.eq.s32.totalorder %s19, 1
      %p105 = por %p103, %p104
      %p107 = scmp.ne.s32.totalorder %s92, %s106
      %p108 = scmp.eq.s32.totalorder %s19, 0
      %p109 = por %p107, %p108
      %s110 = ssub.s32 %s13, %s20
      %p111 = scmp.eq.s32.totalorder %s110, 0
      %s113 = sadd.s32 %s112, 1
      %s114 = scalar_select %p111, %s112, %s113
      %p117 = pneg %p111
      %p118 = scmp.eq.s32.totalorder %s13, 1
      %p119 = por %p117, %p118
      %p120 = scmp.ne.s32.totalorder %s112, %s115
      %p121 = scmp.eq.s32.totalorder %s13, 0
      %p122 = por %p120, %p121
      %p123 = scmp.ne.s32.totalorder %s112, %s115
      %p124 = scmp.eq.s32.totalorder %s18, 1
      %p125 = por %p123, %p124
      %p126 = scmp.ne.s32.totalorder %s115, %s116
      %p127 = scmp.eq.s32.totalorder %s18, 0
      %p128 = por %p126, %p127
      %p129 = scmp.ne.s32.totalorder %s115, %s116
      %p130 = scmp.eq.s32.totalorder %s19, 1
      %p131 = por %p129, %p130
      %p133 = scmp.ne.s32.totalorder %s116, %s132
      %p134 = scmp.eq.s32.totalorder %s19, 0
      %p135 = por %p133, %p134
      %p136 = scmp.le.s32.totalorder 1, %s13
      %p137 = scmp.lt.s32.totalorder %s13, 3
      %p138 = pnand %p136, %p137
      %p139 = pneg %p138
      // Predicated region
      $region9: #{tpu_custom_call.1} parent=5 // pred_check
        _
      $region10: #{tpu_custom_call.1} parent=5 // pred_check_branch
        %141 = sbr.rel (%p138) target = $region12
      $region11: #{tpu_custom_call.1} parent=5 // pred_region
        %s142 = ssub.s32 %s13, 1
        // Predicated region
        $region13: #{tpu_custom_call.1} parent=11 // pred_check
          %p143 = pneg %p60
        $region14: #{tpu_custom_call.1} parent=11 // pred_check_branch
          %145 = sbr.rel (%p143) target = $region16
        $region15: #{tpu_custom_call.1} parent=11 // pred_region
          _
        $region16: #{tpu_custom_call.1} parent=11 // pred_fallthru
          _
        // Predicated region
        $region17: #{tpu_custom_call.1} parent=11 // pred_check
          %p146 = pneg %p81
        $region18: #{tpu_custom_call.1} parent=11 // pred_check_branch
          %148 = sbr.rel (%p146) target = $region20
        $region19: #{tpu_custom_call.1} parent=11 // pred_region
          _
        $region20: #{tpu_custom_call.1} parent=11 // pred_fallthru
          _
        // Predicated region
        $region21: #{tpu_custom_call.1} parent=11 // pred_check
          %p149 = pneg %p102
        $region22: #{tpu_custom_call.1} parent=11 // pred_check_branch
          %151 = sbr.rel (%p149) target = $region24
        $region23: #{tpu_custom_call.1} parent=11 // pred_region
          _
        $region24: #{tpu_custom_call.1} parent=11 // pred_fallthru
          _
      $region12: #{tpu_custom_call.1} parent=5 // pred_fallthru
        _
      %p152 = scmp.lt.s32.totalorder %s13, 2
      // Predicated region
      $region25: #{tpu_custom_call.1} parent=5 // pred_check
        %p153 = pneg %p152
      $region26: #{tpu_custom_call.1} parent=5 // pred_check_branch
        %155 = sbr.rel (%p153) target = $region28
      $region27: #{tpu_custom_call.1} parent=5 // pred_region
        // Predicated region
        $region29: #{tpu_custom_call.1} parent=27 // pred_check
          %p156 = pneg %p33
        $region30: #{tpu_custom_call.1} parent=27 // pred_check_branch
          %158 = sbr.rel (%p156) target = $region32
        $region31: #{tpu_custom_call.1} parent=27 // pred_region
          %s159 = smul.u32 128, %s13
          %p160 = scmp.lt.s32.totalorder %s159, 255
          %s161 = scalar_select %p160, %s159, 255
          %s162 = smul.addr %s161, 8
          %s163 = scalar_lea.vmem %s0, %s162
          %s164 = smul.u32 128, %s13
        $region32: #{tpu_custom_call.1} parent=27 // pred_fallthru
          _
      $region28: #{tpu_custom_call.1} parent=5 // pred_fallthru
        _
      %p165 = scmp.le.s32.totalorder 1, %s13
      %p166 = scmp.lt.s32.totalorder %s13, 3
      %p167 = pnand %p165, %p166
      %p168 = pneg %p167
      // Predicated region
      $region33: #{tpu_custom_call.1} parent=5 // pred_check
        _
      $region34: #{tpu_custom_call.1} parent=5 // pred_check_branch
        %170 = sbr.rel (%p167) target = $region36
      $region35: #{tpu_custom_call.1} parent=5 // pred_region
        %s171 = ssub.s32 %s13, 1
        %s172 = smul.u32 128, %s18
        %p173 = scmp.lt.s32.totalorder %s172, 255
        %s174 = scalar_select %p173, %s172, 255
        %s175 = smul.addr %s174, 8
        %s176 = scalar_lea.vmem %s0, %s175
        %p177 = pneg %p39
        %p178 = pneg %p36
        %p179 = pneg %p60
        %p180 = pneg %p57
        %p181 = pneg %p81
        %p182 = pneg %p78
        %p183 = pneg %p102
        %p184 = pneg %p99
        %p185 = pneg %p128
        %p186 = pneg %p125
        %s187 = sand.u32 %s115, 1
        %s188 = scalar_lea.sflag [#allocation3], %s187
        %s189 = sand.u32 %s115, 1
        %s190 = smul.addr %s189, 8
        %s191 = scalar_lea.vmem [#allocation2], %s190
        %s192 = smul.u32 128, %s18
        %p193 = scmp.lt.s32.totalorder %s192, 255
        %s194 = scalar_select %p193, %s192, 255
        %s195 = smul.addr %s194, 8
        %s196 = scalar_lea.vmem %s0, %s195
        %s197 = smul.u32 128, %s18
        %v198 = vld [vmem:[%s3] sm:$0x1]
        %v199 = vld [vmem:[%s3 + $0x1] sm:$0x1]
        %v200 = vld [vmem:[%s3 + $0x2] sm:$0x1]
        %v201 = vld [vmem:[%s3 + $0x3] sm:$0x1]
        %v202 = vld [vmem:[%s196] sm:$0xff]
        %v203 = vld [vmem:[%s196 + $0x8] sm:$0xff]
        %v204 = vld [vmem:[%s196 + $0x10] sm:$0xff]
        %v205 = vld [vmem:[%s196 + $0x18] sm:$0xff]
        %v206 = vld [vmem:[%s196 + $0x20] sm:$0xff]
        %v207 = vld [vmem:[%s196 + $0x28] sm:$0xff]
        %v208 = vld [vmem:[%s196 + $0x30] sm:$0xff]
        %v209 = vld [vmem:[%s196 + $0x38] sm:$0xff]
        %v210 = vld [vmem:[%s196 + $0x40] sm:$0xff]
        %v211 = vld [vmem:[%s196 + $0x48] sm:$0xff]
        %v212 = vld [vmem:[%s196 + $0x50] sm:$0xff]
        %v213 = vld [vmem:[%s196 + $0x58] sm:$0xff]
        %v214 = vld [vmem:[%s196 + $0x60] sm:$0xff]
        %v215 = vld [vmem:[%s196 + $0x68] sm:$0xff]
        %v216 = vld [vmem:[%s196 + $0x70] sm:$0xff]
        %v217 = vld [vmem:[%s196 + $0x78] sm:$0xff]
        %v218 = vld [vmem:[%s1] sm:$0xff]
        %v219 = vld [vmem:[%s1 + $0x8] sm:$0xff]
        %v220 = vld [vmem:[%s1 + $0x10] sm:$0xff]
        %v221 = vlaneseq
        %v222 = vshrl.u32 %v221, 7
        %v223 = vsub.s32 0, %v222
        %v224 = vrot.slane %v198, %v223
        %vm225 = vcmask 195584
        %v227 = vsel %vm225, %v202, 0
        %v230 = vsel %vm225, %v203, 0
        %v233 = vsel %vm225, %v204, 0
        %v236 = vsel %vm225, %v205, 0
        %v239 = vsel %vm225, %v206, 0
        %v242 = vsel %vm225, %v207, 0
        %v245 = vsel %vm225, %v208, 0
        %v248 = vsel %vm225, %v209, 0
        %v251 = vsel %vm225, %v210, 0
        %v254 = vsel %vm225, %v211, 0
        %v257 = vsel %vm225, %v212, 0
        %v260 = vsel %vm225, %v213, 0
        %v263 = vsel %vm225, %v214, 0
        %v266 = vsel %vm225, %v215, 0
        %v269 = vsel %vm225, %v216, 0
        %v272 = vsel %vm225, %v217, 0
        %274 = vmatprep.subr.mxu0 0.0
        %275 = vmatpush1.msra.mxu0 %v218
        %276 = vmatprep.subr.mxu0 0.0
        %277 = vmatpush1.msra.mxu0 %v219
        %278 = vmatprep.subr.mxu0 0.0
        %279 = vmatpush1.msra.mxu0 %v220
        %280 = vmatprep.subr.mxu0 0.0
        %281 = vmatpush1.msra.mxu0 0.0
        %282 = vmatprep.subr.mxu0 0.0
        %283 = vmatpush1.msra.mxu0 0.0
        %284 = vmatprep.subr.mxu0 0.0
        %285 = vmatpush1.msra.mxu0 0.0
        %286 = vmatprep.subr.mxu0 0.0
        %287 = vmatpush1.msra.mxu0 0.0
        %288 = vmatprep.subr.mxu0 0.0
        %289 = vmatpush1.msra.mxu0 0.0
        %290 = vmatprep.subr.mxu0 0.0
        %291 = vmatpush1.msra.mxu0 0.0
        %292 = vmatprep.subr.mxu0 0.0
        %293 = vmatpush1.msra.mxu0 0.0
        %294 = vmatprep.subr.mxu0 0.0
        %295 = vmatpush1.msra.mxu0 0.0
        %296 = vmatprep.subr.mxu0 0.0
        %297 = vmatpush1.msra.mxu0 0.0
        %298 = vmatprep.subr.mxu0 0.0
        %299 = vmatpush1.msra.mxu0 0.0
        %300 = vmatprep.subr.mxu0 0.0
        %301 = vmatpush1.msra.mxu0 0.0
        %302 = vmatprep.subr.mxu0 0.0
        %303 = vmatpush1.msra.mxu0 0.0
        %304 = vmatprep.subr.mxu0 0.0
        %305 = vmatpush1.msra.mxu0 0.0
        %306 = vmatprep.subr.mxu0 0.0
        %307 = vmatpush1.msra.mxu0 0.0
        %308 = vmatprep.subr.mxu0 0.0
        %309 = vmatpush1.msra.mxu0 0.0
        %310 = vmatprep.subr.mxu0 0.0
        %311 = vmatpush1.msra.mxu0 0.0
        %312 = vmatprep.subr.mxu0 0.0
        %313 = vmatpush1.msra.mxu0 0.0
        %314 = vmatprep.subr.mxu0 0.0
        %315 = vmatpush1.msra.mxu0 0.0
        %316 = vmatprep.subr.mxu0 0.0
        %317 = vmatpush1.msra.mxu0 0.0
        %318 = vmatprep.subr.mxu0 0.0
        %319 = vmatpush1.msra.mxu0 0.0
        %320 = vmatprep.subr.mxu0 0.0
        %321 = vmatpush1.msra.mxu0 0.0
        %322 = vmatprep.subr.mxu0 0.0
        %323 = vmatpush1.msra.mxu0 0.0
        %324 = vmatprep.subr.mxu0 0.0
        %325 = vmatpush1.msra.mxu0 0.0
        %326 = vmatprep.subr.mxu0 0.0
        %327 = vmatpush1.msra.mxu0 0.0
        %328 = vmatprep.subr.mxu0 0.0
        %329 = vmatpush1.msra.mxu0 0.0
        %330 = vmatprep.subr.mxu0 0.0
        %331 = vmatpush1.msra.mxu0 0.0
        %332 = vmatprep.subr.mxu0 0.0
        %333 = vmatpush1.msra.mxu0 0.0
        %334 = vmatprep.subr.mxu0 0.0
        %335 = vmatpush1.msra.mxu0 0.0
        %336 = vmatprep.subr.mxu0 0.0
        %337 = vmatpush1.msra.mxu0 0.0
        %338 = vmatprep.mubr.f32.mxu0 0.0
        %339 = vmatmul.mubr.f32.gmra.mrb[0].mxu0 %v227
        %v340 = vpop.f32.mrb[0].mxu0
        %v341 = vadd.f32 %v224, %v340
        %v342 = vpop.f32.mrb[0].mxu0
        %343 = vmatprep.mubr.f32.mxu0 0.0
        %344 = vmatmul.mubr.f32.gmra.mrb[0].mxu0 %v230
        %v345 = vpop.f32.mrb[0].mxu0
        %v346 = vadd.f32 %v224, %v345
        %v347 = vpop.f32.mrb[0].mxu0
        %348 = vmatprep.mubr.f32.mxu0 0.0
        %349 = vmatmul.mubr.f32.gmra.mrb[0].mxu0 %v233
        %v350 = vpop.f32.mrb[0].mxu0
        %v351 = vadd.f32 %v224, %v350
        %v352 = vpop.f32.mrb[0].mxu0
        %353 = vmatprep.mubr.f32.mxu0 0.0
        %354 = vmatmul.mubr.f32.gmra.mrb[0].mxu0 %v236
        %v355 = vpop.f32.mrb[0].mxu0
        %v356 = vadd.f32 %v224, %v355
        %v357 = vpop.f32.mrb[0].mxu0
        %358 = vmatprep.mubr.f32.mxu0 0.0
        %359 = vmatmul.mubr.f32.gmra.mrb[0].mxu0 %v239
        %v360 = vpop.f32.mrb[0].mxu0
        %v361 = vadd.f32 %v224, %v360
        %v362 = vpop.f32.mrb[0].mxu0
        %363 = vmatprep.mubr.f32.mxu0 0.0
        %364 = vmatmul.mubr.f32.gmra.mrb[0].mxu0 %v242
        %v365 = vpop.f32.mrb[0].mxu0
        %v366 = vadd.f32 %v224, %v365
        %v367 = vpop.f32.mrb[0].mxu0
        %368 = vmatprep.mubr.f32.mxu0 0.0
        %369 = vmatmul.mubr.f32.gmra.mrb[0].mxu0 %v245
        %v370 = vpop.f32.mrb[0].mxu0
        %v371 = vadd.f32 %v224, %v370
        %v372 = vpop.f32.mrb[0].mxu0
        %373 = vmatprep.mubr.f32.mxu0 0.0
        %374 = vmatmul.mubr.f32.gmra.mrb[0].mxu0 %v248
        %v375 = vpop.f32.mrb[0].mxu0
        %v376 = vadd.f32 %v224, %v375
        %v377 = vpop.f32.mrb[0].mxu0
        %378 = vmatprep.mubr.f32.mxu0 0.0
        %379 = vmatmul.mubr.f32.gmra.mrb[0].mxu0 %v251
        %v380 = vpop.f32.mrb[0].mxu0
        %v381 = vadd.f32 %v224, %v380
        %v382 = vpop.f32.mrb[0].mxu0
        %383 = vmatprep.mubr.f32.mxu0 0.0
        %384 = vmatmul.mubr.f32.gmra.mrb[0].mxu0 %v254
        %v385 = vpop.f32.mrb[0].mxu0
        %v386 = vadd.f32 %v224, %v385
        %v387 = vpop.f32.mrb[0].mxu0
        %388 = vmatprep.mubr.f32.mxu0 0.0
        %389 = vmatmul.mubr.f32.gmra.mrb[0].mxu0 %v257
        %v390 = vpop.f32.mrb[0].mxu0
        %v391 = vadd.f32 %v224, %v390
        %v392 = vpop.f32.mrb[0].mxu0
        %393 = vmatprep.mubr.f32.mxu0 0.0
        %394 = vmatmul.mubr.f32.gmra.mrb[0].mxu0 %v260
        %v395 = vpop.f32.mrb[0].mxu0
        %v396 = vadd.f32 %v224, %v395
        %v397 = vpop.f32.mrb[0].mxu0
        %398 = vmatprep.mubr.f32.mxu0 0.0
        %399 = vmatmul.mubr.f32.gmra.mrb[0].mxu0 %v263
        %v400 = vpop.f32.mrb[0].mxu0
        %v401 = vadd.f32 %v224, %v400
        %v402 = vpop.f32.mrb[0].mxu0
        %403 = vmatprep.mubr.f32.mxu0 0.0
        %404 = vmatmul.mubr.f32.gmra.mrb[0].mxu0 %v266
        %v405 = vpop.f32.mrb[0].mxu0
        %v406 = vadd.f32 %v224, %v405
        %v407 = vpop.f32.mrb[0].mxu0
        %408 = vmatprep.mubr.f32.mxu0 0.0
        %409 = vmatmul.mubr.f32.gmra.mrb[0].mxu0 %v269
        %v410 = vpop.f32.mrb[0].mxu0
        %v411 = vadd.f32 %v224, %v410
        %v412 = vpop.f32.mrb[0].mxu0
        %413 = vmatprep.mubr.f32.mxu0 0.0
        %414 = vmatmul.mubr.f32.gmra.mrb[0].mxu0 %v272
        %v415 = vpop.f32.mrb[0].mxu0
        %v416 = vadd.f32 %v224, %v415
        %v417 = vpop.f32.mrb[0].mxu0
        %418 = vdwg.mxu0
        %v419 = vmax.f32 %v341, 0.0
        %v420 = vmax.f32 %v346, 0.0
        %v421 = vmax.f32 %v351, 0.0
        %v422 = vmax.f32 %v356, 0.0
        %v423 = vmax.f32 %v361, 0.0
        %v424 = vmax.f32 %v366, 0.0
        %v425 = vmax.f32 %v371, 0.0
        %v426 = vmax.f32 %v376, 0.0
        %v427 = vmax.f32 %v381, 0.0
        %v428 = vmax.f32 %v386, 0.0
        %v429 = vmax.f32 %v391, 0.0
        %v430 = vmax.f32 %v396, 0.0
        %v431 = vmax.f32 %v401, 0.0
        %v432 = vmax.f32 %v406, 0.0
        %v433 = vmax.f32 %v411, 0.0
        %v434 = vmax.f32 %v416, 0.0
        %v435 = vld [vmem:[%s2] sm:$0xff]
        %v436 = vld [vmem:[%s2 + $0x8] sm:$0xff]
        %v437 = vld [vmem:[%s2 + $0x10] sm:$0xff]
        %v438 = vld [vmem:[%s2 + $0x18] sm:$0xff]
        %v439 = vld [vmem:[%s2 + $0x20] sm:$0xff]
        %v440 = vld [vmem:[%s2 + $0x28] sm:$0xff]
        %v441 = vld [vmem:[%s2 + $0x30] sm:$0xff]
        %v442 = vld [vmem:[%s2 + $0x38] sm:$0xff]
        %v443 = vld [vmem:[%s2 + $0x40] sm:$0xff]
        %v444 = vld [vmem:[%s2 + $0x48] sm:$0xff]
        %v445 = vld [vmem:[%s2 + $0x50] sm:$0xff]
        %v446 = vld [vmem:[%s2 + $0x58] sm:$0xff]
        %v447 = vld [vmem:[%s2 + $0x60] sm:$0xff]
        %v448 = vld [vmem:[%s2 + $0x68] sm:$0xff]
        %v449 = vld [vmem:[%s2 + $0x70] sm:$0xff]
        %v450 = vld [vmem:[%s2 + $0x78] sm:$0xff]
        %v451 = vlaneseq
        %v452 = vshrl.u32 %v451, 7
        %v453 = vsub.s32 0, %v452
        %v454 = vrot.slane %v199, %v453
        %455 = vmatprep.subr.mxu0 0.0
        %456 = vmatpush1.msra.mxu0 %v435
        %457 = vmatprep.subr.mxu0 0.0
        %458 = vmatpush1.msra.mxu0 %v436
        %459 = vmatprep.subr.mxu0 0.0
        %460 = vmatpush1.msra.mxu0 %v437
        %461 = vmatprep.subr.mxu0 0.0
        %462 = vmatpush1.msra.mxu0 %v438
        %463 = vmatprep.subr.mxu0 0.0
        %464 = vmatpush1.msra.mxu0 %v439
        %465 = vmatprep.subr.mxu0 0.0
        %466 = vmatpush1.msra.mxu0 %v440
        %467 = vmatprep.subr.mxu0 0.0
        %468 = vmatpush1.msra.mxu0 %v441
        %469 = vmatprep.subr.mxu0 0.0
        %470 = vmatpush1.msra.mxu0 %v442
        %471 = vmatprep.subr.mxu0 0.0
        %472 = vmatpush1.msra.mxu0 %v443
        %473 = vmatprep.subr.mxu0 0.0
        %474 = vmatpush1.msra.mxu0 %v444
        %475 = vmatprep.subr.mxu0 0.0
        %476 = vmatpush1.msra.mxu0 %v445
        %477 = vmatprep.subr.mxu0 0.0
        %478 = vmatpush1.msra.mxu0 %v446
        %479 = vmatprep.subr.mxu0 0.0
        %480 = vmatpush1.msra.mxu0 %v447
        %481 = vmatprep.subr.mxu0 0.0
        %482 = vmatpush1.msra.mxu0 %v448
        %483 = vmatprep.subr.mxu0 0.0
        %484 = vmatpush1.msra.mxu0 %v449
        %485 = vmatprep.subr.mxu0 0.0
        %486 = vmatpush1.msra.mxu0 %v450
        %487 = vmatprep.subr.mxu0 0.0
        %488 = vmatpush1.msra.mxu0 0.0
        %489 = vmatprep.subr.mxu0 0.0
        %490 = vmatpush1.msra.mxu0 0.0
        %491 = vmatprep.subr.mxu0 0.0
        %492 = vmatpush1.msra.mxu0 0.0
        %493 = vmatprep.subr.mxu0 0.0
        %494 = vmatpush1.msra.mxu0 0.0
        %495 = vmatprep.subr.mxu0 0.0
        %496 = vmatpush1.msra.mxu0 0.0
        %497 = vmatprep.subr.mxu0 0.0
        %498 = vmatpush1.msra.mxu0 0.0
        %499 = vmatprep.subr.mxu0 0.0
        %500 = vmatpush1.msra.mxu0 0.0
        %501 = vmatprep.subr.mxu0 0.0
        %502 = vmatpush1.msra.mxu0 0.0
        %503 = vmatprep.subr.mxu0 0.0
        %504 = vmatpush1.msra.mxu0 0.0
        %505 = vmatprep.subr.mxu0 0.0
        %506 = vmatpush1.msra.mxu0 0.0
        %507 = vmatprep.subr.mxu0 0.0
        %508 = vmatpush1.msra.mxu0 0.0
        %509 = vmatprep.subr.mxu0 0.0
        %510 = vmatpush1.msra.mxu0 0.0
        %511 = vmatprep.subr.mxu0 0.0
        %512 = vmatpush1.msra.mxu0 0.0
        %513 = vmatprep.subr.mxu0 0.0
        %514 = vmatpush1.msra.mxu0 0.0
        %515 = vmatprep.subr.mxu0 0.0
        %516 = vmatpush1.msra.mxu0 0.0
        %517 = vmatprep.subr.mxu0 0.0
        %518 = vmatpush1.msra.mxu0 0.0
        %519 = vmatprep.mubr.f32.mxu0 0.0
        %520 = vmatmul.mubr.f32.gmra.mrb[0].mxu0 %v419
        %v521 = vpop.f32.mrb[0].mxu0
        %v522 = vadd.f32 %v454, %v521
        %v523 = vpop.f32.mrb[0].mxu0
        %524 = vmatprep.mubr.f32.mxu0 0.0
        %525 = vmatmul.mubr.f32.gmra.mrb[0].mxu0 %v420
        %v526 = vpop.f32.mrb[0].mxu0
        %v527 = vadd.f32 %v454, %v526
        %v528 = vpop.f32.mrb[0].mxu0
        %529 = vmatprep.mubr.f32.mxu0 0.0
        %530 = vmatmul.mubr.f32.gmra.mrb[0].mxu0 %v421
        %v531 = vpop.f32.mrb[0].mxu0
        %v532 = vadd.f32 %v454, %v531
        %v533 = vpop.f32.mrb[0].mxu0
        %534 = vmatprep.mubr.f32.mxu0 0.0
        %535 = vmatmul.mubr.f32.gmra.mrb[0].mxu0 %v422
        %v536 = vpop.f32.mrb[0].mxu0
        %v537 = vadd.f32 %v454, %v536
        %v538 = vpop.f32.mrb[0].mxu0
        %539 = vmatprep.mubr.f32.mxu0 0.0
        %540 = vmatmul.mubr.f32.gmra.mrb[0].mxu0 %v423
        %v541 = vpop.f32.mrb[0].mxu0
        %v542 = vadd.f32 %v454, %v541
        %v543 = vpop.f32.mrb[0].mxu0
        %544 = vmatprep.mubr.f32.mxu0 0.0
        %545 = vmatmul.mubr.f32.gmra.mrb[0].mxu0 %v424
        %v546 = vpop.f32.mrb[0].mxu0
        %v547 = vadd.f32 %v454, %v546
        %v548 = vpop.f32.mrb[0].mxu0
        %549 = vmatprep.mubr.f32.mxu0 0.0
        %550 = vmatmul.mubr.f32.gmra.mrb[0].mxu0 %v425
        %v551 = vpop.f32.mrb[0].mxu0
        %v552 = vadd.f32 %v454, %v551
        %v553 = vpop.f32.mrb[0].mxu0
        %554 = vmatprep.mubr.f32.mxu0 0.0
        %555 = vmatmul.mubr.f32.gmra.mrb[0].mxu0 %v426
        %v556 = vpop.f32.mrb[0].mxu0
        %v557 = vadd.f32 %v454, %v556
        %v558 = vpop.f32.mrb[0].mxu0
        %559 = vmatprep.mubr.f32.mxu0 0.0
        %560 = vmatmul.mubr.f32.gmra.mrb[0].mxu0 %v427
        %v561 = vpop.f32.mrb[0].mxu0
        %v562 = vadd.f32 %v454, %v561
        %v563 = vpop.f32.mrb[0].mxu0
        %564 = vmatprep.mubr.f32.mxu0 0.0
        %565 = vmatmul.mubr.f32.gmra.mrb[0].mxu0 %v428
        %v566 = vpop.f32.mrb[0].mxu0
        %v567 = vadd.f32 %v454, %v566
        %v568 = vpop.f32.mrb[0].mxu0
        %569 = vmatprep.mubr.f32.mxu0 0.0
        %570 = vmatmul.mubr.f32.gmra.mrb[0].mxu0 %v429
        %v571 = vpop.f32.mrb[0].mxu0
        %v572 = vadd.f32 %v454, %v571
        %v573 = vpop.f32.mrb[0].mxu0
        %574 = vmatprep.mubr.f32.mxu0 0.0
        %575 = vmatmul.mubr.f32.gmra.mrb[0].mxu0 %v430
        %v576 = vpop.f32.mrb[0].mxu0
        %v577 = vadd.f32 %v454, %v576
        %v578 = vpop.f32.mrb[0].mxu0
        %579 = vmatprep.mubr.f32.mxu0 0.0
        %580 = vmatmul.mubr.f32.gmra.mrb[0].mxu0 %v431
        %v581 = vpop.f32.mrb[0].mxu0
        %v582 = vadd.f32 %v454, %v581
        %v583 = vpop.f32.mrb[0].mxu0
        %584 = vmatprep.mubr.f32.mxu0 0.0
        %585 = vmatmul.mubr.f32.gmra.mrb[0].mxu0 %v432
        %v586 = vpop.f32.mrb[0].mxu0
        %v587 = vadd.f32 %v454, %v586
        %v588 = vpop.f32.mrb[0].mxu0
        %589 = vmatprep.mubr.f32.mxu0 0.0
        %590 = vmatmul.mubr.f32.gmra.mrb[0].mxu0 %v433
        %v591 = vpop.f32.mrb[0].mxu0
        %v592 = vadd.f32 %v454, %v591
        %v593 = vpop.f32.mrb[0].mxu0
        %594 = vmatprep.mubr.f32.mxu0 0.0
        %595 = vmatmul.mubr.f32.gmra.mrb[0].mxu0 %v434
        %v596 = vpop.f32.mrb[0].mxu0
        %v597 = vadd.f32 %v454, %v596
        %v598 = vpop.f32.mrb[0].mxu0
        %599 = vdwg.mxu0
        %v600 = vmax.f32 %v522, 0.0
        %v601 = vmax.f32 %v527, 0.0
        %v602 = vmax.f32 %v532, 0.0
        %v603 = vmax.f32 %v537, 0.0
        %v604 = vmax.f32 %v542, 0.0
        %v605 = vmax.f32 %v547, 0.0
        %v606 = vmax.f32 %v552, 0.0
        %v607 = vmax.f32 %v557, 0.0
        %v608 = vmax.f32 %v562, 0.0
        %v609 = vmax.f32 %v567, 0.0
        %v610 = vmax.f32 %v572, 0.0
        %v611 = vmax.f32 %v577, 0.0
        %v612 = vmax.f32 %v582, 0.0
        %v613 = vmax.f32 %v587, 0.0
        %v614 = vmax.f32 %v592, 0.0
        %v615 = vmax.f32 %v597, 0.0
        %617 = vset.pattern.permute.xlu0 0
        %618 = vperm.xlu0 %617, %v201
        %v619 = vpop.permute.xlu0 %618
        %621 = vmatprep.subr.mxu0 0.0
        %622 = vmatpush1.xpose.msra.mxu0 %v600
        %623 = vmatprep.subr.mxu0 0.0
        %624 = vmatpush1.xpose.msra.mxu0 %v601
        %625 = vmatprep.subr.mxu0 0.0
        %626 = vmatpush1.xpose.msra.mxu0 %v602
        %627 = vmatprep.subr.mxu0 0.0
        %628 = vmatpush1.xpose.msra.mxu0 %v603
        %629 = vmatprep.subr.mxu0 0.0
        %630 = vmatpush1.xpose.msra.mxu0 %v604
        %631 = vmatprep.subr.mxu0 0.0
        %632 = vmatpush1.xpose.msra.mxu0 %v605
        %633 = vmatprep.subr.mxu0 0.0
        %634 = vmatpush1.xpose.msra.mxu0 %v606
        %635 = vmatprep.subr.mxu0 0.0
        %636 = vmatpush1.xpose.msra.mxu0 %v607
        %637 = vmatprep.subr.mxu0 0.0
        %638 = vmatpush1.xpose.msra.mxu0 %v608
        %639 = vmatprep.subr.mxu0 0.0
        %640 = vmatpush1.xpose.msra.mxu0 %v609
        %641 = vmatprep.subr.mxu0 0.0
        %642 = vmatpush1.xpose.msra.mxu0 %v610
        %643 = vmatprep.subr.mxu0 0.0
        %644 = vmatpush1.xpose.msra.mxu0 %v611
        %645 = vmatprep.subr.mxu0 0.0
        %646 = vmatpush1.xpose.msra.mxu0 %v612
        %647 = vmatprep.subr.mxu0 0.0
        %648 = vmatpush1.xpose.msra.mxu0 %v613
        %649 = vmatprep.subr.mxu0 0.0
        %650 = vmatpush1.xpose.msra.mxu0 %v614
        %651 = vmatprep.subr.mxu0 0.0
        %652 = vmatpush1.xpose.msra.mxu0 %v615
        %653 = vmatprep.subr.mxu0 0.0
        %654 = vmatpush1.xpose.msra.mxu0 0.0
        %655 = vmatprep.subr.mxu0 0.0
        %656 = vmatpush1.xpose.msra.mxu0 0.0
        %657 = vmatprep.subr.mxu0 0.0
        %658 = vmatpush1.xpose.msra.mxu0 0.0
        %659 = vmatprep.subr.mxu0 0.0
        %660 = vmatpush1.xpose.msra.mxu0 0.0
        %661 = vmatprep.subr.mxu0 0.0
        %662 = vmatpush1.xpose.msra.mxu0 0.0
        %663 = vmatprep.subr.mxu0 0.0
        %664 = vmatpush1.xpose.msra.mxu0 0.0
        %665 = vmatprep.subr.mxu0 0.0
        %666 = vmatpush1.xpose.msra.mxu0 0.0
        %667 = vmatprep.subr.mxu0 0.0
        %668 = vmatpush1.xpose.msra.mxu0 0.0
        %669 = vmatprep.subr.mxu0 0.0
        %670 = vmatpush1.xpose.msra.mxu0 0.0
        %671 = vmatprep.subr.mxu0 0.0
        %672 = vmatpush1.xpose.msra.mxu0 0.0
        %673 = vmatprep.subr.mxu0 0.0
        %674 = vmatpush1.xpose.msra.mxu0 0.0
        %675 = vmatprep.subr.mxu0 0.0
        %676 = vmatpush1.xpose.msra.mxu0 0.0
        %677 = vmatprep.subr.mxu0 0.0
        %678 = vmatpush1.xpose.msra.mxu0 0.0
        %679 = vmatprep.subr.mxu0 0.0
        %680 = vmatpush1.xpose.msra.mxu0 0.0
        %681 = vmatprep.subr.mxu0 0.0
        %682 = vmatpush1.xpose.msra.mxu0 0.0
        %683 = vmatprep.subr.mxu0 0.0
        %684 = vmatpush1.xpose.msra.mxu0 0.0
        %685 = vmatprep.mubr.f32.mxu0 0.0
        %686 = vmatmul.mubr.f32.gmra.mrb[0].mxu0 %v200
        %v687 = vpop.f32.mrb[0].mxu0
        %v688 = vadd.f32 %v619, %v687
        %v689 = vpop.f32.mrb[0].mxu0
        %690 = vdwg.mxu0
        %691 = vst [vmem:[%s191] sm:$0x1] %v688
        %v692 = vld [vmem:[%s196 + $0x80] sm:$0xff]
        %v693 = vld [vmem:[%s196 + $0x88] sm:$0xff]
        %v694 = vld [vmem:[%s196 + $0x90] sm:$0xff]
        %v695 = vld [vmem:[%s196 + $0x98] sm:$0xff]
        %v696 = vld [vmem:[%s196 + $0xa0] sm:$0xff]
        %v697 = vld [vmem:[%s196 + $0xa8] sm:$0xff]
        %v698 = vld [vmem:[%s196 + $0xb0] sm:$0xff]
        %v699 = vld [vmem:[%s196 + $0xb8] sm:$0xff]
        %v700 = vld [vmem:[%s196 + $0xc0] sm:$0xff]
        %v701 = vld [vmem:[%s196 + $0xc8] sm:$0xff]
        %v702 = vld [vmem:[%s196 + $0xd0] sm:$0xff]
        %v703 = vld [vmem:[%s196 + $0xd8] sm:$0xff]
        %v704 = vld [vmem:[%s196 + $0xe0] sm:$0xff]
        %v705 = vld [vmem:[%s196 + $0xe8] sm:$0xff]
        %v706 = vld [vmem:[%s196 + $0xf0] sm:$0xff]
        %v707 = vld [vmem:[%s196 + $0xf8] sm:$0xff]
        %v708 = vld [vmem:[%s1] sm:$0xff]
        %v709 = vld [vmem:[%s1 + $0x8] sm:$0xff]
        %v710 = vld [vmem:[%s1 + $0x10] sm:$0xff]
        %v712 = vsel %vm225, %v692, 0
        %v715 = vsel %vm225, %v693, 0
        %v718 = vsel %vm225, %v694, 0
        %v721 = vsel %vm225, %v695, 0
        %v724 = vsel %vm225, %v696, 0
        %v727 = vsel %vm225, %v697, 0
        %v730 = vsel %vm225, %v698, 0
        %v733 = vsel %vm225, %v699, 0
        %v736 = vsel %vm225, %v700, 0
        %v739 = vsel %vm225, %v701, 0
        %v742 = vsel %vm225, %v702, 0
        %v745 = vsel %vm225, %v703, 0
        %v748 = vsel %vm225, %v704, 0
        %v751 = vsel %vm225, %v705, 0
        %v754 = vsel %vm225, %v706, 0
        %v757 = vsel %vm225, %v707, 0
        %759 = vmatprep.subr.mxu0 0.0
        %760 = vmatpush1.msra.mxu0 %v708
        %761 = vmatprep.subr.mxu0 0.0
        %762 = vmatpush1.msra.mxu0 %v709
        %763 = vmatprep.subr.mxu0 0.0
        %764 = vmatpush1.msra.mxu0 %v710
        %765 = vmatprep.subr.mxu0 0.0
        %766 = vmatpush1.msra.mxu0 0.0
        %767 = vmatprep.subr.mxu0 0.0
        %768 = vmatpush1.msra.mxu0 0.0
        %769 = vmatprep.subr.mxu0 0.0
        %770 = vmatpush1.msra.mxu0 0.0
        %771 = vmatprep.subr.mxu0 0.0
        %772 = vmatpush1.msra.mxu0 0.0
        %773 = vmatprep.subr.mxu0 0.0
        %774 = vmatpush1.msra.mxu0 0.0
        %775 = vmatprep.subr.mxu0 0.0
        %776 = vmatpush1.msra.mxu0 0.0
        %777 = vmatprep.subr.mxu0 0.0
        %778 = vmatpush1.msra.mxu0 0.0
        %779 = vmatprep.subr.mxu0 0.0
        %780 = vmatpush1.msra.mxu0 0.0
        %781 = vmatprep.subr.mxu0 0.0
        %782 = vmatpush1.msra.mxu0 0.0
        %783 = vmatprep.subr.mxu0 0.0
        %784 = vmatpush1.msra.mxu0 0.0
        %785 = vmatprep.subr.mxu0 0.0
        %786 = vmatpush1.msra.mxu0 0.0
        %787 = vmatprep.subr.mxu0 0.0
        %788 = vmatpush1.msra.mxu0 0.0
        %789 = vmatprep.subr.mxu0 0.0
        %790 = vmatpush1.msra.mxu0 0.0
        %791 = vmatprep.subr.mxu0 0.0
        %792 = vmatpush1.msra.mxu0 0.0
        %793 = vmatprep.subr.mxu0 0.0
        %794 = vmatpush1.msra.mxu0 0.0
        %795 = vmatprep.subr.mxu0 0.0
        %796 = vmatpush1.msra.mxu0 0.0
        %797 = vmatprep.subr.mxu0 0.0
        %798 = vmatpush1.msra.mxu0 0.0
        %799 = vmatprep.subr.mxu0 0.0
        %800 = vmatpush1.msra.mxu0 0.0
        %801 = vmatprep.subr.mxu0 0.0
        %802 = vmatpush1.msra.mxu0 0.0
        %803 = vmatprep.subr.mxu0 0.0
        %804 = vmatpush1.msra.mxu0 0.0
        %805 = vmatprep.subr.mxu0 0.0
        %806 = vmatpush1.msra.mxu0 0.0
        %807 = vmatprep.subr.mxu0 0.0
        %808 = vmatpush1.msra.mxu0 0.0
        %809 = vmatprep.subr.mxu0 0.0
        %810 = vmatpush1.msra.mxu0 0.0
        %811 = vmatprep.subr.mxu0 0.0
        %812 = vmatpush1.msra.mxu0 0.0
        %813 = vmatprep.subr.mxu0 0.0
        %814 = vmatpush1.msra.mxu0 0.0
        %815 = vmatprep.subr.mxu0 0.0
        %816 = vmatpush1.msra.mxu0 0.0
        %817 = vmatprep.subr.mxu0 0.0
        %818 = vmatpush1.msra.mxu0 0.0
        %819 = vmatprep.subr.mxu0 0.0
        %820 = vmatpush1.msra.mxu0 0.0
        %821 = vmatprep.subr.mxu0 0.0
        %822 = vmatpush1.msra.mxu0 0.0
        %823 = vmatprep.mubr.f32.mxu0 0.0
        %824 = vmatmul.mubr.f32.gmra.mrb[0].mxu0 %v712
        %v825 = vpop.f32.mrb[0].mxu0
        %v826 = vadd.f32 %v224, %v825
        %v827 = vpop.f32.mrb[0].mxu0
        %828 = vmatprep.mubr.f32.mxu0 0.0
        %829 = vmatmul.mubr.f32.gmra.mrb[0].mxu0 %v715
        %v830 = vpop.f32.mrb[0].mxu0
        %v831 = vadd.f32 %v224, %v830
        %v832 = vpop.f32.mrb[0].mxu0
        %833 = vmatprep.mubr.f32.mxu0 0.0
        %834 = vmatmul.mubr.f32.gmra.mrb[0].mxu0 %v718
        %v835 = vpop.f32.mrb[0].mxu0
        %v836 = vadd.f32 %v224, %v835
        %v837 = vpop.f32.mrb[0].mxu0
        %838 = vmatprep.mubr.f32.mxu0 0.0
        %839 = vmatmul.mubr.f32.gmra.mrb[0].mxu0 %v721
        %v840 = vpop.f32.mrb[0].mxu0
        %v841 = vadd.f32 %v224, %v840
        %v842 = vpop.f32.mrb[0].mxu0
        %843 = vmatprep.mubr.f32.mxu0 0.0
        %844 = vmatmul.mubr.f32.gmra.mrb[0].mxu0 %v724
        %v845 = vpop.f32.mrb[0].mxu0
        %v846 = vadd.f32 %v224, %v845
        %v847 = vpop.f32.mrb[0].mxu0
        %848 = vmatprep.mubr.f32.mxu0 0.0
        %849 = vmatmul.mubr.f32.gmra.mrb[0].mxu0 %v727
        %v850 = vpop.f32.mrb[0].mxu0
        %v851 = vadd.f32 %v224, %v850
        %v852 = vpop.f32.mrb[0].mxu0
        %853 = vmatprep.mubr.f32.mxu0 0.0
        %854 = vmatmul.mubr.f32.gmra.mrb[0].mxu0 %v730
        %v855 = vpop.f32.mrb[0].mxu0
        %v856 = vadd.f32 %v224, %v855
        %v857 = vpop.f32.mrb[0].mxu0
        %858 = vmatprep.mubr.f32.mxu0 0.0
        %859 = vmatmul.mubr.f32.gmra.mrb[0].mxu0 %v733
        %v860 = vpop.f32.mrb[0].mxu0
        %v861 = vadd.f32 %v224, %v860
        %v862 = vpop.f32.mrb[0].mxu0
        %863 = vmatprep.mubr.f32.mxu0 0.0
        %864 = vmatmul.mubr.f32.gmra.mrb[0].mxu0 %v736
        %v865 = vpop.f32.mrb[0].mxu0
        %v866 = vadd.f32 %v224, %v865
        %v867 = vpop.f32.mrb[0].mxu0
        %868 = vmatprep.mubr.f32.mxu0 0.0
        %869 = vmatmul.mubr.f32.gmra.mrb[0].mxu0 %v739
        %v870 = vpop.f32.mrb[0].mxu0
        %v871 = vadd.f32 %v224, %v870
        %v872 = vpop.f32.mrb[0].mxu0
        %873 = vmatprep.mubr.f32.mxu0 0.0
        %874 = vmatmul.mubr.f32.gmra.mrb[0].mxu0 %v742
        %v875 = vpop.f32.mrb[0].mxu0
        %v876 = vadd.f32 %v224, %v875
        %v877 = vpop.f32.mrb[0].mxu0
        %878 = vmatprep.mubr.f32.mxu0 0.0
        %879 = vmatmul.mubr.f32.gmra.mrb[0].mxu0 %v745
        %v880 = vpop.f32.mrb[0].mxu0
        %v881 = vadd.f32 %v224, %v880
        %v882 = vpop.f32.mrb[0].mxu0
        %883 = vmatprep.mubr.f32.mxu0 0.0
        %884 = vmatmul.mubr.f32.gmra.mrb[0].mxu0 %v748
        %v885 = vpop.f32.mrb[0].mxu0
        %v886 = vadd.f32 %v224, %v885
        %v887 = vpop.f32.mrb[0].mxu0
        %888 = vmatprep.mubr.f32.mxu0 0.0
        %889 = vmatmul.mubr.f32.gmra.mrb[0].mxu0 %v751
        %v890 = vpop.f32.mrb[0].mxu0
        %v891 = vadd.f32 %v224, %v890
        %v892 = vpop.f32.mrb[0].mxu0
        %893 = vmatprep.mubr.f32.mxu0 0.0
        %894 = vmatmul.mubr.f32.gmra.mrb[0].mxu0 %v754
        %v895 = vpop.f32.mrb[0].mxu0
        %v896 = vadd.f32 %v224, %v895
        %v897 = vpop.f32.mrb[0].mxu0
        %898 = vmatprep.mubr.f32.mxu0 0.0
        %899 = vmatmul.mubr.f32.gmra.mrb[0].mxu0 %v757
        %v900 = vpop.f32.mrb[0].mxu0
        %v901 = vadd.f32 %v224, %v900
        %v902 = vpop.f32.mrb[0].mxu0
        %903 = vdwg.mxu0
        %v904 = vmax.f32 %v826, 0.0
        %v905 = vmax.f32 %v831, 0.0
        %v906 = vmax.f32 %v836, 0.0
        %v907 = vmax.f32 %v841, 0.0
        %v908 = vmax.f32 %v846, 0.0
        %v909 = vmax.f32 %v851, 0.0
        %v910 = vmax.f32 %v856, 0.0
        %v911 = vmax.f32 %v861, 0.0
        %v912 = vmax.f32 %v866, 0.0
        %v913 = vmax.f32 %v871, 0.0
        %v914 = vmax.f32 %v876, 0.0
        %v915 = vmax.f32 %v881, 0.0
        %v916 = vmax.f32 %v886, 0.0
        %v917 = vmax.f32 %v891, 0.0
        %v918 = vmax.f32 %v896, 0.0
        %v919 = vmax.f32 %v901, 0.0
        %v920 = vld [vmem:[%s2] sm:$0xff]
        %v921 = vld [vmem:[%s2 + $0x8] sm:$0xff]
        %v922 = vld [vmem:[%s2 + $0x10] sm:$0xff]
        %v923 = vld [vmem:[%s2 + $0x18] sm:$0xff]
        %v924 = vld [vmem:[%s2 + $0x20] sm:$0xff]
        %v925 = vld [vmem:[%s2 + $0x28] sm:$0xff]
        %v926 = vld [vmem:[%s2 + $0x30] sm:$0xff]
        %v927 = vld [vmem:[%s2 + $0x38] sm:$0xff]
        %v928 = vld [vmem:[%s2 + $0x40] sm:$0xff]
        %v929 = vld [vmem:[%s2 + $0x48] sm:$0xff]
        %v930 = vld [vmem:[%s2 + $0x50] sm:$0xff]
        %v931 = vld [vmem:[%s2 + $0x58] sm:$0xff]
        %v932 = vld [vmem:[%s2 + $0x60] sm:$0xff]
        %v933 = vld [vmem:[%s2 + $0x68] sm:$0xff]
        %v934 = vld [vmem:[%s2 + $0x70] sm:$0xff]
        %v935 = vld [vmem:[%s2 + $0x78] sm:$0xff]
        %936 = vmatprep.subr.mxu0 0.0
        %937 = vmatpush1.msra.mxu0 %v920
        %938 = vmatprep.subr.mxu0 0.0
        %939 = vmatpush1.msra.mxu0 %v921
        %940 = vmatprep.subr.mxu0 0.0
        %941 = vmatpush1.msra.mxu0 %v922
        %942 = vmatprep.subr.mxu0 0.0
        %943 = vmatpush1.msra.mxu0 %v923
        %944 = vmatprep.subr.mxu0 0.0
        %945 = vmatpush1.msra.mxu0 %v924
        %946 = vmatprep.subr.mxu0 0.0
        %947 = vmatpush1.msra.mxu0 %v925
        %948 = vmatprep.subr.mxu0 0.0
        %949 = vmatpush1.msra.mxu0 %v926
        %950 = vmatprep.subr.mxu0 0.0
        %951 = vmatpush1.msra.mxu0 %v927
        %952 = vmatprep.subr.mxu0 0.0
        %953 = vmatpush1.msra.mxu0 %v928
        %954 = vmatprep.subr.mxu0 0.0
        %955 = vmatpush1.msra.mxu0 %v929
        %956 = vmatprep.subr.mxu0 0.0
        %957 = vmatpush1.msra.mxu0 %v930
        %958 = vmatprep.subr.mxu0 0.0
        %959 = vmatpush1.msra.mxu0 %v931
        %960 = vmatprep.subr.mxu0 0.0
        %961 = vmatpush1.msra.mxu0 %v932
        %962 = vmatprep.subr.mxu0 0.0
        %963 = vmatpush1.msra.mxu0 %v933
        %964 = vmatprep.subr.mxu0 0.0
        %965 = vmatpush1.msra.mxu0 %v934
        %966 = vmatprep.subr.mxu0 0.0
        %967 = vmatpush1.msra.mxu0 %v935
        %968 = vmatprep.subr.mxu0 0.0
        %969 = vmatpush1.msra.mxu0 0.0
        %970 = vmatprep.subr.mxu0 0.0
        %971 = vmatpush1.msra.mxu0 0.0
        %972 = vmatprep.subr.mxu0 0.0
        %973 = vmatpush1.msra.mxu0 0.0
        %974 = vmatprep.subr.mxu0 0.0
        %975 = vmatpush1.msra.mxu0 0.0
        %976 = vmatprep.subr.mxu0 0.0
        %977 = vmatpush1.msra.mxu0 0.0
        %978 = vmatprep.subr.mxu0 0.0
        %979 = vmatpush1.msra.mxu0 0.0
        %980 = vmatprep.subr.mxu0 0.0
        %981 = vmatpush1.msra.mxu0 0.0
        %982 = vmatprep.subr.mxu0 0.0
        %983 = vmatpush1.msra.mxu0 0.0
        %984 = vmatprep.subr.mxu0 0.0
        %985 = vmatpush1.msra.mxu0 0.0
        %986 = vmatprep.subr.mxu0 0.0
        %987 = vmatpush1.msra.mxu0 0.0
        %988 = vmatprep.subr.mxu0 0.0
        %989 = vmatpush1.msra.mxu0 0.0
        %990 = vmatprep.subr.mxu0 0.0
        %991 = vmatpush1.msra.mxu0 0.0
        %992 = vmatprep.subr.mxu0 0.0
        %993 = vmatpush1.msra.mxu0 0.0
        %994 = vmatprep.subr.mxu0 0.0
        %995 = vmatpush1.msra.mxu0 0.0
        %996 = vmatprep.subr.mxu0 0.0
        %997 = vmatpush1.msra.mxu0 0.0
        %998 = vmatprep.subr.mxu0 0.0
        %999 = vmatpush1.msra.mxu0 0.0
        %1000 = vmatprep.mubr.f32.mxu0 0.0
        %1001 = vmatmul.mubr.f32.gmra.mrb[0].mxu0 %v904
        %v1002 = vpop.f32.mrb[0].mxu0
        %v1003 = vadd.f32 %v454, %v1002
        %v1004 = vpop.f32.mrb[0].mxu0
        %1005 = vmatprep.mubr.f32.mxu0 0.0
        %1006 = vmatmul.mubr.f32.gmra.mrb[0].mxu0 %v905
        %v1007 = vpop.f32.mrb[0].mxu0
        %v1008 = vadd.f32 %v454, %v1007
        %v1009 = vpop.f32.mrb[0].mxu0
        %1010 = vmatprep.mubr.f32.mxu0 0.0
        %1011 = vmatmul.mubr.f32.gmra.mrb[0].mxu0 %v906
        %v1012 = vpop.f32.mrb[0].mxu0
        %v1013 = vadd.f32 %v454, %v1012
        %v1014 = vpop.f32.mrb[0].mxu0
        %1015 = vmatprep.mubr.f32.mxu0 0.0
        %1016 = vmatmul.mubr.f32.gmra.mrb[0].mxu0 %v907
        %v1017 = vpop.f32.mrb[0].mxu0
        %v1018 = vadd.f32 %v454, %v1017
        %v1019 = vpop.f32.mrb[0].mxu0
        %1020 = vmatprep.mubr.f32.mxu0 0.0
        %1021 = vmatmul.mubr.f32.gmra.mrb[0].mxu0 %v908
        %v1022 = vpop.f32.mrb[0].mxu0
        %v1023 = vadd.f32 %v454, %v1022
        %v1024 = vpop.f32.mrb[0].mxu0
        %1025 = vmatprep.mubr.f32.mxu0 0.0
        %1026 = vmatmul.mubr.f32.gmra.mrb[0].mxu0 %v909
        %v1027 = vpop.f32.mrb[0].mxu0
        %v1028 = vadd.f32 %v454, %v1027
        %v1029 = vpop.f32.mrb[0].mxu0
        %1030 = vmatprep.mubr.f32.mxu0 0.0
        %1031 = vmatmul.mubr.f32.gmra.mrb[0].mxu0 %v910
        %v1032 = vpop.f32.mrb[0].mxu0
        %v1033 = vadd.f32 %v454, %v1032
        %v1034 = vpop.f32.mrb[0].mxu0
        %1035 = vmatprep.mubr.f32.mxu0 0.0
        %1036 = vmatmul.mubr.f32.gmra.mrb[0].mxu0 %v911
        %v1037 = vpop.f32.mrb[0].mxu0
        %v1038 = vadd.f32 %v454, %v1037
        %v1039 = vpop.f32.mrb[0].mxu0
        %1040 = vmatprep.mubr.f32.mxu0 0.0
        %1041 = vmatmul.mubr.f32.gmra.mrb[0].mxu0 %v912
        %v1042 = vpop.f32.mrb[0].mxu0
        %v1043 = vadd.f32 %v454, %v1042
        %v1044 = vpop.f32.mrb[0].mxu0
        %1045 = vmatprep.mubr.f32.mxu0 0.0
        %1046 = vmatmul.mubr.f32.gmra.mrb[0].mxu0 %v913
        %v1047 = vpop.f32.mrb[0].mxu0
        %v1048 = vadd.f32 %v454, %v1047
        %v1049 = vpop.f32.mrb[0].mxu0
        %1050 = vmatprep.mubr.f32.mxu0 0.0
        %1051 = vmatmul.mubr.f32.gmra.mrb[0].mxu0 %v914
        %v1052 = vpop.f32.mrb[0].mxu0
        %v1053 = vadd.f32 %v454, %v1052
        %v1054 = vpop.f32.mrb[0].mxu0
        %1055 = vmatprep.mubr.f32.mxu0 0.0
        %1056 = vmatmul.mubr.f32.gmra.mrb[0].mxu0 %v915
        %v1057 = vpop.f32.mrb[0].mxu0
        %v1058 = vadd.f32 %v454, %v1057
        %v1059 = vpop.f32.mrb[0].mxu0
        %1060 = vmatprep.mubr.f32.mxu0 0.0
        %1061 = vmatmul.mubr.f32.gmra.mrb[0].mxu0 %v916
        %v1062 = vpop.f32.mrb[0].mxu0
        %v1063 = vadd.f32 %v454, %v1062
        %v1064 = vpop.f32.mrb[0].mxu0
        %1065 = vmatprep.mubr.f32.mxu0 0.0
        %1066 = vmatmul.mubr.f32.gmra.mrb[0].mxu0 %v917
        %v1067 = vpop.f32.mrb[0].mxu0
        %v1068 = vadd.f32 %v454, %v1067
        %v1069 = vpop.f32.mrb[0].mxu0
        %1070 = vmatprep.mubr.f32.mxu0 0.0
        %1071 = vmatmul.mubr.f32.gmra.mrb[0].mxu0 %v918
        %v1072 = vpop.f32.mrb[0].mxu0
        %v1073 = vadd.f32 %v454, %v1072
        %v1074 = vpop.f32.mrb[0].mxu0
        %1075 = vmatprep.mubr.f32.mxu0 0.0
        %1076 = vmatmul.mubr.f32.gmra.mrb[0].mxu0 %v919
        %v1077 = vpop.f32.mrb[0].mxu0
        %v1078 = vadd.f32 %v454, %v1077
        %v1079 = vpop.f32.mrb[0].mxu0
        %1080 = vdwg.mxu0
        %v1081 = vmax.f32 %v1003, 0.0
        %v1082 = vmax.f32 %v1008, 0.0
        %v1083 = vmax.f32 %v1013, 0.0
        %v1084 = vmax.f32 %v1018, 0.0
        %v1085 = vmax.f32 %v1023, 0.0
        %v1086 = vmax.f32 %v1028, 0.0
        %v1087 = vmax.f32 %v1033, 0.0
        %v1088 = vmax.f32 %v1038, 0.0
        %v1089 = vmax.f32 %v1043, 0.0
        %v1090 = vmax.f32 %v1048, 0.0
        %v1091 = vmax.f32 %v1053, 0.0
        %v1092 = vmax.f32 %v1058, 0.0
        %v1093 = vmax.f32 %v1063, 0.0
        %v1094 = vmax.f32 %v1068, 0.0
        %v1095 = vmax.f32 %v1073, 0.0
        %v1096 = vmax.f32 %v1078, 0.0
        %1097 = vmatprep.subr.mxu0 0.0
        %1098 = vmatpush1.xpose.msra.mxu0 %v1081
        %1099 = vmatprep.subr.mxu0 0.0
        %1100 = vmatpush1.xpose.msra.mxu0 %v1082
        %1101 = vmatprep.subr.mxu0 0.0
        %1102 = vmatpush1.xpose.msra.mxu0 %v1083
        %1103 = vmatprep.subr.mxu0 0.0
        %1104 = vmatpush1.xpose.msra.mxu0 %v1084
        %1105 = vmatprep.subr.mxu0 0.0
        %1106 = vmatpush1.xpose.msra.mxu0 %v1085
        %1107 = vmatprep.subr.mxu0 0.0
        %1108 = vmatpush1.xpose.msra.mxu0 %v1086
        %1109 = vmatprep.subr.mxu0 0.0
        %1110 = vmatpush1.xpose.msra.mxu0 %v1087
        %1111 = vmatprep.subr.mxu0 0.0
        %1112 = vmatpush1.xpose.msra.mxu0 %v1088
        %1113 = vmatprep.subr.mxu0 0.0
        %1114 = vmatpush1.xpose.msra.mxu0 %v1089
        %1115 = vmatprep.subr.mxu0 0.0
        %1116 = vmatpush1.xpose.msra.mxu0 %v1090
        %1117 = vmatprep.subr.mxu0 0.0
        %1118 = vmatpush1.xpose.msra.mxu0 %v1091
        %1119 = vmatprep.subr.mxu0 0.0
        %1120 = vmatpush1.xpose.msra.mxu0 %v1092
        %1121 = vmatprep.subr.mxu0 0.0
        %1122 = vmatpush1.xpose.msra.mxu0 %v1093
        %1123 = vmatprep.subr.mxu0 0.0
        %1124 = vmatpush1.xpose.msra.mxu0 %v1094
        %1125 = vmatprep.subr.mxu0 0.0
        %1126 = vmatpush1.xpose.msra.mxu0 %v1095
        %1127 = vmatprep.subr.mxu0 0.0
        %1128 = vmatpush1.xpose.msra.mxu0 %v1096
        %1129 = vmatprep.subr.mxu0 0.0
        %1130 = vmatpush1.xpose.msra.mxu0 0.0
        %1131 = vmatprep.subr.mxu0 0.0
        %1132 = vmatpush1.xpose.msra.mxu0 0.0
        %1133 = vmatprep.subr.mxu0 0.0
        %1134 = vmatpush1.xpose.msra.mxu0 0.0
        %1135 = vmatprep.subr.mxu0 0.0
        %1136 = vmatpush1.xpose.msra.mxu0 0.0
        %1137 = vmatprep.subr.mxu0 0.0
        %1138 = vmatpush1.xpose.msra.mxu0 0.0
        %1139 = vmatprep.subr.mxu0 0.0
        %1140 = vmatpush1.xpose.msra.mxu0 0.0
        %1141 = vmatprep.subr.mxu0 0.0
        %1142 = vmatpush1.xpose.msra.mxu0 0.0
        %1143 = vmatprep.subr.mxu0 0.0
        %1144 = vmatpush1.xpose.msra.mxu0 0.0
        %1145 = vmatprep.subr.mxu0 0.0
        %1146 = vmatpush1.xpose.msra.mxu0 0.0
        %1147 = vmatprep.subr.mxu0 0.0
        %1148 = vmatpush1.xpose.msra.mxu0 0.0
        %1149 = vmatprep.subr.mxu0 0.0
        %1150 = vmatpush1.xpose.msra.mxu0 0.0
        %1151 = vmatprep.subr.mxu0 0.0
        %1152 = vmatpush1.xpose.msra.mxu0 0.0
        %1153 = vmatprep.subr.mxu0 0.0
        %1154 = vmatpush1.xpose.msra.mxu0 0.0
        %1155 = vmatprep.subr.mxu0 0.0
        %1156 = vmatpush1.xpose.msra.mxu0 0.0
        %1157 = vmatprep.subr.mxu0 0.0
        %1158 = vmatpush1.xpose.msra.mxu0 0.0
        %1159 = vmatprep.subr.mxu0 0.0
        %1160 = vmatpush1.xpose.msra.mxu0 0.0
        %1161 = vmatprep.mubr.f32.mxu0 0.0
        %1162 = vmatmul.mubr.f32.gmra.mrb[0].mxu0 %v200
        %v1163 = vpop.f32.mrb[0].mxu0
        %v1164 = vadd.f32 %v619, %v1163
        %v1165 = vpop.f32.mrb[0].mxu0
        %1166 = vdwg.mxu0
        %1167 = vst [vmem:[%s191 + $0x1] sm:$0x1] %v1164
        %v1168 = vld [vmem:[%s196 + $0x100] sm:$0xff]
        %v1169 = vld [vmem:[%s196 + $0x108] sm:$0xff]
        %v1170 = vld [vmem:[%s196 + $0x110] sm:$0xff]
        %v1171 = vld [vmem:[%s196 + $0x118] sm:$0xff]
        %v1172 = vld [vmem:[%s196 + $0x120] sm:$0xff]
        %v1173 = vld [vmem:[%s196 + $0x128] sm:$0xff]
        %v1174 = vld [vmem:[%s196 + $0x130] sm:$0xff]
        %v1175 = vld [vmem:[%s196 + $0x138] sm:$0xff]
        %v1176 = vld [vmem:[%s196 + $0x140] sm:$0xff]
        %v1177 = vld [vmem:[%s196 + $0x148] sm:$0xff]
        %v1178 = vld [vmem:[%s196 + $0x150] sm:$0xff]
        %v1179 = vld [vmem:[%s196 + $0x158] sm:$0xff]
        %v1180 = vld [vmem:[%s196 + $0x160] sm:$0xff]
        %v1181 = vld [vmem:[%s196 + $0x168] sm:$0xff]
        %v1182 = vld [vmem:[%s196 + $0x170] sm:$0xff]
        %v1183 = vld [vmem:[%s196 + $0x178] sm:$0xff]
        %v1184 = vld [vmem:[%s1] sm:$0xff]
        %v1185 = vld [vmem:[%s1 + $0x8] sm:$0xff]
        %v1186 = vld [vmem:[%s1 + $0x10] sm:$0xff]
        %v1188 = vsel %vm225, %v1168, 0
        %v1191 = vsel %vm225, %v1169, 0
        %v1194 = vsel %vm225, %v1170, 0
        %v1197 = vsel %vm225, %v1171, 0
        %v1200 = vsel %vm225, %v1172, 0
        %v1203 = vsel %vm225, %v1173, 0
        %v1206 = vsel %vm225, %v1174, 0
        %v1209 = vsel %vm225, %v1175, 0
        %v1212 = vsel %vm225, %v1176, 0
        %v1215 = vsel %vm225, %v1177, 0
        %v1218 = vsel %vm225, %v1178, 0
        %v1221 = vsel %vm225, %v1179, 0
        %v1224 = vsel %vm225, %v1180, 0
        %v1227 = vsel %vm225, %v1181, 0
        %v1230 = vsel %vm225, %v1182, 0
        %v1233 = vsel %vm225, %v1183, 0
        %1235 = vmatprep.subr.mxu0 0.0
        %1236 = vmatpush1.msra.mxu0 %v1184
        %1237 = vmatprep.subr.mxu0 0.0
        %1238 = vmatpush1.msra.mxu0 %v1185
        %1239 = vmatprep.subr.mxu0 0.0
        %1240 = vmatpush1.msra.mxu0 %v1186
        %1241 = vmatprep.subr.mxu0 0.0
        %1242 = vmatpush1.msra.mxu0 0.0
        %1243 = vmatprep.subr.mxu0 0.0
        %1244 = vmatpush1.msra.mxu0 0.0
        %1245 = vmatprep.subr.mxu0 0.0
        %1246 = vmatpush1.msra.mxu0 0.0
        %1247 = vmatprep.subr.mxu0 0.0
        %1248 = vmatpush1.msra.mxu0 0.0
        %1249 = vmatprep.subr.mxu0 0.0
        %1250 = vmatpush1.msra.mxu0 0.0
        %1251 = vmatprep.subr.mxu0 0.0
        %1252 = vmatpush1.msra.mxu0 0.0
        %1253 = vmatprep.subr.mxu0 0.0
        %1254 = vmatpush1.msra.mxu0 0.0
        %1255 = vmatprep.subr.mxu0 0.0
        %1256 = vmatpush1.msra.mxu0 0.0
        %1257 = vmatprep.subr.mxu0 0.0
        %1258 = vmatpush1.msra.mxu0 0.0
        %1259 = vmatprep.subr.mxu0 0.0
        %1260 = vmatpush1.msra.mxu0 0.0
        %1261 = vmatprep.subr.mxu0 0.0
        %1262 = vmatpush1.msra.mxu0 0.0
        %1263 = vmatprep.subr.mxu0 0.0
        %1264 = vmatpush1.msra.mxu0 0.0
        %1265 = vmatprep.subr.mxu0 0.0
        %1266 = vmatpush1.msra.mxu0 0.0
        %1267 = vmatprep.subr.mxu0 0.0
        %1268 = vmatpush1.msra.mxu0 0.0
        %1269 = vmatprep.subr.mxu0 0.0
        %1270 = vmatpush1.msra.mxu0 0.0
        %1271 = vmatprep.subr.mxu0 0.0
        %1272 = vmatpush1.msra.mxu0 0.0
        %1273 = vmatprep.subr.mxu0 0.0
        %1274 = vmatpush1.msra.mxu0 0.0
        %1275 = vmatprep.subr.mxu0 0.0
        %1276 = vmatpush1.msra.mxu0 0.0
        %1277 = vmatprep.subr.mxu0 0.0
        %1278 = vmatpush1.msra.mxu0 0.0
        %1279 = vmatprep.subr.mxu0 0.0
        %1280 = vmatpush1.msra.mxu0 0.0
        %1281 = vmatprep.subr.mxu0 0.0
        %1282 = vmatpush1.msra.mxu0 0.0
        %1283 = vmatprep.subr.mxu0 0.0
        %1284 = vmatpush1.msra.mxu0 0.0
        %1285 = vmatprep.subr.mxu0 0.0
        %1286 = vmatpush1.msra.mxu0 0.0
        %1287 = vmatprep.subr.mxu0 0.0
        %1288 = vmatpush1.msra.mxu0 0.0
        %1289 = vmatprep.subr.mxu0 0.0
        %1290 = vmatpush1.msra.mxu0 0.0
        %1291 = vmatprep.subr.mxu0 0.0
        %1292 = vmatpush1.msra.mxu0 0.0
        %1293 = vmatprep.subr.mxu0 0.0
        %1294 = vmatpush1.msra.mxu0 0.0
        %1295 = vmatprep.subr.mxu0 0.0
        %1296 = vmatpush1.msra.mxu0 0.0
        %1297 = vmatprep.subr.mxu0 0.0
        %1298 = vmatpush1.msra.mxu0 0.0
        %1299 = vmatprep.mubr.f32.mxu0 0.0
        %1300 = vmatmul.mubr.f32.gmra.mrb[0].mxu0 %v1188
        %v1301 = vpop.f32.mrb[0].mxu0
        %v1302 = vadd.f32 %v224, %v1301
        %v1303 = vpop.f32.mrb[0].mxu0
        %1304 = vmatprep.mubr.f32.mxu0 0.0
        %1305 = vmatmul.mubr.f32.gmra.mrb[0].mxu0 %v1191
        %v1306 = vpop.f32.mrb[0].mxu0
        %v1307 = vadd.f32 %v224, %v1306
        %v1308 = vpop.f32.mrb[0].mxu0
        %1309 = vmatprep.mubr.f32.mxu0 0.0
        %1310 = vmatmul.mubr.f32.gmra.mrb[0].mxu0 %v1194
        %v1311 = vpop.f32.mrb[0].mxu0
        %v1312 = vadd.f32 %v224, %v1311
        %v1313 = vpop.f32.mrb[0].mxu0
        %1314 = vmatprep.mubr.f32.mxu0 0.0
        %1315 = vmatmul.mubr.f32.gmra.mrb[0].mxu0 %v1197
        %v1316 = vpop.f32.mrb[0].mxu0
        %v1317 = vadd.f32 %v224, %v1316
        %v1318 = vpop.f32.mrb[0].mxu0
        %1319 = vmatprep.mubr.f32.mxu0 0.0
        %1320 = vmatmul.mubr.f32.gmra.mrb[0].mxu0 %v1200
        %v1321 = vpop.f32.mrb[0].mxu0
        %v1322 = vadd.f32 %v224, %v1321
        %v1323 = vpop.f32.mrb[0].mxu0
        %1324 = vmatprep.mubr.f32.mxu0 0.0
        %1325 = vmatmul.mubr.f32.gmra.mrb[0].mxu0 %v1203
        %v1326 = vpop.f32.mrb[0].mxu0
        %v1327 = vadd.f32 %v224, %v1326
        %v1328 = vpop.f32.mrb[0].mxu0
        %1329 = vmatprep.mubr.f32.mxu0 0.0
        %1330 = vmatmul.mubr.f32.gmra.mrb[0].mxu0 %v1206
        %v1331 = vpop.f32.mrb[0].mxu0
        %v1332 = vadd.f32 %v224, %v1331
        %v1333 = vpop.f32.mrb[0].mxu0
        %1334 = vmatprep.mubr.f32.mxu0 0.0
        %1335 = vmatmul.mubr.f32.gmra.mrb[0].mxu0 %v1209
        %v1336 = vpop.f32.mrb[0].mxu0
        %v1337 = vadd.f32 %v224, %v1336
        %v1338 = vpop.f32.mrb[0].mxu0
        %1339 = vmatprep.mubr.f32.mxu0 0.0
        %1340 = vmatmul.mubr.f32.gmra.mrb[0].mxu0 %v1212
        %v1341 = vpop.f32.mrb[0].mxu0
        %v1342 = vadd.f32 %v224, %v1341
        %v1343 = vpop.f32.mrb[0].mxu0
        %1344 = vmatprep.mubr.f32.mxu0 0.0
        %1345 = vmatmul.mubr.f32.gmra.mrb[0].mxu0 %v1215
        %v1346 = vpop.f32.mrb[0].mxu0
        %v1347 = vadd.f32 %v224, %v1346
        %v1348 = vpop.f32.mrb[0].mxu0
        %1349 = vmatprep.mubr.f32.mxu0 0.0
        %1350 = vmatmul.mubr.f32.gmra.mrb[0].mxu0 %v1218
        %v1351 = vpop.f32.mrb[0].mxu0
        %v1352 = vadd.f32 %v224, %v1351
        %v1353 = vpop.f32.mrb[0].mxu0
        %1354 = vmatprep.mubr.f32.mxu0 0.0
        %1355 = vmatmul.mubr.f32.gmra.mrb[0].mxu0 %v1221
        %v1356 = vpop.f32.mrb[0].mxu0
        %v1357 = vadd.f32 %v224, %v1356
        %v1358 = vpop.f32.mrb[0].mxu0
        %1359 = vmatprep.mubr.f32.mxu0 0.0
        %1360 = vmatmul.mubr.f32.gmra.mrb[0].mxu0 %v1224
        %v1361 = vpop.f32.mrb[0].mxu0
        %v1362 = vadd.f32 %v224, %v1361
        %v1363 = vpop.f32.mrb[0].mxu0
        %1364 = vmatprep.mubr.f32.mxu0 0.0
        %1365 = vmatmul.mubr.f32.gmra.mrb[0].mxu0 %v1227
        %v1366 = vpop.f32.mrb[0].mxu0
        %v1367 = vadd.f32 %v224, %v1366
        %v1368 = vpop.f32.mrb[0].mxu0
        %1369 = vmatprep.mubr.f32.mxu0 0.0
        %1370 = vmatmul.mubr.f32.gmra.mrb[0].mxu0 %v1230
        %v1371 = vpop.f32.mrb[0].mxu0
        %v1372 = vadd.f32 %v224, %v1371
        %v1373 = vpop.f32.mrb[0].mxu0
        %1374 = vmatprep.mubr.f32.mxu0 0.0
        %1375 = vmatmul.mubr.f32.gmra.mrb[0].mxu0 %v1233
        %v1376 = vpop.f32.mrb[0].mxu0
        %v1377 = vadd.f32 %v224, %v1376
        %v1378 = vpop.f32.mrb[0].mxu0
        %1379 = vdwg.mxu0
        %v1380 = vmax.f32 %v1302, 0.0
        %v1381 = vmax.f32 %v1307, 0.0
        %v1382 = vmax.f32 %v1312, 0.0
        %v1383 = vmax.f32 %v1317, 0.0
        %v1384 = vmax.f32 %v1322, 0.0
        %v1385 = vmax.f32 %v1327, 0.0
        %v1386 = vmax.f32 %v1332, 0.0
        %v1387 = vmax.f32 %v1337, 0.0
        %v1388 = vmax.f32 %v1342, 0.0
        %v1389 = vmax.f32 %v1347, 0.0
        %v1390 = vmax.f32 %v1352, 0.0
        %v1391 = vmax.f32 %v1357, 0.0
        %v1392 = vmax.f32 %v1362, 0.0
        %v1393 = vmax.f32 %v1367, 0.0
        %v1394 = vmax.f32 %v1372, 0.0
        %v1395 = vmax.f32 %v1377, 0.0
        %v1396 = vld [vmem:[%s2] sm:$0xff]
        %v1397 = vld [vmem:[%s2 + $0x8] sm:$0xff]
        %v1398 = vld [vmem:[%s2 + $0x10] sm:$0xff]
        %v1399 = vld [vmem:[%s2 + $0x18] sm:$0xff]
        %v1400 = vld [vmem:[%s2 + $0x20] sm:$0xff]
        %v1401 = vld [vmem:[%s2 + $0x28] sm:$0xff]
        %v1402 = vld [vmem:[%s2 + $0x30] sm:$0xff]
        %v1403 = vld [vmem:[%s2 + $0x38] sm:$0xff]
        %v1404 = vld [vmem:[%s2 + $0x40] sm:$0xff]
        %v1405 = vld [vmem:[%s2 + $0x48] sm:$0xff]
        %v1406 = vld [vmem:[%s2 + $0x50] sm:$0xff]
        %v1407 = vld [vmem:[%s2 + $0x58] sm:$0xff]
        %v1408 = vld [vmem:[%s2 + $0x60] sm:$0xff]
        %v1409 = vld [vmem:[%s2 + $0x68] sm:$0xff]
        %v1410 = vld [vmem:[%s2 + $0x70] sm:$0xff]
        %v1411 = vld [vmem:[%s2 + $0x78] sm:$0xff]
        %1412 = vmatprep.subr.mxu0 0.0
        %1413 = vmatpush1.msra.mxu0 %v1396
        %1414 = vmatprep.subr.mxu0 0.0
        %1415 = vmatpush1.msra.mxu0 %v1397
        %1416 = vmatprep.subr.mxu0 0.0
        %1417 = vmatpush1.msra.mxu0 %v1398
        %1418 = vmatprep.subr.mxu0 0.0
        %1419 = vmatpush1.msra.mxu0 %v1399
        %1420 = vmatprep.subr.mxu0 0.0
        %1421 = vmatpush1.msra.mxu0 %v1400
        %1422 = vmatprep.subr.mxu0 0.0
        %1423 = vmatpush1.msra.mxu0 %v1401
        %1424 = vmatprep.subr.mxu0 0.0
        %1425 = vmatpush1.msra.mxu0 %v1402
        %1426 = vmatprep.subr.mxu0 0.0
        %1427 = vmatpush1.msra.mxu0 %v1403
        %1428 = vmatprep.subr.mxu0 0.0
        %1429 = vmatpush1.msra.mxu0 %v1404
        %1430 = vmatprep.subr.mxu0 0.0
        %1431 = vmatpush1.msra.mxu0 %v1405
        %1432 = vmatprep.subr.mxu0 0.0
        %1433 = vmatpush1.msra.mxu0 %v1406
        %1434 = vmatprep.subr.mxu0 0.0
        %1435 = vmatpush1.msra.mxu0 %v1407
        %1436 = vmatprep.subr.mxu0 0.0
        %1437 = vmatpush1.msra.mxu0 %v1408
        %1438 = vmatprep.subr.mxu0 0.0
        %1439 = vmatpush1.msra.mxu0 %v1409
        %1440 = vmatprep.subr.mxu0 0.0
        %1441 = vmatpush1.msra.mxu0 %v1410
        %1442 = vmatprep.subr.mxu0 0.0
        %1443 = vmatpush1.msra.mxu0 %v1411
        %1444 = vmatprep.subr.mxu0 0.0
        %1445 = vmatpush1.msra.mxu0 0.0
        %1446 = vmatprep.subr.mxu0 0.0
        %1447 = vmatpush1.msra.mxu0 0.0
        %1448 = vmatprep.subr.mxu0 0.0
        %1449 = vmatpush1.msra.mxu0 0.0
        %1450 = vmatprep.subr.mxu0 0.0
        %1451 = vmatpush1.msra.mxu0 0.0
        %1452 = vmatprep.subr.mxu0 0.0
        %1453 = vmatpush1.msra.mxu0 0.0
        %1454 = vmatprep.subr.mxu0 0.0
        %1455 = vmatpush1.msra.mxu0 0.0
        %1456 = vmatprep.subr.mxu0 0.0
        %1457 = vmatpush1.msra.mxu0 0.0
        %1458 = vmatprep.subr.mxu0 0.0
        %1459 = vmatpush1.msra.mxu0 0.0
        %1460 = vmatprep.subr.mxu0 0.0
        %1461 = vmatpush1.msra.mxu0 0.0
        %1462 = vmatprep.subr.mxu0 0.0
        %1463 = vmatpush1.msra.mxu0 0.0
        %1464 = vmatprep.subr.mxu0 0.0
        %1465 = vmatpush1.msra.mxu0 0.0
        %1466 = vmatprep.subr.mxu0 0.0
        %1467 = vmatpush1.msra.mxu0 0.0
        %1468 = vmatprep.subr.mxu0 0.0
        %1469 = vmatpush1.msra.mxu0 0.0
        %1470 = vmatprep.subr.mxu0 0.0
        %1471 = vmatpush1.msra.mxu0 0.0
        %1472 = vmatprep.subr.mxu0 0.0
        %1473 = vmatpush1.msra.mxu0 0.0
        %1474 = vmatprep.subr.mxu0 0.0
        %1475 = vmatpush1.msra.mxu0 0.0
        %1476 = vmatprep.mubr.f32.mxu0 0.0
        %1477 = vmatmul.mubr.f32.gmra.mrb[0].mxu0 %v1380
        %v1478 = vpop.f32.mrb[0].mxu0
        %v1479 = vadd.f32 %v454, %v1478
        %v1480 = vpop.f32.mrb[0].mxu0
        %1481 = vmatprep.mubr.f32.mxu0 0.0
        %1482 = vmatmul.mubr.f32.gmra.mrb[0].mxu0 %v1381
        %v1483 = vpop.f32.mrb[0].mxu0
        %v1484 = vadd.f32 %v454, %v1483
        %v1485 = vpop.f32.mrb[0].mxu0
        %1486 = vmatprep.mubr.f32.mxu0 0.0
        %1487 = vmatmul.mubr.f32.gmra.mrb[0].mxu0 %v1382
        %v1488 = vpop.f32.mrb[0].mxu0
        %v1489 = vadd.f32 %v454, %v1488
        %v1490 = vpop.f32.mrb[0].mxu0
        %1491 = vmatprep.mubr.f32.mxu0 0.0
        %1492 = vmatmul.mubr.f32.gmra.mrb[0].mxu0 %v1383
        %v1493 = vpop.f32.mrb[0].mxu0
        %v1494 = vadd.f32 %v454, %v1493
        %v1495 = vpop.f32.mrb[0].mxu0
        %1496 = vmatprep.mubr.f32.mxu0 0.0
        %1497 = vmatmul.mubr.f32.gmra.mrb[0].mxu0 %v1384
        %v1498 = vpop.f32.mrb[0].mxu0
        %v1499 = vadd.f32 %v454, %v1498
        %v1500 = vpop.f32.mrb[0].mxu0
        %1501 = vmatprep.mubr.f32.mxu0 0.0
        %1502 = vmatmul.mubr.f32.gmra.mrb[0].mxu0 %v1385
        %v1503 = vpop.f32.mrb[0].mxu0
        %v1504 = vadd.f32 %v454, %v1503
        %v1505 = vpop.f32.mrb[0].mxu0
        %1506 = vmatprep.mubr.f32.mxu0 0.0
        %1507 = vmatmul.mubr.f32.gmra.mrb[0].mxu0 %v1386
        %v1508 = vpop.f32.mrb[0].mxu0
        %v1509 = vadd.f32 %v454, %v1508
        %v1510 = vpop.f32.mrb[0].mxu0
        %1511 = vmatprep.mubr.f32.mxu0 0.0
        %1512 = vmatmul.mubr.f32.gmra.mrb[0].mxu0 %v1387
        %v1513 = vpop.f32.mrb[0].mxu0
        %v1514 = vadd.f32 %v454, %v1513
        %v1515 = vpop.f32.mrb[0].mxu0
        %1516 = vmatprep.mubr.f32.mxu0 0.0
        %1517 = vmatmul.mubr.f32.gmra.mrb[0].mxu0 %v1388
        %v1518 = vpop.f32.mrb[0].mxu0
        %v1519 = vadd.f32 %v454, %v1518
        %v1520 = vpop.f32.mrb[0].mxu0
        %1521 = vmatprep.mubr.f32.mxu0 0.0
        %1522 = vmatmul.mubr.f32.gmra.mrb[0].mxu0 %v1389
        %v1523 = vpop.f32.mrb[0].mxu0
        %v1524 = vadd.f32 %v454, %v1523
        %v1525 = vpop.f32.mrb[0].mxu0
        %1526 = vmatprep.mubr.f32.mxu0 0.0
        %1527 = vmatmul.mubr.f32.gmra.mrb[0].mxu0 %v1390
        %v1528 = vpop.f32.mrb[0].mxu0
        %v1529 = vadd.f32 %v454, %v1528
        %v1530 = vpop.f32.mrb[0].mxu0
        %1531 = vmatprep.mubr.f32.mxu0 0.0
        %1532 = vmatmul.mubr.f32.gmra.mrb[0].mxu0 %v1391
        %v1533 = vpop.f32.mrb[0].mxu0
        %v1534 = vadd.f32 %v454, %v1533
        %v1535 = vpop.f32.mrb[0].mxu0
        %1536 = vmatprep.mubr.f32.mxu0 0.0
        %1537 = vmatmul.mubr.f32.gmra.mrb[0].mxu0 %v1392
        %v1538 = vpop.f32.mrb[0].mxu0
        %v1539 = vadd.f32 %v454, %v1538
        %v1540 = vpop.f32.mrb[0].mxu0
        %1541 = vmatprep.mubr.f32.mxu0 0.0
        %1542 = vmatmul.mubr.f32.gmra.mrb[0].mxu0 %v1393
        %v1543 = vpop.f32.mrb[0].mxu0
        %v1544 = vadd.f32 %v454, %v1543
        %v1545 = vpop.f32.mrb[0].mxu0
        %1546 = vmatprep.mubr.f32.mxu0 0.0
        %1547 = vmatmul.mubr.f32.gmra.mrb[0].mxu0 %v1394
        %v1548 = vpop.f32.mrb[0].mxu0
        %v1549 = vadd.f32 %v454, %v1548
        %v1550 = vpop.f32.mrb[0].mxu0
        %1551 = vmatprep.mubr.f32.mxu0 0.0
        %1552 = vmatmul.mubr.f32.gmra.mrb[0].mxu0 %v1395
        %v1553 = vpop.f32.mrb[0].mxu0
        %v1554 = vadd.f32 %v454, %v1553
        %v1555 = vpop.f32.mrb[0].mxu0
        %1556 = vdwg.mxu0
        %v1557 = vmax.f32 %v1479, 0.0
        %v1558 = vmax.f32 %v1484, 0.0
        %v1559 = vmax.f32 %v1489, 0.0
        %v1560 = vmax.f32 %v1494, 0.0
        %v1561 = vmax.f32 %v1499, 0.0
        %v1562 = vmax.f32 %v1504, 0.0
        %v1563 = vmax.f32 %v1509, 0.0
        %v1564 = vmax.f32 %v1514, 0.0
        %v1565 = vmax.f32 %v1519, 0.0
        %v1566 = vmax.f32 %v1524, 0.0
        %v1567 = vmax.f32 %v1529, 0.0
        %v1568 = vmax.f32 %v1534, 0.0
        %v1569 = vmax.f32 %v1539, 0.0
        %v1570 = vmax.f32 %v1544, 0.0
        %v1571 = vmax.f32 %v1549, 0.0
        %v1572 = vmax.f32 %v1554, 0.0
        %1573 = vmatprep.subr.mxu0 0.0
        %1574 = vmatpush1.xpose.msra.mxu0 %v1557
        %1575 = vmatprep.subr.mxu0 0.0
        %1576 = vmatpush1.xpose.msra.mxu0 %v1558
        %1577 = vmatprep.subr.mxu0 0.0
        %1578 = vmatpush1.xpose.msra.mxu0 %v1559
        %1579 = vmatprep.subr.mxu0 0.0
        %1580 = vmatpush1.xpose.msra.mxu0 %v1560
        %1581 = vmatprep.subr.mxu0 0.0
        %1582 = vmatpush1.xpose.msra.mxu0 %v1561
        %1583 = vmatprep.subr.mxu0 0.0
        %1584 = vmatpush1.xpose.msra.mxu0 %v1562
        %1585 = vmatprep.subr.mxu0 0.0
        %1586 = vmatpush1.xpose.msra.mxu0 %v1563
        %1587 = vmatprep.subr.mxu0 0.0
        %1588 = vmatpush1.xpose.msra.mxu0 %v1564
        %1589 = vmatprep.subr.mxu0 0.0
        %1590 = vmatpush1.xpose.msra.mxu0 %v1565
        %1591 = vmatprep.subr.mxu0 0.0
        %1592 = vmatpush1.xpose.msra.mxu0 %v1566
        %1593 = vmatprep.subr.mxu0 0.0
        %1594 = vmatpush1.xpose.msra.mxu0 %v1567
        %1595 = vmatprep.subr.mxu0 0.0
        %1596 = vmatpush1.xpose.msra.mxu0 %v1568
        %1597 = vmatprep.subr.mxu0 0.0
        %1598 = vmatpush1.xpose.msra.mxu0 %v1569
        %1599 = vmatprep.subr.mxu0 0.0
        %1600 = vmatpush1.xpose.msra.mxu0 %v1570
        %1601 = vmatprep.subr.mxu0 0.0
        %1602 = vmatpush1.xpose.msra.mxu0 %v1571
        %1603 = vmatprep.subr.mxu0 0.0
        %1604 = vmatpush1.xpose.msra.mxu0 %v1572
        %1605 = vmatprep.subr.mxu0 0.0
        %1606 = vmatpush1.xpose.msra.mxu0 0.0
        %1607 = vmatprep.subr.mxu0 0.0
        %1608 = vmatpush1.xpose.msra.mxu0 0.0
        %1609 = vmatprep.subr.mxu0 0.0
        %1610 = vmatpush1.xpose.msra.mxu0 0.0
        %1611 = vmatprep.subr.mxu0 0.0
        %1612 = vmatpush1.xpose.msra.mxu0 0.0
        %1613 = vmatprep.subr.mxu0 0.0
        %1614 = vmatpush1.xpose.msra.mxu0 0.0
        %1615 = vmatprep.subr.mxu0 0.0
        %1616 = vmatpush1.xpose.msra.mxu0 0.0
        %1617 = vmatprep.subr.mxu0 0.0
        %1618 = vmatpush1.xpose.msra.mxu0 0.0
        %1619 = vmatprep.subr.mxu0 0.0
        %1620 = vmatpush1.xpose.msra.mxu0 0.0
        %1621 = vmatprep.subr.mxu0 0.0
        %1622 = vmatpush1.xpose.msra.mxu0 0.0
        %1623 = vmatprep.subr.mxu0 0.0
        %1624 = vmatpush1.xpose.msra.mxu0 0.0
        %1625 = vmatprep.subr.mxu0 0.0
        %1626 = vmatpush1.xpose.msra.mxu0 0.0
        %1627 = vmatprep.subr.mxu0 0.0
        %1628 = vmatpush1.xpose.msra.mxu0 0.0
        %1629 = vmatprep.subr.mxu0 0.0
        %1630 = vmatpush1.xpose.msra.mxu0 0.0
        %1631 = vmatprep.subr.mxu0 0.0
        %1632 = vmatpush1.xpose.msra.mxu0 0.0
        %1633 = vmatprep.subr.mxu0 0.0
        %1634 = vmatpush1.xpose.msra.mxu0 0.0
        %1635 = vmatprep.subr.mxu0 0.0
        %1636 = vmatpush1.xpose.msra.mxu0 0.0
        %1637 = vmatprep.mubr.f32.mxu0 0.0
        %1638 = vmatmul.mubr.f32.gmra.mrb[0].mxu0 %v200
        %v1639 = vpop.f32.mrb[0].mxu0
        %v1640 = vadd.f32 %v619, %v1639
        %v1641 = vpop.f32.mrb[0].mxu0
        %1642 = vdwg.mxu0
        %1643 = vst [vmem:[%s191 + $0x2] sm:$0x1] %v1640
        %v1644 = vld [vmem:[%s196 + $0x180] sm:$0xff]
        %v1645 = vld [vmem:[%s196 + $0x188] sm:$0xff]
        %v1646 = vld [vmem:[%s196 + $0x190] sm:$0xff]
        %v1647 = vld [vmem:[%s196 + $0x198] sm:$0xff]
        %v1648 = vld [vmem:[%s196 + $0x1a0] sm:$0xff]
        %v1649 = vld [vmem:[%s196 + $0x1a8] sm:$0xff]
        %v1650 = vld [vmem:[%s196 + $0x1b0] sm:$0xff]
        %v1651 = vld [vmem:[%s196 + $0x1b8] sm:$0xff]
        %v1652 = vld [vmem:[%s196 + $0x1c0] sm:$0xff]
        %v1653 = vld [vmem:[%s196 + $0x1c8] sm:$0xff]
        %v1654 = vld [vmem:[%s196 + $0x1d0] sm:$0xff]
        %v1655 = vld [vmem:[%s196 + $0x1d8] sm:$0xff]
        %v1656 = vld [vmem:[%s196 + $0x1e0] sm:$0xff]
        %v1657 = vld [vmem:[%s196 + $0x1e8] sm:$0xff]
        %v1658 = vld [vmem:[%s196 + $0x1f0] sm:$0xff]
        %v1659 = vld [vmem:[%s196 + $0x1f8] sm:$0xff]
        %v1660 = vld [vmem:[%s1] sm:$0xff]
        %v1661 = vld [vmem:[%s1 + $0x8] sm:$0xff]
        %v1662 = vld [vmem:[%s1 + $0x10] sm:$0xff]
        %v1664 = vsel %vm225, %v1644, 0
        %v1667 = vsel %vm225, %v1645, 0
        %v1670 = vsel %vm225, %v1646, 0
        %v1673 = vsel %vm225, %v1647, 0
        %v1676 = vsel %vm225, %v1648, 0
        %v1679 = vsel %vm225, %v1649, 0
        %v1682 = vsel %vm225, %v1650, 0
        %v1685 = vsel %vm225, %v1651, 0
        %v1688 = vsel %vm225, %v1652, 0
        %v1691 = vsel %vm225, %v1653, 0
        %v1694 = vsel %vm225, %v1654, 0
        %v1697 = vsel %vm225, %v1655, 0
        %v1700 = vsel %vm225, %v1656, 0
        %v1703 = vsel %vm225, %v1657, 0
        %v1706 = vsel %vm225, %v1658, 0
        %v1709 = vsel %vm225, %v1659, 0
        %1711 = vmatprep.subr.mxu0 0.0
        %1712 = vmatpush1.msra.mxu0 %v1660
        %1713 = vmatprep.subr.mxu0 0.0
        %1714 = vmatpush1.msra.mxu0 %v1661
        %1715 = vmatprep.subr.mxu0 0.0
        %1716 = vmatpush1.msra.mxu0 %v1662
        %1717 = vmatprep.subr.mxu0 0.0
        %1718 = vmatpush1.msra.mxu0 0.0
        %1719 = vmatprep.subr.mxu0 0.0
        %1720 = vmatpush1.msra.mxu0 0.0
        %1721 = vmatprep.subr.mxu0 0.0
        %1722 = vmatpush1.msra.mxu0 0.0
        %1723 = vmatprep.subr.mxu0 0.0
        %1724 = vmatpush1.msra.mxu0 0.0
        %1725 = vmatprep.subr.mxu0 0.0
        %1726 = vmatpush1.msra.mxu0 0.0
        %1727 = vmatprep.subr.mxu0 0.0
        %1728 = vmatpush1.msra.mxu0 0.0
        %1729 = vmatprep.subr.mxu0 0.0
        %1730 = vmatpush1.msra.mxu0 0.0
        %1731 = vmatprep.subr.mxu0 0.0
        %1732 = vmatpush1.msra.mxu0 0.0
        %1733 = vmatprep.subr.mxu0 0.0
        %1734 = vmatpush1.msra.mxu0 0.0
        %1735 = vmatprep.subr.mxu0 0.0
        %1736 = vmatpush1.msra.mxu0 0.0
        %1737 = vmatprep.subr.mxu0 0.0
        %1738 = vmatpush1.msra.mxu0 0.0
        %1739 = vmatprep.subr.mxu0 0.0
        %1740 = vmatpush1.msra.mxu0 0.0
        %1741 = vmatprep.subr.mxu0 0.0
        %1742 = vmatpush1.msra.mxu0 0.0
        %1743 = vmatprep.subr.mxu0 0.0
        %1744 = vmatpush1.msra.mxu0 0.0
        %1745 = vmatprep.subr.mxu0 0.0
        %1746 = vmatpush1.msra.mxu0 0.0
        %1747 = vmatprep.subr.mxu0 0.0
        %1748 = vmatpush1.msra.mxu0 0.0
        %1749 = vmatprep.subr.mxu0 0.0
        %1750 = vmatpush1.msra.mxu0 0.0
        %1751 = vmatprep.subr.mxu0 0.0
        %1752 = vmatpush1.msra.mxu0 0.0
        %1753 = vmatprep.subr.mxu0 0.0
        %1754 = vmatpush1.msra.mxu0 0.0
        %1755 = vmatprep.subr.mxu0 0.0
        %1756 = vmatpush1.msra.mxu0 0.0
        %1757 = vmatprep.subr.mxu0 0.0
        %1758 = vmatpush1.msra.mxu0 0.0
        %1759 = vmatprep.subr.mxu0 0.0
        %1760 = vmatpush1.msra.mxu0 0.0
        %1761 = vmatprep.subr.mxu0 0.0
        %1762 = vmatpush1.msra.mxu0 0.0
        %1763 = vmatprep.subr.mxu0 0.0
        %1764 = vmatpush1.msra.mxu0 0.0
        %1765 = vmatprep.subr.mxu0 0.0
        %1766 = vmatpush1.msra.mxu0 0.0
        %1767 = vmatprep.subr.mxu0 0.0
        %1768 = vmatpush1.msra.mxu0 0.0
        %1769 = vmatprep.subr.mxu0 0.0
        %1770 = vmatpush1.msra.mxu0 0.0
        %1771 = vmatprep.subr.mxu0 0.0
        %1772 = vmatpush1.msra.mxu0 0.0
        %1773 = vmatprep.subr.mxu0 0.0
        %1774 = vmatpush1.msra.mxu0 0.0
        %1775 = vmatprep.mubr.f32.mxu0 0.0
        %1776 = vmatmul.mubr.f32.gmra.mrb[0].mxu0 %v1664
        %v1777 = vpop.f32.mrb[0].mxu0
        %v1778 = vadd.f32 %v224, %v1777
        %v1779 = vpop.f32.mrb[0].mxu0
        %1780 = vmatprep.mubr.f32.mxu0 0.0
        %1781 = vmatmul.mubr.f32.gmra.mrb[0].mxu0 %v1667
        %v1782 = vpop.f32.mrb[0].mxu0
        %v1783 = vadd.f32 %v224, %v1782
        %v1784 = vpop.f32.mrb[0].mxu0
        %1785 = vmatprep.mubr.f32.mxu0 0.0
        %1786 = vmatmul.mubr.f32.gmra.mrb[0].mxu0 %v1670
        %v1787 = vpop.f32.mrb[0].mxu0
        %v1788 = vadd.f32 %v224, %v1787
        %v1789 = vpop.f32.mrb[0].mxu0
        %1790 = vmatprep.mubr.f32.mxu0 0.0
        %1791 = vmatmul.mubr.f32.gmra.mrb[0].mxu0 %v1673
        %v1792 = vpop.f32.mrb[0].mxu0
        %v1793 = vadd.f32 %v224, %v1792
        %v1794 = vpop.f32.mrb[0].mxu0
        %1795 = vmatprep.mubr.f32.mxu0 0.0
        %1796 = vmatmul.mubr.f32.gmra.mrb[0].mxu0 %v1676
        %v1797 = vpop.f32.mrb[0].mxu0
        %v1798 = vadd.f32 %v224, %v1797
        %v1799 = vpop.f32.mrb[0].mxu0
        %1800 = vmatprep.mubr.f32.mxu0 0.0
        %1801 = vmatmul.mubr.f32.gmra.mrb[0].mxu0 %v1679
        %v1802 = vpop.f32.mrb[0].mxu0
        %v1803 = vadd.f32 %v224, %v1802
        %v1804 = vpop.f32.mrb[0].mxu0
        %1805 = vmatprep.mubr.f32.mxu0 0.0
        %1806 = vmatmul.mubr.f32.gmra.mrb[0].mxu0 %v1682
        %v1807 = vpop.f32.mrb[0].mxu0
        %v1808 = vadd.f32 %v224, %v1807
        %v1809 = vpop.f32.mrb[0].mxu0
        %1810 = vmatprep.mubr.f32.mxu0 0.0
        %1811 = vmatmul.mubr.f32.gmra.mrb[0].mxu0 %v1685
        %v1812 = vpop.f32.mrb[0].mxu0
        %v1813 = vadd.f32 %v224, %v1812
        %v1814 = vpop.f32.mrb[0].mxu0
        %1815 = vmatprep.mubr.f32.mxu0 0.0
        %1816 = vmatmul.mubr.f32.gmra.mrb[0].mxu0 %v1688
        %v1817 = vpop.f32.mrb[0].mxu0
        %v1818 = vadd.f32 %v224, %v1817
        %v1819 = vpop.f32.mrb[0].mxu0
        %1820 = vmatprep.mubr.f32.mxu0 0.0
        %1821 = vmatmul.mubr.f32.gmra.mrb[0].mxu0 %v1691
        %v1822 = vpop.f32.mrb[0].mxu0
        %v1823 = vadd.f32 %v224, %v1822
        %v1824 = vpop.f32.mrb[0].mxu0
        %1825 = vmatprep.mubr.f32.mxu0 0.0
        %1826 = vmatmul.mubr.f32.gmra.mrb[0].mxu0 %v1694
        %v1827 = vpop.f32.mrb[0].mxu0
        %v1828 = vadd.f32 %v224, %v1827
        %v1829 = vpop.f32.mrb[0].mxu0
        %1830 = vmatprep.mubr.f32.mxu0 0.0
        %1831 = vmatmul.mubr.f32.gmra.mrb[0].mxu0 %v1697
        %v1832 = vpop.f32.mrb[0].mxu0
        %v1833 = vadd.f32 %v224, %v1832
        %v1834 = vpop.f32.mrb[0].mxu0
        %1835 = vmatprep.mubr.f32.mxu0 0.0
        %1836 = vmatmul.mubr.f32.gmra.mrb[0].mxu0 %v1700
        %v1837 = vpop.f32.mrb[0].mxu0
        %v1838 = vadd.f32 %v224, %v1837
        %v1839 = vpop.f32.mrb[0].mxu0
        %1840 = vmatprep.mubr.f32.mxu0 0.0
        %1841 = vmatmul.mubr.f32.gmra.mrb[0].mxu0 %v1703
        %v1842 = vpop.f32.mrb[0].mxu0
        %v1843 = vadd.f32 %v224, %v1842
        %v1844 = vpop.f32.mrb[0].mxu0
        %1845 = vmatprep.mubr.f32.mxu0 0.0
        %1846 = vmatmul.mubr.f32.gmra.mrb[0].mxu0 %v1706
        %v1847 = vpop.f32.mrb[0].mxu0
        %v1848 = vadd.f32 %v224, %v1847
        %v1849 = vpop.f32.mrb[0].mxu0
        %1850 = vmatprep.mubr.f32.mxu0 0.0
        %1851 = vmatmul.mubr.f32.gmra.mrb[0].mxu0 %v1709
        %v1852 = vpop.f32.mrb[0].mxu0
        %v1853 = vadd.f32 %v224, %v1852
        %v1854 = vpop.f32.mrb[0].mxu0
        %1855 = vdwg.mxu0
        %v1856 = vmax.f32 %v1778, 0.0
        %v1857 = vmax.f32 %v1783, 0.0
        %v1858 = vmax.f32 %v1788, 0.0
        %v1859 = vmax.f32 %v1793, 0.0
        %v1860 = vmax.f32 %v1798, 0.0
        %v1861 = vmax.f32 %v1803, 0.0
        %v1862 = vmax.f32 %v1808, 0.0
        %v1863 = vmax.f32 %v1813, 0.0
        %v1864 = vmax.f32 %v1818, 0.0
        %v1865 = vmax.f32 %v1823, 0.0
        %v1866 = vmax.f32 %v1828, 0.0
        %v1867 = vmax.f32 %v1833, 0.0
        %v1868 = vmax.f32 %v1838, 0.0
        %v1869 = vmax.f32 %v1843, 0.0
        %v1870 = vmax.f32 %v1848, 0.0
        %v1871 = vmax.f32 %v1853, 0.0
        %v1872 = vld [vmem:[%s2] sm:$0xff]
        %v1873 = vld [vmem:[%s2 + $0x8] sm:$0xff]
        %v1874 = vld [vmem:[%s2 + $0x10] sm:$0xff]
        %v1875 = vld [vmem:[%s2 + $0x18] sm:$0xff]
        %v1876 = vld [vmem:[%s2 + $0x20] sm:$0xff]
        %v1877 = vld [vmem:[%s2 + $0x28] sm:$0xff]
        %v1878 = vld [vmem:[%s2 + $0x30] sm:$0xff]
        %v1879 = vld [vmem:[%s2 + $0x38] sm:$0xff]
        %v1880 = vld [vmem:[%s2 + $0x40] sm:$0xff]
        %v1881 = vld [vmem:[%s2 + $0x48] sm:$0xff]
        %v1882 = vld [vmem:[%s2 + $0x50] sm:$0xff]
        %v1883 = vld [vmem:[%s2 + $0x58] sm:$0xff]
        %v1884 = vld [vmem:[%s2 + $0x60] sm:$0xff]
        %v1885 = vld [vmem:[%s2 + $0x68] sm:$0xff]
        %v1886 = vld [vmem:[%s2 + $0x70] sm:$0xff]
        %v1887 = vld [vmem:[%s2 + $0x78] sm:$0xff]
        %1888 = vmatprep.subr.mxu0 0.0
        %1889 = vmatpush1.msra.mxu0 %v1872
        %1890 = vmatprep.subr.mxu0 0.0
        %1891 = vmatpush1.msra.mxu0 %v1873
        %1892 = vmatprep.subr.mxu0 0.0
        %1893 = vmatpush1.msra.mxu0 %v1874
        %1894 = vmatprep.subr.mxu0 0.0
        %1895 = vmatpush1.msra.mxu0 %v1875
        %1896 = vmatprep.subr.mxu0 0.0
        %1897 = vmatpush1.msra.mxu0 %v1876
        %1898 = vmatprep.subr.mxu0 0.0
        %1899 = vmatpush1.msra.mxu0 %v1877
        %1900 = vmatprep.subr.mxu0 0.0
        %1901 = vmatpush1.msra.mxu0 %v1878
        %1902 = vmatprep.subr.mxu0 0.0
        %1903 = vmatpush1.msra.mxu0 %v1879
        %1904 = vmatprep.subr.mxu0 0.0
        %1905 = vmatpush1.msra.mxu0 %v1880
        %1906 = vmatprep.subr.mxu0 0.0
        %1907 = vmatpush1.msra.mxu0 %v1881
        %1908 = vmatprep.subr.mxu0 0.0
        %1909 = vmatpush1.msra.mxu0 %v1882
        %1910 = vmatprep.subr.mxu0 0.0
        %1911 = vmatpush1.msra.mxu0 %v1883
        %1912 = vmatprep.subr.mxu0 0.0
        %1913 = vmatpush1.msra.mxu0 %v1884
        %1914 = vmatprep.subr.mxu0 0.0
        %1915 = vmatpush1.msra.mxu0 %v1885
        %1916 = vmatprep.subr.mxu0 0.0
        %1917 = vmatpush1.msra.mxu0 %v1886
        %1918 = vmatprep.subr.mxu0 0.0
        %1919 = vmatpush1.msra.mxu0 %v1887
        %1920 = vmatprep.subr.mxu0 0.0
        %1921 = vmatpush1.msra.mxu0 0.0
        %1922 = vmatprep.subr.mxu0 0.0
        %1923 = vmatpush1.msra.mxu0 0.0
        %1924 = vmatprep.subr.mxu0 0.0
        %1925 = vmatpush1.msra.mxu0 0.0
        %1926 = vmatprep.subr.mxu0 0.0
        %1927 = vmatpush1.msra.mxu0 0.0
        %1928 = vmatprep.subr.mxu0 0.0
        %1929 = vmatpush1.msra.mxu0 0.0
        %1930 = vmatprep.subr.mxu0 0.0
        %1931 = vmatpush1.msra.mxu0 0.0
        %1932 = vmatprep.subr.mxu0 0.0
        %1933 = vmatpush1.msra.mxu0 0.0
        %1934 = vmatprep.subr.mxu0 0.0
        %1935 = vmatpush1.msra.mxu0 0.0
        %1936 = vmatprep.subr.mxu0 0.0
        %1937 = vmatpush1.msra.mxu0 0.0
        %1938 = vmatprep.subr.mxu0 0.0
        %1939 = vmatpush1.msra.mxu0 0.0
        %1940 = vmatprep.subr.mxu0 0.0
        %1941 = vmatpush1.msra.mxu0 0.0
        %1942 = vmatprep.subr.mxu0 0.0
        %1943 = vmatpush1.msra.mxu0 0.0
        %1944 = vmatprep.subr.mxu0 0.0
        %1945 = vmatpush1.msra.mxu0 0.0
        %1946 = vmatprep.subr.mxu0 0.0
        %1947 = vmatpush1.msra.mxu0 0.0
        %1948 = vmatprep.subr.mxu0 0.0
        %1949 = vmatpush1.msra.mxu0 0.0
        %1950 = vmatprep.subr.mxu0 0.0
        %1951 = vmatpush1.msra.mxu0 0.0
        %1952 = vmatprep.mubr.f32.mxu0 0.0
        %1953 = vmatmul.mubr.f32.gmra.mrb[0].mxu0 %v1856
        %v1954 = vpop.f32.mrb[0].mxu0
        %v1955 = vadd.f32 %v454, %v1954
        %v1956 = vpop.f32.mrb[0].mxu0
        %1957 = vmatprep.mubr.f32.mxu0 0.0
        %1958 = vmatmul.mubr.f32.gmra.mrb[0].mxu0 %v1857
        %v1959 = vpop.f32.mrb[0].mxu0
        %v1960 = vadd.f32 %v454, %v1959
        %v1961 = vpop.f32.mrb[0].mxu0
        %1962 = vmatprep.mubr.f32.mxu0 0.0
        %1963 = vmatmul.mubr.f32.gmra.mrb[0].mxu0 %v1858
        %v1964 = vpop.f32.mrb[0].mxu0
        %v1965 = vadd.f32 %v454, %v1964
        %v1966 = vpop.f32.mrb[0].mxu0
        %1967 = vmatprep.mubr.f32.mxu0 0.0
        %1968 = vmatmul.mubr.f32.gmra.mrb[0].mxu0 %v1859
        %v1969 = vpop.f32.mrb[0].mxu0
        %v1970 = vadd.f32 %v454, %v1969
        %v1971 = vpop.f32.mrb[0].mxu0
        %1972 = vmatprep.mubr.f32.mxu0 0.0
        %1973 = vmatmul.mubr.f32.gmra.mrb[0].mxu0 %v1860
        %v1974 = vpop.f32.mrb[0].mxu0
        %v1975 = vadd.f32 %v454, %v1974
        %v1976 = vpop.f32.mrb[0].mxu0
        %1977 = vmatprep.mubr.f32.mxu0 0.0
        %1978 = vmatmul.mubr.f32.gmra.mrb[0].mxu0 %v1861
        %v1979 = vpop.f32.mrb[0].mxu0
        %v1980 = vadd.f32 %v454, %v1979
        %v1981 = vpop.f32.mrb[0].mxu0
        %1982 = vmatprep.mubr.f32.mxu0 0.0
        %1983 = vmatmul.mubr.f32.gmra.mrb[0].mxu0 %v1862
        %v1984 = vpop.f32.mrb[0].mxu0
        %v1985 = vadd.f32 %v454, %v1984
        %v1986 = vpop.f32.mrb[0].mxu0
        %1987 = vmatprep.mubr.f32.mxu0 0.0
        %1988 = vmatmul.mubr.f32.gmra.mrb[0].mxu0 %v1863
        %v1989 = vpop.f32.mrb[0].mxu0
        %v1990 = vadd.f32 %v454, %v1989
        %v1991 = vpop.f32.mrb[0].mxu0
        %1992 = vmatprep.mubr.f32.mxu0 0.0
        %1993 = vmatmul.mubr.f32.gmra.mrb[0].mxu0 %v1864
        %v1994 = vpop.f32.mrb[0].mxu0
        %v1995 = vadd.f32 %v454, %v1994
        %v1996 = vpop.f32.mrb[0].mxu0
        %1997 = vmatprep.mubr.f32.mxu0 0.0
        %1998 = vmatmul.mubr.f32.gmra.mrb[0].mxu0 %v1865
        %v1999 = vpop.f32.mrb[0].mxu0
        %v2000 = vadd.f32 %v454, %v1999
        %v2001 = vpop.f32.mrb[0].mxu0
        %2002 = vmatprep.mubr.f32.mxu0 0.0
        %2003 = vmatmul.mubr.f32.gmra.mrb[0].mxu0 %v1866
        %v2004 = vpop.f32.mrb[0].mxu0
        %v2005 = vadd.f32 %v454, %v2004
        %v2006 = vpop.f32.mrb[0].mxu0
        %2007 = vmatprep.mubr.f32.mxu0 0.0
        %2008 = vmatmul.mubr.f32.gmra.mrb[0].mxu0 %v1867
        %v2009 = vpop.f32.mrb[0].mxu0
        %v2010 = vadd.f32 %v454, %v2009
        %v2011 = vpop.f32.mrb[0].mxu0
        %2012 = vmatprep.mubr.f32.mxu0 0.0
        %2013 = vmatmul.mubr.f32.gmra.mrb[0].mxu0 %v1868
        %v2014 = vpop.f32.mrb[0].mxu0
        %v2015 = vadd.f32 %v454, %v2014
        %v2016 = vpop.f32.mrb[0].mxu0
        %2017 = vmatprep.mubr.f32.mxu0 0.0
        %2018 = vmatmul.mubr.f32.gmra.mrb[0].mxu0 %v1869
        %v2019 = vpop.f32.mrb[0].mxu0
        %v2020 = vadd.f32 %v454, %v2019
        %v2021 = vpop.f32.mrb[0].mxu0
        %2022 = vmatprep.mubr.f32.mxu0 0.0
        %2023 = vmatmul.mubr.f32.gmra.mrb[0].mxu0 %v1870
        %v2024 = vpop.f32.mrb[0].mxu0
        %v2025 = vadd.f32 %v454, %v2024
        %v2026 = vpop.f32.mrb[0].mxu0
        %2027 = vmatprep.mubr.f32.mxu0 0.0
        %2028 = vmatmul.mubr.f32.gmra.mrb[0].mxu0 %v1871
        %v2029 = vpop.f32.mrb[0].mxu0
        %v2030 = vadd.f32 %v454, %v2029
        %v2031 = vpop.f32.mrb[0].mxu0
        %2032 = vdwg.mxu0
        %v2033 = vmax.f32 %v1955, 0.0
        %v2034 = vmax.f32 %v1960, 0.0
        %v2035 = vmax.f32 %v1965, 0.0
        %v2036 = vmax.f32 %v1970, 0.0
        %v2037 = vmax.f32 %v1975, 0.0
        %v2038 = vmax.f32 %v1980, 0.0
        %v2039 = vmax.f32 %v1985, 0.0
        %v2040 = vmax.f32 %v1990, 0.0
        %v2041 = vmax.f32 %v1995, 0.0
        %v2042 = vmax.f32 %v2000, 0.0
        %v2043 = vmax.f32 %v2005, 0.0
        %v2044 = vmax.f32 %v2010, 0.0
        %v2045 = vmax.f32 %v2015, 0.0
        %v2046 = vmax.f32 %v2020, 0.0
        %v2047 = vmax.f32 %v2025, 0.0
        %v2048 = vmax.f32 %v2030, 0.0
        %2049 = vmatprep.subr.mxu0 0.0
        %2050 = vmatpush1.xpose.msra.mxu0 %v2033
        %2051 = vmatprep.subr.mxu0 0.0
        %2052 = vmatpush1.xpose.msra.mxu0 %v2034
        %2053 = vmatprep.subr.mxu0 0.0
        %2054 = vmatpush1.xpose.msra.mxu0 %v2035
        %2055 = vmatprep.subr.mxu0 0.0
        %2056 = vmatpush1.xpose.msra.mxu0 %v2036
        %2057 = vmatprep.subr.mxu0 0.0
        %2058 = vmatpush1.xpose.msra.mxu0 %v2037
        %2059 = vmatprep.subr.mxu0 0.0
        %2060 = vmatpush1.xpose.msra.mxu0 %v2038
        %2061 = vmatprep.subr.mxu0 0.0
        %2062 = vmatpush1.xpose.msra.mxu0 %v2039
        %2063 = vmatprep.subr.mxu0 0.0
        %2064 = vmatpush1.xpose.msra.mxu0 %v2040
        %2065 = vmatprep.subr.mxu0 0.0
        %2066 = vmatpush1.xpose.msra.mxu0 %v2041
        %2067 = vmatprep.subr.mxu0 0.0
        %2068 = vmatpush1.xpose.msra.mxu0 %v2042
        %2069 = vmatprep.subr.mxu0 0.0
        %2070 = vmatpush1.xpose.msra.mxu0 %v2043
        %2071 = vmatprep.subr.mxu0 0.0
        %2072 = vmatpush1.xpose.msra.mxu0 %v2044
        %2073 = vmatprep.subr.mxu0 0.0
        %2074 = vmatpush1.xpose.msra.mxu0 %v2045
        %2075 = vmatprep.subr.mxu0 0.0
        %2076 = vmatpush1.xpose.msra.mxu0 %v2046
        %2077 = vmatprep.subr.mxu0 0.0
        %2078 = vmatpush1.xpose.msra.mxu0 %v2047
        %2079 = vmatprep.subr.mxu0 0.0
        %2080 = vmatpush1.xpose.msra.mxu0 %v2048
        %2081 = vmatprep.subr.mxu0 0.0
        %2082 = vmatpush1.xpose.msra.mxu0 0.0
        %2083 = vmatprep.subr.mxu0 0.0
        %2084 = vmatpush1.xpose.msra.mxu0 0.0
        %2085 = vmatprep.subr.mxu0 0.0
        %2086 = vmatpush1.xpose.msra.mxu0 0.0
        %2087 = vmatprep.subr.mxu0 0.0
        %2088 = vmatpush1.xpose.msra.mxu0 0.0
        %2089 = vmatprep.subr.mxu0 0.0
        %2090 = vmatpush1.xpose.msra.mxu0 0.0
        %2091 = vmatprep.subr.mxu0 0.0
        %2092 = vmatpush1.xpose.msra.mxu0 0.0
        %2093 = vmatprep.subr.mxu0 0.0
        %2094 = vmatpush1.xpose.msra.mxu0 0.0
        %2095 = vmatprep.subr.mxu0 0.0
        %2096 = vmatpush1.xpose.msra.mxu0 0.0
        %2097 = vmatprep.subr.mxu0 0.0
        %2098 = vmatpush1.xpose.msra.mxu0 0.0
        %2099 = vmatprep.subr.mxu0 0.0
        %2100 = vmatpush1.xpose.msra.mxu0 0.0
        %2101 = vmatprep.subr.mxu0 0.0
        %2102 = vmatpush1.xpose.msra.mxu0 0.0
        %2103 = vmatprep.subr.mxu0 0.0
        %2104 = vmatpush1.xpose.msra.mxu0 0.0
        %2105 = vmatprep.subr.mxu0 0.0
        %2106 = vmatpush1.xpose.msra.mxu0 0.0
        %2107 = vmatprep.subr.mxu0 0.0
        %2108 = vmatpush1.xpose.msra.mxu0 0.0
        %2109 = vmatprep.subr.mxu0 0.0
        %2110 = vmatpush1.xpose.msra.mxu0 0.0
        %2111 = vmatprep.subr.mxu0 0.0
        %2112 = vmatpush1.xpose.msra.mxu0 0.0
        %2113 = vmatprep.mubr.f32.mxu0 0.0
        %2114 = vmatmul.mubr.f32.gmra.mrb[0].mxu0 %v200
        %v2115 = vpop.f32.mrb[0].mxu0
        %v2116 = vadd.f32 %v619, %v2115
        %v2117 = vpop.f32.mrb[0].mxu0
        %2118 = vdwg.mxu0
        %2119 = vst [vmem:[%s191 + $0x3] sm:$0x1] %v2116
        %v2120 = vld [vmem:[%s196 + $0x200] sm:$0xff]
        %v2121 = vld [vmem:[%s196 + $0x208] sm:$0xff]
        %v2122 = vld [vmem:[%s196 + $0x210] sm:$0xff]
        %v2123 = vld [vmem:[%s196 + $0x218] sm:$0xff]
        %v2124 = vld [vmem:[%s196 + $0x220] sm:$0xff]
        %v2125 = vld [vmem:[%s196 + $0x228] sm:$0xff]
        %v2126 = vld [vmem:[%s196 + $0x230] sm:$0xff]
        %v2127 = vld [vmem:[%s196 + $0x238] sm:$0xff]
        %v2128 = vld [vmem:[%s196 + $0x240] sm:$0xff]
        %v2129 = vld [vmem:[%s196 + $0x248] sm:$0xff]
        %v2130 = vld [vmem:[%s196 + $0x250] sm:$0xff]
        %v2131 = vld [vmem:[%s196 + $0x258] sm:$0xff]
        %v2132 = vld [vmem:[%s196 + $0x260] sm:$0xff]
        %v2133 = vld [vmem:[%s196 + $0x268] sm:$0xff]
        %v2134 = vld [vmem:[%s196 + $0x270] sm:$0xff]
        %v2135 = vld [vmem:[%s196 + $0x278] sm:$0xff]
        %v2136 = vld [vmem:[%s1] sm:$0xff]
        %v2137 = vld [vmem:[%s1 + $0x8] sm:$0xff]
        %v2138 = vld [vmem:[%s1 + $0x10] sm:$0xff]
        %v2140 = vsel %vm225, %v2120, 0
        %v2143 = vsel %vm225, %v2121, 0
        %v2146 = vsel %vm225, %v2122, 0
        %v2149 = vsel %vm225, %v2123, 0
        %v2152 = vsel %vm225, %v2124, 0
        %v2155 = vsel %vm225, %v2125, 0
        %v2158 = vsel %vm225, %v2126, 0
        %v2161 = vsel %vm225, %v2127, 0
        %v2164 = vsel %vm225, %v2128, 0
        %v2167 = vsel %vm225, %v2129, 0
        %v2170 = vsel %vm225, %v2130, 0
        %v2173 = vsel %vm225, %v2131, 0
        %v2176 = vsel %vm225, %v2132, 0
        %v2179 = vsel %vm225, %v2133, 0
        %v2182 = vsel %vm225, %v2134, 0
        %v2185 = vsel %vm225, %v2135, 0
        %2187 = vmatprep.subr.mxu0 0.0
        %2188 = vmatpush1.msra.mxu0 %v2136
        %2189 = vmatprep.subr.mxu0 0.0
        %2190 = vmatpush1.msra.mxu0 %v2137
        %2191 = vmatprep.subr.mxu0 0.0
        %2192 = vmatpush1.msra.mxu0 %v2138
        %2193 = vmatprep.subr.mxu0 0.0
        %2194 = vmatpush1.msra.mxu0 0.0
        %2195 = vmatprep.subr.mxu0 0.0
        %2196 = vmatpush1.msra.mxu0 0.0
        %2197 = vmatprep.subr.mxu0 0.0
        %2198 = vmatpush1.msra.mxu0 0.0
        %2199 = vmatprep.subr.mxu0 0.0
        %2200 = vmatpush1.msra.mxu0 0.0
        %2201 = vmatprep.subr.mxu0 0.0
        %2202 = vmatpush1.msra.mxu0 0.0
        %2203 = vmatprep.subr.mxu0 0.0
        %2204 = vmatpush1.msra.mxu0 0.0
        %2205 = vmatprep.subr.mxu0 0.0
        %2206 = vmatpush1.msra.mxu0 0.0
        %2207 = vmatprep.subr.mxu0 0.0
        %2208 = vmatpush1.msra.mxu0 0.0
        %2209 = vmatprep.subr.mxu0 0.0
        %2210 = vmatpush1.msra.mxu0 0.0
        %2211 = vmatprep.subr.mxu0 0.0
        %2212 = vmatpush1.msra.mxu0 0.0
        %2213 = vmatprep.subr.mxu0 0.0
        %2214 = vmatpush1.msra.mxu0 0.0
        %2215 = vmatprep.subr.mxu0 0.0
        %2216 = vmatpush1.msra.mxu0 0.0
        %2217 = vmatprep.subr.mxu0 0.0
        %2218 = vmatpush1.msra.mxu0 0.0
        %2219 = vmatprep.subr.mxu0 0.0
        %2220 = vmatpush1.msra.mxu0 0.0
        %2221 = vmatprep.subr.mxu0 0.0
        %2222 = vmatpush1.msra.mxu0 0.0
        %2223 = vmatprep.subr.mxu0 0.0
        %2224 = vmatpush1.msra.mxu0 0.0
        %2225 = vmatprep.subr.mxu0 0.0
        %2226 = vmatpush1.msra.mxu0 0.0
        %2227 = vmatprep.subr.mxu0 0.0
        %2228 = vmatpush1.msra.mxu0 0.0
        %2229 = vmatprep.subr.mxu0 0.0
        %2230 = vmatpush1.msra.mxu0 0.0
        %2231 = vmatprep.subr.mxu0 0.0
        %2232 = vmatpush1.msra.mxu0 0.0
        %2233 = vmatprep.subr.mxu0 0.0
        %2234 = vmatpush1.msra.mxu0 0.0
        %2235 = vmatprep.subr.mxu0 0.0
        %2236 = vmatpush1.msra.mxu0 0.0
        %2237 = vmatprep.subr.mxu0 0.0
        %2238 = vmatpush1.msra.mxu0 0.0
        %2239 = vmatprep.subr.mxu0 0.0
        %2240 = vmatpush1.msra.mxu0 0.0
        %2241 = vmatprep.subr.mxu0 0.0
        %2242 = vmatpush1.msra.mxu0 0.0
        %2243 = vmatprep.subr.mxu0 0.0
        %2244 = vmatpush1.msra.mxu0 0.0
        %2245 = vmatprep.subr.mxu0 0.0
        %2246 = vmatpush1.msra.mxu0 0.0
        %2247 = vmatprep.subr.mxu0 0.0
        %2248 = vmatpush1.msra.mxu0 0.0
        %2249 = vmatprep.subr.mxu0 0.0
        %2250 = vmatpush1.msra.mxu0 0.0
        %2251 = vmatprep.mubr.f32.mxu0 0.0
        %2252 = vmatmul.mubr.f32.gmra.mrb[0].mxu0 %v2140
        %v2253 = vpop.f32.mrb[0].mxu0
        %v2254 = vadd.f32 %v224, %v2253
        %v2255 = vpop.f32.mrb[0].mxu0
        %2256 = vmatprep.mubr.f32.mxu0 0.0
        %2257 = vmatmul.mubr.f32.gmra.mrb[0].mxu0 %v2143
        %v2258 = vpop.f32.mrb[0].mxu0
        %v2259 = vadd.f32 %v224, %v2258
        %v2260 = vpop.f32.mrb[0].mxu0
        %2261 = vmatprep.mubr.f32.mxu0 0.0
        %2262 = vmatmul.mubr.f32.gmra.mrb[0].mxu0 %v2146
        %v2263 = vpop.f32.mrb[0].mxu0
        %v2264 = vadd.f32 %v224, %v2263
        %v2265 = vpop.f32.mrb[0].mxu0
        %2266 = vmatprep.mubr.f32.mxu0 0.0
        %2267 = vmatmul.mubr.f32.gmra.mrb[0].mxu0 %v2149
        %v2268 = vpop.f32.mrb[0].mxu0
        %v2269 = vadd.f32 %v224, %v2268
        %v2270 = vpop.f32.mrb[0].mxu0
        %2271 = vmatprep.mubr.f32.mxu0 0.0
        %2272 = vmatmul.mubr.f32.gmra.mrb[0].mxu0 %v2152
        %v2273 = vpop.f32.mrb[0].mxu0
        %v2274 = vadd.f32 %v224, %v2273
        %v2275 = vpop.f32.mrb[0].mxu0
        %2276 = vmatprep.mubr.f32.mxu0 0.0
        %2277 = vmatmul.mubr.f32.gmra.mrb[0].mxu0 %v2155
        %v2278 = vpop.f32.mrb[0].mxu0
        %v2279 = vadd.f32 %v224, %v2278
        %v2280 = vpop.f32.mrb[0].mxu0
        %2281 = vmatprep.mubr.f32.mxu0 0.0
        %2282 = vmatmul.mubr.f32.gmra.mrb[0].mxu0 %v2158
        %v2283 = vpop.f32.mrb[0].mxu0
        %v2284 = vadd.f32 %v224, %v2283
        %v2285 = vpop.f32.mrb[0].mxu0
        %2286 = vmatprep.mubr.f32.mxu0 0.0
        %2287 = vmatmul.mubr.f32.gmra.mrb[0].mxu0 %v2161
        %v2288 = vpop.f32.mrb[0].mxu0
        %v2289 = vadd.f32 %v224, %v2288
        %v2290 = vpop.f32.mrb[0].mxu0
        %2291 = vmatprep.mubr.f32.mxu0 0.0
        %2292 = vmatmul.mubr.f32.gmra.mrb[0].mxu0 %v2164
        %v2293 = vpop.f32.mrb[0].mxu0
        %v2294 = vadd.f32 %v224, %v2293
        %v2295 = vpop.f32.mrb[0].mxu0
        %2296 = vmatprep.mubr.f32.mxu0 0.0
        %2297 = vmatmul.mubr.f32.gmra.mrb[0].mxu0 %v2167
        %v2298 = vpop.f32.mrb[0].mxu0
        %v2299 = vadd.f32 %v224, %v2298
        %v2300 = vpop.f32.mrb[0].mxu0
        %2301 = vmatprep.mubr.f32.mxu0 0.0
        %2302 = vmatmul.mubr.f32.gmra.mrb[0].mxu0 %v2170
        %v2303 = vpop.f32.mrb[0].mxu0
        %v2304 = vadd.f32 %v224, %v2303
        %v2305 = vpop.f32.mrb[0].mxu0
        %2306 = vmatprep.mubr.f32.mxu0 0.0
        %2307 = vmatmul.mubr.f32.gmra.mrb[0].mxu0 %v2173
        %v2308 = vpop.f32.mrb[0].mxu0
        %v2309 = vadd.f32 %v224, %v2308
        %v2310 = vpop.f32.mrb[0].mxu0
        %2311 = vmatprep.mubr.f32.mxu0 0.0
        %2312 = vmatmul.mubr.f32.gmra.mrb[0].mxu0 %v2176
        %v2313 = vpop.f32.mrb[0].mxu0
        %v2314 = vadd.f32 %v224, %v2313
        %v2315 = vpop.f32.mrb[0].mxu0
        %2316 = vmatprep.mubr.f32.mxu0 0.0
        %2317 = vmatmul.mubr.f32.gmra.mrb[0].mxu0 %v2179
        %v2318 = vpop.f32.mrb[0].mxu0
        %v2319 = vadd.f32 %v224, %v2318
        %v2320 = vpop.f32.mrb[0].mxu0
        %2321 = vmatprep.mubr.f32.mxu0 0.0
        %2322 = vmatmul.mubr.f32.gmra.mrb[0].mxu0 %v2182
        %v2323 = vpop.f32.mrb[0].mxu0
        %v2324 = vadd.f32 %v224, %v2323
        %v2325 = vpop.f32.mrb[0].mxu0
        %2326 = vmatprep.mubr.f32.mxu0 0.0
        %2327 = vmatmul.mubr.f32.gmra.mrb[0].mxu0 %v2185
        %v2328 = vpop.f32.mrb[0].mxu0
        %v2329 = vadd.f32 %v224, %v2328
        %v2330 = vpop.f32.mrb[0].mxu0
        %2331 = vdwg.mxu0
        %v2332 = vmax.f32 %v2254, 0.0
        %v2333 = vmax.f32 %v2259, 0.0
        %v2334 = vmax.f32 %v2264, 0.0
        %v2335 = vmax.f32 %v2269, 0.0
        %v2336 = vmax.f32 %v2274, 0.0
        %v2337 = vmax.f32 %v2279, 0.0
        %v2338 = vmax.f32 %v2284, 0.0
        %v2339 = vmax.f32 %v2289, 0.0
        %v2340 = vmax.f32 %v2294, 0.0
        %v2341 = vmax.f32 %v2299, 0.0
        %v2342 = vmax.f32 %v2304, 0.0
        %v2343 = vmax.f32 %v2309, 0.0
        %v2344 = vmax.f32 %v2314, 0.0
        %v2345 = vmax.f32 %v2319, 0.0
        %v2346 = vmax.f32 %v2324, 0.0
        %v2347 = vmax.f32 %v2329, 0.0
        %v2348 = vld [vmem:[%s2] sm:$0xff]
        %v2349 = vld [vmem:[%s2 + $0x8] sm:$0xff]
        %v2350 = vld [vmem:[%s2 + $0x10] sm:$0xff]
        %v2351 = vld [vmem:[%s2 + $0x18] sm:$0xff]
        %v2352 = vld [vmem:[%s2 + $0x20] sm:$0xff]
        %v2353 = vld [vmem:[%s2 + $0x28] sm:$0xff]
        %v2354 = vld [vmem:[%s2 + $0x30] sm:$0xff]
        %v2355 = vld [vmem:[%s2 + $0x38] sm:$0xff]
        %v2356 = vld [vmem:[%s2 + $0x40] sm:$0xff]
        %v2357 = vld [vmem:[%s2 + $0x48] sm:$0xff]
        %v2358 = vld [vmem:[%s2 + $0x50] sm:$0xff]
        %v2359 = vld [vmem:[%s2 + $0x58] sm:$0xff]
        %v2360 = vld [vmem:[%s2 + $0x60] sm:$0xff]
        %v2361 = vld [vmem:[%s2 + $0x68] sm:$0xff]
        %v2362 = vld [vmem:[%s2 + $0x70] sm:$0xff]
        %v2363 = vld [vmem:[%s2 + $0x78] sm:$0xff]
        %2364 = vmatprep.subr.mxu0 0.0
        %2365 = vmatpush1.msra.mxu0 %v2348
        %2366 = vmatprep.subr.mxu0 0.0
        %2367 = vmatpush1.msra.mxu0 %v2349
        %2368 = vmatprep.subr.mxu0 0.0
        %2369 = vmatpush1.msra.mxu0 %v2350
        %2370 = vmatprep.subr.mxu0 0.0
        %2371 = vmatpush1.msra.mxu0 %v2351
        %2372 = vmatprep.subr.mxu0 0.0
        %2373 = vmatpush1.msra.mxu0 %v2352
        %2374 = vmatprep.subr.mxu0 0.0
        %2375 = vmatpush1.msra.mxu0 %v2353
        %2376 = vmatprep.subr.mxu0 0.0
        %2377 = vmatpush1.msra.mxu0 %v2354
        %2378 = vmatprep.subr.mxu0 0.0
        %2379 = vmatpush1.msra.mxu0 %v2355
        %2380 = vmatprep.subr.mxu0 0.0
        %2381 = vmatpush1.msra.mxu0 %v2356
        %2382 = vmatprep.subr.mxu0 0.0
        %2383 = vmatpush1.msra.mxu0 %v2357
        %2384 = vmatprep.subr.mxu0 0.0
        %2385 = vmatpush1.msra.mxu0 %v2358
        %2386 = vmatprep.subr.mxu0 0.0
        %2387 = vmatpush1.msra.mxu0 %v2359
        %2388 = vmatprep.subr.mxu0 0.0
        %2389 = vmatpush1.msra.mxu0 %v2360
        %2390 = vmatprep.subr.mxu0 0.0
        %2391 = vmatpush1.msra.mxu0 %v2361
        %2392 = vmatprep.subr.mxu0 0.0
        %2393 = vmatpush1.msra.mxu0 %v2362
        %2394 = vmatprep.subr.mxu0 0.0
        %2395 = vmatpush1.msra.mxu0 %v2363
        %2396 = vmatprep.subr.mxu0 0.0
        %2397 = vmatpush1.msra.mxu0 0.0
        %2398 = vmatprep.subr.mxu0 0.0
        %2399 = vmatpush1.msra.mxu0 0.0
        %2400 = vmatprep.subr.mxu0 0.0
        %2401 = vmatpush1.msra.mxu0 0.0
        %2402 = vmatprep.subr.mxu0 0.0
        %2403 = vmatpush1.msra.mxu0 0.0
        %2404 = vmatprep.subr.mxu0 0.0
        %2405 = vmatpush1.msra.mxu0 0.0
        %2406 = vmatprep.subr.mxu0 0.0
        %2407 = vmatpush1.msra.mxu0 0.0
        %2408 = vmatprep.subr.mxu0 0.0
        %2409 = vmatpush1.msra.mxu0 0.0
        %2410 = vmatprep.subr.mxu0 0.0
        %2411 = vmatpush1.msra.mxu0 0.0
        %2412 = vmatprep.subr.mxu0 0.0
        %2413 = vmatpush1.msra.mxu0 0.0
        %2414 = vmatprep.subr.mxu0 0.0
        %2415 = vmatpush1.msra.mxu0 0.0
        %2416 = vmatprep.subr.mxu0 0.0
        %2417 = vmatpush1.msra.mxu0 0.0
        %2418 = vmatprep.subr.mxu0 0.0
        %2419 = vmatpush1.msra.mxu0 0.0
        %2420 = vmatprep.subr.mxu0 0.0
        %2421 = vmatpush1.msra.mxu0 0.0
        %2422 = vmatprep.subr.mxu0 0.0
        %2423 = vmatpush1.msra.mxu0 0.0
        %2424 = vmatprep.subr.mxu0 0.0
        %2425 = vmatpush1.msra.mxu0 0.0
        %2426 = vmatprep.subr.mxu0 0.0
        %2427 = vmatpush1.msra.mxu0 0.0
        %2428 = vmatprep.mubr.f32.mxu0 0.0
        %2429 = vmatmul.mubr.f32.gmra.mrb[0].mxu0 %v2332
        %v2430 = vpop.f32.mrb[0].mxu0
        %v2431 = vadd.f32 %v454, %v2430
        %v2432 = vpop.f32.mrb[0].mxu0
        %2433 = vmatprep.mubr.f32.mxu0 0.0
        %2434 = vmatmul.mubr.f32.gmra.mrb[0].mxu0 %v2333
        %v2435 = vpop.f32.mrb[0].mxu0
        %v2436 = vadd.f32 %v454, %v2435
        %v2437 = vpop.f32.mrb[0].mxu0
        %2438 = vmatprep.mubr.f32.mxu0 0.0
        %2439 = vmatmul.mubr.f32.gmra.mrb[0].mxu0 %v2334
        %v2440 = vpop.f32.mrb[0].mxu0
        %v2441 = vadd.f32 %v454, %v2440
        %v2442 = vpop.f32.mrb[0].mxu0
        %2443 = vmatprep.mubr.f32.mxu0 0.0
        %2444 = vmatmul.mubr.f32.gmra.mrb[0].mxu0 %v2335
        %v2445 = vpop.f32.mrb[0].mxu0
        %v2446 = vadd.f32 %v454, %v2445
        %v2447 = vpop.f32.mrb[0].mxu0
        %2448 = vmatprep.mubr.f32.mxu0 0.0
        %2449 = vmatmul.mubr.f32.gmra.mrb[0].mxu0 %v2336
        %v2450 = vpop.f32.mrb[0].mxu0
        %v2451 = vadd.f32 %v454, %v2450
        %v2452 = vpop.f32.mrb[0].mxu0
        %2453 = vmatprep.mubr.f32.mxu0 0.0
        %2454 = vmatmul.mubr.f32.gmra.mrb[0].mxu0 %v2337
        %v2455 = vpop.f32.mrb[0].mxu0
        %v2456 = vadd.f32 %v454, %v2455
        %v2457 = vpop.f32.mrb[0].mxu0
        %2458 = vmatprep.mubr.f32.mxu0 0.0
        %2459 = vmatmul.mubr.f32.gmra.mrb[0].mxu0 %v2338
        %v2460 = vpop.f32.mrb[0].mxu0
        %v2461 = vadd.f32 %v454, %v2460
        %v2462 = vpop.f32.mrb[0].mxu0
        %2463 = vmatprep.mubr.f32.mxu0 0.0
        %2464 = vmatmul.mubr.f32.gmra.mrb[0].mxu0 %v2339
        %v2465 = vpop.f32.mrb[0].mxu0
        %v2466 = vadd.f32 %v454, %v2465
        %v2467 = vpop.f32.mrb[0].mxu0
        %2468 = vmatprep.mubr.f32.mxu0 0.0
        %2469 = vmatmul.mubr.f32.gmra.mrb[0].mxu0 %v2340
        %v2470 = vpop.f32.mrb[0].mxu0
        %v2471 = vadd.f32 %v454, %v2470
        %v2472 = vpop.f32.mrb[0].mxu0
        %2473 = vmatprep.mubr.f32.mxu0 0.0
        %2474 = vmatmul.mubr.f32.gmra.mrb[0].mxu0 %v2341
        %v2475 = vpop.f32.mrb[0].mxu0
        %v2476 = vadd.f32 %v454, %v2475
        %v2477 = vpop.f32.mrb[0].mxu0
        %2478 = vmatprep.mubr.f32.mxu0 0.0
        %2479 = vmatmul.mubr.f32.gmra.mrb[0].mxu0 %v2342
        %v2480 = vpop.f32.mrb[0].mxu0
        %v2481 = vadd.f32 %v454, %v2480
        %v2482 = vpop.f32.mrb[0].mxu0
        %2483 = vmatprep.mubr.f32.mxu0 0.0
        %2484 = vmatmul.mubr.f32.gmra.mrb[0].mxu0 %v2343
        %v2485 = vpop.f32.mrb[0].mxu0
        %v2486 = vadd.f32 %v454, %v2485
        %v2487 = vpop.f32.mrb[0].mxu0
        %2488 = vmatprep.mubr.f32.mxu0 0.0
        %2489 = vmatmul.mubr.f32.gmra.mrb[0].mxu0 %v2344
        %v2490 = vpop.f32.mrb[0].mxu0
        %v2491 = vadd.f32 %v454, %v2490
        %v2492 = vpop.f32.mrb[0].mxu0
        %2493 = vmatprep.mubr.f32.mxu0 0.0
        %2494 = vmatmul.mubr.f32.gmra.mrb[0].mxu0 %v2345
        %v2495 = vpop.f32.mrb[0].mxu0
        %v2496 = vadd.f32 %v454, %v2495
        %v2497 = vpop.f32.mrb[0].mxu0
        %2498 = vmatprep.mubr.f32.mxu0 0.0
        %2499 = vmatmul.mubr.f32.gmra.mrb[0].mxu0 %v2346
        %v2500 = vpop.f32.mrb[0].mxu0
        %v2501 = vadd.f32 %v454, %v2500
        %v2502 = vpop.f32.mrb[0].mxu0
        %2503 = vmatprep.mubr.f32.mxu0 0.0
        %2504 = vmatmul.mubr.f32.gmra.mrb[0].mxu0 %v2347
        %v2505 = vpop.f32.mrb[0].mxu0
        %v2506 = vadd.f32 %v454, %v2505
        %v2507 = vpop.f32.mrb[0].mxu0
        %2508 = vdwg.mxu0
        %v2509 = vmax.f32 %v2431, 0.0
        %v2510 = vmax.f32 %v2436, 0.0
        %v2511 = vmax.f32 %v2441, 0.0
        %v2512 = vmax.f32 %v2446, 0.0
        %v2513 = vmax.f32 %v2451, 0.0
        %v2514 = vmax.f32 %v2456, 0.0
        %v2515 = vmax.f32 %v2461, 0.0
        %v2516 = vmax.f32 %v2466, 0.0
        %v2517 = vmax.f32 %v2471, 0.0
        %v2518 = vmax.f32 %v2476, 0.0
        %v2519 = vmax.f32 %v2481, 0.0
        %v2520 = vmax.f32 %v2486, 0.0
        %v2521 = vmax.f32 %v2491, 0.0
        %v2522 = vmax.f32 %v2496, 0.0
        %v2523 = vmax.f32 %v2501, 0.0
        %v2524 = vmax.f32 %v2506, 0.0
        %2525 = vmatprep.subr.mxu0 0.0
        %2526 = vmatpush1.xpose.msra.mxu0 %v2509
        %2527 = vmatprep.subr.mxu0 0.0
        %2528 = vmatpush1.xpose.msra.mxu0 %v2510
        %2529 = vmatprep.subr.mxu0 0.0
        %2530 = vmatpush1.xpose.msra.mxu0 %v2511
        %2531 = vmatprep.subr.mxu0 0.0
        %2532 = vmatpush1.xpose.msra.mxu0 %v2512
        %2533 = vmatprep.subr.mxu0 0.0
        %2534 = vmatpush1.xpose.msra.mxu0 %v2513
        %2535 = vmatprep.subr.mxu0 0.0
        %2536 = vmatpush1.xpose.msra.mxu0 %v2514
        %2537 = vmatprep.subr.mxu0 0.0
        %2538 = vmatpush1.xpose.msra.mxu0 %v2515
        %2539 = vmatprep.subr.mxu0 0.0
        %2540 = vmatpush1.xpose.msra.mxu0 %v2516
        %2541 = vmatprep.subr.mxu0 0.0
        %2542 = vmatpush1.xpose.msra.mxu0 %v2517
        %2543 = vmatprep.subr.mxu0 0.0
        %2544 = vmatpush1.xpose.msra.mxu0 %v2518
        %2545 = vmatprep.subr.mxu0 0.0
        %2546 = vmatpush1.xpose.msra.mxu0 %v2519
        %2547 = vmatprep.subr.mxu0 0.0
        %2548 = vmatpush1.xpose.msra.mxu0 %v2520
        %2549 = vmatprep.subr.mxu0 0.0
        %2550 = vmatpush1.xpose.msra.mxu0 %v2521
        %2551 = vmatprep.subr.mxu0 0.0
        %2552 = vmatpush1.xpose.msra.mxu0 %v2522
        %2553 = vmatprep.subr.mxu0 0.0
        %2554 = vmatpush1.xpose.msra.mxu0 %v2523
        %2555 = vmatprep.subr.mxu0 0.0
        %2556 = vmatpush1.xpose.msra.mxu0 %v2524
        %2557 = vmatprep.subr.mxu0 0.0
        %2558 = vmatpush1.xpose.msra.mxu0 0.0
        %2559 = vmatprep.subr.mxu0 0.0
        %2560 = vmatpush1.xpose.msra.mxu0 0.0
        %2561 = vmatprep.subr.mxu0 0.0
        %2562 = vmatpush1.xpose.msra.mxu0 0.0
        %2563 = vmatprep.subr.mxu0 0.0
        %2564 = vmatpush1.xpose.msra.mxu0 0.0
        %2565 = vmatprep.subr.mxu0 0.0
        %2566 = vmatpush1.xpose.msra.mxu0 0.0
        %2567 = vmatprep.subr.mxu0 0.0
        %2568 = vmatpush1.xpose.msra.mxu0 0.0
        %2569 = vmatprep.subr.mxu0 0.0
        %2570 = vmatpush1.xpose.msra.mxu0 0.0
        %2571 = vmatprep.subr.mxu0 0.0
        %2572 = vmatpush1.xpose.msra.mxu0 0.0
        %2573 = vmatprep.subr.mxu0 0.0
        %2574 = vmatpush1.xpose.msra.mxu0 0.0
        %2575 = vmatprep.subr.mxu0 0.0
        %2576 = vmatpush1.xpose.msra.mxu0 0.0
        %2577 = vmatprep.subr.mxu0 0.0
        %2578 = vmatpush1.xpose.msra.mxu0 0.0
        %2579 = vmatprep.subr.mxu0 0.0
        %2580 = vmatpush1.xpose.msra.mxu0 0.0
        %2581 = vmatprep.subr.mxu0 0.0
        %2582 = vmatpush1.xpose.msra.mxu0 0.0
        %2583 = vmatprep.subr.mxu0 0.0
        %2584 = vmatpush1.xpose.msra.mxu0 0.0
        %2585 = vmatprep.subr.mxu0 0.0
        %2586 = vmatpush1.xpose.msra.mxu0 0.0
        %2587 = vmatprep.subr.mxu0 0.0
        %2588 = vmatpush1.xpose.msra.mxu0 0.0
        %2589 = vmatprep.mubr.f32.mxu0 0.0
        %2590 = vmatmul.mubr.f32.gmra.mrb[0].mxu0 %v200
        %v2591 = vpop.f32.mrb[0].mxu0
        %v2592 = vadd.f32 %v619, %v2591
        %v2593 = vpop.f32.mrb[0].mxu0
        %2594 = vdwg.mxu0
        %2595 = vst [vmem:[%s191 + $0x4] sm:$0x1] %v2592
        %v2596 = vld [vmem:[%s196 + $0x280] sm:$0xff]
        %v2597 = vld [vmem:[%s196 + $0x288] sm:$0xff]
        %v2598 = vld [vmem:[%s196 + $0x290] sm:$0xff]
        %v2599 = vld [vmem:[%s196 + $0x298] sm:$0xff]
        %v2600 = vld [vmem:[%s196 + $0x2a0] sm:$0xff]
        %v2601 = vld [vmem:[%s196 + $0x2a8] sm:$0xff]
        %v2602 = vld [vmem:[%s196 + $0x2b0] sm:$0xff]
        %v2603 = vld [vmem:[%s196 + $0x2b8] sm:$0xff]
        %v2604 = vld [vmem:[%s196 + $0x2c0] sm:$0xff]
        %v2605 = vld [vmem:[%s196 + $0x2c8] sm:$0xff]
        %v2606 = vld [vmem:[%s196 + $0x2d0] sm:$0xff]
        %v2607 = vld [vmem:[%s196 + $0x2d8] sm:$0xff]
        %v2608 = vld [vmem:[%s196 + $0x2e0] sm:$0xff]
        %v2609 = vld [vmem:[%s196 + $0x2e8] sm:$0xff]
        %v2610 = vld [vmem:[%s196 + $0x2f0] sm:$0xff]
        %v2611 = vld [vmem:[%s196 + $0x2f8] sm:$0xff]
        %v2612 = vld [vmem:[%s1] sm:$0xff]
        %v2613 = vld [vmem:[%s1 + $0x8] sm:$0xff]
        %v2614 = vld [vmem:[%s1 + $0x10] sm:$0xff]
        %v2616 = vsel %vm225, %v2596, 0
        %v2619 = vsel %vm225, %v2597, 0
        %v2622 = vsel %vm225, %v2598, 0
        %v2625 = vsel %vm225, %v2599, 0
        %v2628 = vsel %vm225, %v2600, 0
        %v2631 = vsel %vm225, %v2601, 0
        %v2634 = vsel %vm225, %v2602, 0
        %v2637 = vsel %vm225, %v2603, 0
        %v2640 = vsel %vm225, %v2604, 0
        %v2643 = vsel %vm225, %v2605, 0
        %v2646 = vsel %vm225, %v2606, 0
        %v2649 = vsel %vm225, %v2607, 0
        %v2652 = vsel %vm225, %v2608, 0
        %v2655 = vsel %vm225, %v2609, 0
        %v2658 = vsel %vm225, %v2610, 0
        %v2661 = vsel %vm225, %v2611, 0
        %2663 = vmatprep.subr.mxu0 0.0
        %2664 = vmatpush1.msra.mxu0 %v2612
        %2665 = vmatprep.subr.mxu0 0.0
        %2666 = vmatpush1.msra.mxu0 %v2613
        %2667 = vmatprep.subr.mxu0 0.0
        %2668 = vmatpush1.msra.mxu0 %v2614
        %2669 = vmatprep.subr.mxu0 0.0
        %2670 = vmatpush1.msra.mxu0 0.0
        %2671 = vmatprep.subr.mxu0 0.0
        %2672 = vmatpush1.msra.mxu0 0.0
        %2673 = vmatprep.subr.mxu0 0.0
        %2674 = vmatpush1.msra.mxu0 0.0
        %2675 = vmatprep.subr.mxu0 0.0
        %2676 = vmatpush1.msra.mxu0 0.0
        %2677 = vmatprep.subr.mxu0 0.0
        %2678 = vmatpush1.msra.mxu0 0.0
        %2679 = vmatprep.subr.mxu0 0.0
        %2680 = vmatpush1.msra.mxu0 0.0
        %2681 = vmatprep.subr.mxu0 0.0
        %2682 = vmatpush1.msra.mxu0 0.0
        %2683 = vmatprep.subr.mxu0 0.0
        %2684 = vmatpush1.msra.mxu0 0.0
        %2685 = vmatprep.subr.mxu0 0.0
        %2686 = vmatpush1.msra.mxu0 0.0
        %2687 = vmatprep.subr.mxu0 0.0
        %2688 = vmatpush1.msra.mxu0 0.0
        %2689 = vmatprep.subr.mxu0 0.0
        %2690 = vmatpush1.msra.mxu0 0.0
        %2691 = vmatprep.subr.mxu0 0.0
        %2692 = vmatpush1.msra.mxu0 0.0
        %2693 = vmatprep.subr.mxu0 0.0
        %2694 = vmatpush1.msra.mxu0 0.0
        %2695 = vmatprep.subr.mxu0 0.0
        %2696 = vmatpush1.msra.mxu0 0.0
        %2697 = vmatprep.subr.mxu0 0.0
        %2698 = vmatpush1.msra.mxu0 0.0
        %2699 = vmatprep.subr.mxu0 0.0
        %2700 = vmatpush1.msra.mxu0 0.0
        %2701 = vmatprep.subr.mxu0 0.0
        %2702 = vmatpush1.msra.mxu0 0.0
        %2703 = vmatprep.subr.mxu0 0.0
        %2704 = vmatpush1.msra.mxu0 0.0
        %2705 = vmatprep.subr.mxu0 0.0
        %2706 = vmatpush1.msra.mxu0 0.0
        %2707 = vmatprep.subr.mxu0 0.0
        %2708 = vmatpush1.msra.mxu0 0.0
        %2709 = vmatprep.subr.mxu0 0.0
        %2710 = vmatpush1.msra.mxu0 0.0
        %2711 = vmatprep.subr.mxu0 0.0
        %2712 = vmatpush1.msra.mxu0 0.0
        %2713 = vmatprep.subr.mxu0 0.0
        %2714 = vmatpush1.msra.mxu0 0.0
        %2715 = vmatprep.subr.mxu0 0.0
        %2716 = vmatpush1.msra.mxu0 0.0
        %2717 = vmatprep.subr.mxu0 0.0
        %2718 = vmatpush1.msra.mxu0 0.0
        %2719 = vmatprep.subr.mxu0 0.0
        %2720 = vmatpush1.msra.mxu0 0.0
        %2721 = vmatprep.subr.mxu0 0.0
        %2722 = vmatpush1.msra.mxu0 0.0
        %2723 = vmatprep.subr.mxu0 0.0
        %2724 = vmatpush1.msra.mxu0 0.0
        %2725 = vmatprep.subr.mxu0 0.0
        %2726 = vmatpush1.msra.mxu0 0.0
        %2727 = vmatprep.mubr.f32.mxu0 0.0
        %2728 = vmatmul.mubr.f32.gmra.mrb[0].mxu0 %v2616
        %v2729 = vpop.f32.mrb[0].mxu0
        %v2730 = vadd.f32 %v224, %v2729
        %v2731 = vpop.f32.mrb[0].mxu0
        %2732 = vmatprep.mubr.f32.mxu0 0.0
        %2733 = vmatmul.mubr.f32.gmra.mrb[0].mxu0 %v2619
        %v2734 = vpop.f32.mrb[0].mxu0
        %v2735 = vadd.f32 %v224, %v2734
        %v2736 = vpop.f32.mrb[0].mxu0
        %2737 = vmatprep.mubr.f32.mxu0 0.0
        %2738 = vmatmul.mubr.f32.gmra.mrb[0].mxu0 %v2622
        %v2739 = vpop.f32.mrb[0].mxu0
        %v2740 = vadd.f32 %v224, %v2739
        %v2741 = vpop.f32.mrb[0].mxu0
        %2742 = vmatprep.mubr.f32.mxu0 0.0
        %2743 = vmatmul.mubr.f32.gmra.mrb[0].mxu0 %v2625
        %v2744 = vpop.f32.mrb[0].mxu0
        %v2745 = vadd.f32 %v224, %v2744
        %v2746 = vpop.f32.mrb[0].mxu0
        %2747 = vmatprep.mubr.f32.mxu0 0.0
        %2748 = vmatmul.mubr.f32.gmra.mrb[0].mxu0 %v2628
        %v2749 = vpop.f32.mrb[0].mxu0
        %v2750 = vadd.f32 %v224, %v2749
        %v2751 = vpop.f32.mrb[0].mxu0
        %2752 = vmatprep.mubr.f32.mxu0 0.0
        %2753 = vmatmul.mubr.f32.gmra.mrb[0].mxu0 %v2631
        %v2754 = vpop.f32.mrb[0].mxu0
        %v2755 = vadd.f32 %v224, %v2754
        %v2756 = vpop.f32.mrb[0].mxu0
        %2757 = vmatprep.mubr.f32.mxu0 0.0
        %2758 = vmatmul.mubr.f32.gmra.mrb[0].mxu0 %v2634
        %v2759 = vpop.f32.mrb[0].mxu0
        %v2760 = vadd.f32 %v224, %v2759
        %v2761 = vpop.f32.mrb[0].mxu0
        %2762 = vmatprep.mubr.f32.mxu0 0.0
        %2763 = vmatmul.mubr.f32.gmra.mrb[0].mxu0 %v2637
        %v2764 = vpop.f32.mrb[0].mxu0
        %v2765 = vadd.f32 %v224, %v2764
        %v2766 = vpop.f32.mrb[0].mxu0
        %2767 = vmatprep.mubr.f32.mxu0 0.0
        %2768 = vmatmul.mubr.f32.gmra.mrb[0].mxu0 %v2640
        %v2769 = vpop.f32.mrb[0].mxu0
        %v2770 = vadd.f32 %v224, %v2769
        %v2771 = vpop.f32.mrb[0].mxu0
        %2772 = vmatprep.mubr.f32.mxu0 0.0
        %2773 = vmatmul.mubr.f32.gmra.mrb[0].mxu0 %v2643
        %v2774 = vpop.f32.mrb[0].mxu0
        %v2775 = vadd.f32 %v224, %v2774
        %v2776 = vpop.f32.mrb[0].mxu0
        %2777 = vmatprep.mubr.f32.mxu0 0.0
        %2778 = vmatmul.mubr.f32.gmra.mrb[0].mxu0 %v2646
        %v2779 = vpop.f32.mrb[0].mxu0
        %v2780 = vadd.f32 %v224, %v2779
        %v2781 = vpop.f32.mrb[0].mxu0
        %2782 = vmatprep.mubr.f32.mxu0 0.0
        %2783 = vmatmul.mubr.f32.gmra.mrb[0].mxu0 %v2649
        %v2784 = vpop.f32.mrb[0].mxu0
        %v2785 = vadd.f32 %v224, %v2784
        %v2786 = vpop.f32.mrb[0].mxu0
        %2787 = vmatprep.mubr.f32.mxu0 0.0
        %2788 = vmatmul.mubr.f32.gmra.mrb[0].mxu0 %v2652
        %v2789 = vpop.f32.mrb[0].mxu0
        %v2790 = vadd.f32 %v224, %v2789
        %v2791 = vpop.f32.mrb[0].mxu0
        %2792 = vmatprep.mubr.f32.mxu0 0.0
        %2793 = vmatmul.mubr.f32.gmra.mrb[0].mxu0 %v2655
        %v2794 = vpop.f32.mrb[0].mxu0
        %v2795 = vadd.f32 %v224, %v2794
        %v2796 = vpop.f32.mrb[0].mxu0
        %2797 = vmatprep.mubr.f32.mxu0 0.0
        %2798 = vmatmul.mubr.f32.gmra.mrb[0].mxu0 %v2658
        %v2799 = vpop.f32.mrb[0].mxu0
        %v2800 = vadd.f32 %v224, %v2799
        %v2801 = vpop.f32.mrb[0].mxu0
        %2802 = vmatprep.mubr.f32.mxu0 0.0
        %2803 = vmatmul.mubr.f32.gmra.mrb[0].mxu0 %v2661
        %v2804 = vpop.f32.mrb[0].mxu0
        %v2805 = vadd.f32 %v224, %v2804
        %v2806 = vpop.f32.mrb[0].mxu0
        %2807 = vdwg.mxu0
        %v2808 = vmax.f32 %v2730, 0.0
        %v2809 = vmax.f32 %v2735, 0.0
        %v2810 = vmax.f32 %v2740, 0.0
        %v2811 = vmax.f32 %v2745, 0.0
        %v2812 = vmax.f32 %v2750, 0.0
        %v2813 = vmax.f32 %v2755, 0.0
        %v2814 = vmax.f32 %v2760, 0.0
        %v2815 = vmax.f32 %v2765, 0.0
        %v2816 = vmax.f32 %v2770, 0.0
        %v2817 = vmax.f32 %v2775, 0.0
        %v2818 = vmax.f32 %v2780, 0.0
        %v2819 = vmax.f32 %v2785, 0.0
        %v2820 = vmax.f32 %v2790, 0.0
        %v2821 = vmax.f32 %v2795, 0.0
        %v2822 = vmax.f32 %v2800, 0.0
        %v2823 = vmax.f32 %v2805, 0.0
        %v2824 = vld [vmem:[%s2] sm:$0xff]
        %v2825 = vld [vmem:[%s2 + $0x8] sm:$0xff]
        %v2826 = vld [vmem:[%s2 + $0x10] sm:$0xff]
        %v2827 = vld [vmem:[%s2 + $0x18] sm:$0xff]
        %v2828 = vld [vmem:[%s2 + $0x20] sm:$0xff]
        %v2829 = vld [vmem:[%s2 + $0x28] sm:$0xff]
        %v2830 = vld [vmem:[%s2 + $0x30] sm:$0xff]
        %v2831 = vld [vmem:[%s2 + $0x38] sm:$0xff]
        %v2832 = vld [vmem:[%s2 + $0x40] sm:$0xff]
        %v2833 = vld [vmem:[%s2 + $0x48] sm:$0xff]
        %v2834 = vld [vmem:[%s2 + $0x50] sm:$0xff]
        %v2835 = vld [vmem:[%s2 + $0x58] sm:$0xff]
        %v2836 = vld [vmem:[%s2 + $0x60] sm:$0xff]
        %v2837 = vld [vmem:[%s2 + $0x68] sm:$0xff]
        %v2838 = vld [vmem:[%s2 + $0x70] sm:$0xff]
        %v2839 = vld [vmem:[%s2 + $0x78] sm:$0xff]
        %2840 = vmatprep.subr.mxu0 0.0
        %2841 = vmatpush1.msra.mxu0 %v2824
        %2842 = vmatprep.subr.mxu0 0.0
        %2843 = vmatpush1.msra.mxu0 %v2825
        %2844 = vmatprep.subr.mxu0 0.0
        %2845 = vmatpush1.msra.mxu0 %v2826
        %2846 = vmatprep.subr.mxu0 0.0
        %2847 = vmatpush1.msra.mxu0 %v2827
        %2848 = vmatprep.subr.mxu0 0.0
        %2849 = vmatpush1.msra.mxu0 %v2828
        %2850 = vmatprep.subr.mxu0 0.0
        %2851 = vmatpush1.msra.mxu0 %v2829
        %2852 = vmatprep.subr.mxu0 0.0
        %2853 = vmatpush1.msra.mxu0 %v2830
        %2854 = vmatprep.subr.mxu0 0.0
        %2855 = vmatpush1.msra.mxu0 %v2831
        %2856 = vmatprep.subr.mxu0 0.0
        %2857 = vmatpush1.msra.mxu0 %v2832
        %2858 = vmatprep.subr.mxu0 0.0
        %2859 = vmatpush1.msra.mxu0 %v2833
        %2860 = vmatprep.subr.mxu0 0.0
        %2861 = vmatpush1.msra.mxu0 %v2834
        %2862 = vmatprep.subr.mxu0 0.0
        %2863 = vmatpush1.msra.mxu0 %v2835
        %2864 = vmatprep.subr.mxu0 0.0
        %2865 = vmatpush1.msra.mxu0 %v2836
        %2866 = vmatprep.subr.mxu0 0.0
        %2867 = vmatpush1.msra.mxu0 %v2837
        %2868 = vmatprep.subr.mxu0 0.0
        %2869 = vmatpush1.msra.mxu0 %v2838
        %2870 = vmatprep.subr.mxu0 0.0
        %2871 = vmatpush1.msra.mxu0 %v2839
        %2872 = vmatprep.subr.mxu0 0.0
        %2873 = vmatpush1.msra.mxu0 0.0
        %2874 = vmatprep.subr.mxu0 0.0
        %2875 = vmatpush1.msra.mxu0 0.0
        %2876 = vmatprep.subr.mxu0 0.0
        %2877 = vmatpush1.msra.mxu0 0.0
        %2878 = vmatprep.subr.mxu0 0.0
        %2879 = vmatpush1.msra.mxu0 0.0
        %2880 = vmatprep.subr.mxu0 0.0
        %2881 = vmatpush1.msra.mxu0 0.0
        %2882 = vmatprep.subr.mxu0 0.0
        %2883 = vmatpush1.msra.mxu0 0.0
        %2884 = vmatprep.subr.mxu0 0.0
        %2885 = vmatpush1.msra.mxu0 0.0
        %2886 = vmatprep.subr.mxu0 0.0
        %2887 = vmatpush1.msra.mxu0 0.0
        %2888 = vmatprep.subr.mxu0 0.0
        %2889 = vmatpush1.msra.mxu0 0.0
        %2890 = vmatprep.subr.mxu0 0.0
        %2891 = vmatpush1.msra.mxu0 0.0
        %2892 = vmatprep.subr.mxu0 0.0
        %2893 = vmatpush1.msra.mxu0 0.0
        %2894 = vmatprep.subr.mxu0 0.0
        %2895 = vmatpush1.msra.mxu0 0.0
        %2896 = vmatprep.subr.mxu0 0.0
        %2897 = vmatpush1.msra.mxu0 0.0
        %2898 = vmatprep.subr.mxu0 0.0
        %2899 = vmatpush1.msra.mxu0 0.0
        %2900 = vmatprep.subr.mxu0 0.0
        %2901 = vmatpush1.msra.mxu0 0.0
        %2902 = vmatprep.subr.mxu0 0.0
        %2903 = vmatpush1.msra.mxu0 0.0
        %2904 = vmatprep.mubr.f32.mxu0 0.0
        %2905 = vmatmul.mubr.f32.gmra.mrb[0].mxu0 %v2808
        %v2906 = vpop.f32.mrb[0].mxu0
        %v2907 = vadd.f32 %v454, %v2906
        %v2908 = vpop.f32.mrb[0].mxu0
        %2909 = vmatprep.mubr.f32.mxu0 0.0
        %2910 = vmatmul.mubr.f32.gmra.mrb[0].mxu0 %v2809
        %v2911 = vpop.f32.mrb[0].mxu0
        %v2912 = vadd.f32 %v454, %v2911
        %v2913 = vpop.f32.mrb[0].mxu0
        %2914 = vmatprep.mubr.f32.mxu0 0.0
        %2915 = vmatmul.mubr.f32.gmra.mrb[0].mxu0 %v2810
        %v2916 = vpop.f32.mrb[0].mxu0
        %v2917 = vadd.f32 %v454, %v2916
        %v2918 = vpop.f32.mrb[0].mxu0
        %2919 = vmatprep.mubr.f32.mxu0 0.0
        %2920 = vmatmul.mubr.f32.gmra.mrb[0].mxu0 %v2811
        %v2921 = vpop.f32.mrb[0].mxu0
        %v2922 = vadd.f32 %v454, %v2921
        %v2923 = vpop.f32.mrb[0].mxu0
        %2924 = vmatprep.mubr.f32.mxu0 0.0
        %2925 = vmatmul.mubr.f32.gmra.mrb[0].mxu0 %v2812
        %v2926 = vpop.f32.mrb[0].mxu0
        %v2927 = vadd.f32 %v454, %v2926
        %v2928 = vpop.f32.mrb[0].mxu0
        %2929 = vmatprep.mubr.f32.mxu0 0.0
        %2930 = vmatmul.mubr.f32.gmra.mrb[0].mxu0 %v2813
        %v2931 = vpop.f32.mrb[0].mxu0
        %v2932 = vadd.f32 %v454, %v2931
        %v2933 = vpop.f32.mrb[0].mxu0
        %2934 = vmatprep.mubr.f32.mxu0 0.0
        %2935 = vmatmul.mubr.f32.gmra.mrb[0].mxu0 %v2814
        %v2936 = vpop.f32.mrb[0].mxu0
        %v2937 = vadd.f32 %v454, %v2936
        %v2938 = vpop.f32.mrb[0].mxu0
        %2939 = vmatprep.mubr.f32.mxu0 0.0
        %2940 = vmatmul.mubr.f32.gmra.mrb[0].mxu0 %v2815
        %v2941 = vpop.f32.mrb[0].mxu0
        %v2942 = vadd.f32 %v454, %v2941
        %v2943 = vpop.f32.mrb[0].mxu0
        %2944 = vmatprep.mubr.f32.mxu0 0.0
        %2945 = vmatmul.mubr.f32.gmra.mrb[0].mxu0 %v2816
        %v2946 = vpop.f32.mrb[0].mxu0
        %v2947 = vadd.f32 %v454, %v2946
        %v2948 = vpop.f32.mrb[0].mxu0
        %2949 = vmatprep.mubr.f32.mxu0 0.0
        %2950 = vmatmul.mubr.f32.gmra.mrb[0].mxu0 %v2817
        %v2951 = vpop.f32.mrb[0].mxu0
        %v2952 = vadd.f32 %v454, %v2951
        %v2953 = vpop.f32.mrb[0].mxu0
        %2954 = vmatprep.mubr.f32.mxu0 0.0
        %2955 = vmatmul.mubr.f32.gmra.mrb[0].mxu0 %v2818
        %v2956 = vpop.f32.mrb[0].mxu0
        %v2957 = vadd.f32 %v454, %v2956
        %v2958 = vpop.f32.mrb[0].mxu0
        %2959 = vmatprep.mubr.f32.mxu0 0.0
        %2960 = vmatmul.mubr.f32.gmra.mrb[0].mxu0 %v2819
        %v2961 = vpop.f32.mrb[0].mxu0
        %v2962 = vadd.f32 %v454, %v2961
        %v2963 = vpop.f32.mrb[0].mxu0
        %2964 = vmatprep.mubr.f32.mxu0 0.0
        %2965 = vmatmul.mubr.f32.gmra.mrb[0].mxu0 %v2820
        %v2966 = vpop.f32.mrb[0].mxu0
        %v2967 = vadd.f32 %v454, %v2966
        %v2968 = vpop.f32.mrb[0].mxu0
        %2969 = vmatprep.mubr.f32.mxu0 0.0
        %2970 = vmatmul.mubr.f32.gmra.mrb[0].mxu0 %v2821
        %v2971 = vpop.f32.mrb[0].mxu0
        %v2972 = vadd.f32 %v454, %v2971
        %v2973 = vpop.f32.mrb[0].mxu0
        %2974 = vmatprep.mubr.f32.mxu0 0.0
        %2975 = vmatmul.mubr.f32.gmra.mrb[0].mxu0 %v2822
        %v2976 = vpop.f32.mrb[0].mxu0
        %v2977 = vadd.f32 %v454, %v2976
        %v2978 = vpop.f32.mrb[0].mxu0
        %2979 = vmatprep.mubr.f32.mxu0 0.0
        %2980 = vmatmul.mubr.f32.gmra.mrb[0].mxu0 %v2823
        %v2981 = vpop.f32.mrb[0].mxu0
        %v2982 = vadd.f32 %v454, %v2981
        %v2983 = vpop.f32.mrb[0].mxu0
        %2984 = vdwg.mxu0
        %v2985 = vmax.f32 %v2907, 0.0
        %v2986 = vmax.f32 %v2912, 0.0
        %v2987 = vmax.f32 %v2917, 0.0
        %v2988 = vmax.f32 %v2922, 0.0
        %v2989 = vmax.f32 %v2927, 0.0
        %v2990 = vmax.f32 %v2932, 0.0
        %v2991 = vmax.f32 %v2937, 0.0
        %v2992 = vmax.f32 %v2942, 0.0
        %v2993 = vmax.f32 %v2947, 0.0
        %v2994 = vmax.f32 %v2952, 0.0
        %v2995 = vmax.f32 %v2957, 0.0
        %v2996 = vmax.f32 %v2962, 0.0
        %v2997 = vmax.f32 %v2967, 0.0
        %v2998 = vmax.f32 %v2972, 0.0
        %v2999 = vmax.f32 %v2977, 0.0
        %v3000 = vmax.f32 %v2982, 0.0
        %3001 = vmatprep.subr.mxu0 0.0
        %3002 = vmatpush1.xpose.msra.mxu0 %v2985
        %3003 = vmatprep.subr.mxu0 0.0
        %3004 = vmatpush1.xpose.msra.mxu0 %v2986
        %3005 = vmatprep.subr.mxu0 0.0
        %3006 = vmatpush1.xpose.msra.mxu0 %v2987
        %3007 = vmatprep.subr.mxu0 0.0
        %3008 = vmatpush1.xpose.msra.mxu0 %v2988
        %3009 = vmatprep.subr.mxu0 0.0
        %3010 = vmatpush1.xpose.msra.mxu0 %v2989
        %3011 = vmatprep.subr.mxu0 0.0
        %3012 = vmatpush1.xpose.msra.mxu0 %v2990
        %3013 = vmatprep.subr.mxu0 0.0
        %3014 = vmatpush1.xpose.msra.mxu0 %v2991
        %3015 = vmatprep.subr.mxu0 0.0
        %3016 = vmatpush1.xpose.msra.mxu0 %v2992
        %3017 = vmatprep.subr.mxu0 0.0
        %3018 = vmatpush1.xpose.msra.mxu0 %v2993
        %3019 = vmatprep.subr.mxu0 0.0
        %3020 = vmatpush1.xpose.msra.mxu0 %v2994
        %3021 = vmatprep.subr.mxu0 0.0
        %3022 = vmatpush1.xpose.msra.mxu0 %v2995
        %3023 = vmatprep.subr.mxu0 0.0
        %3024 = vmatpush1.xpose.msra.mxu0 %v2996
        %3025 = vmatprep.subr.mxu0 0.0
        %3026 = vmatpush1.xpose.msra.mxu0 %v2997
        %3027 = vmatprep.subr.mxu0 0.0
        %3028 = vmatpush1.xpose.msra.mxu0 %v2998
        %3029 = vmatprep.subr.mxu0 0.0
        %3030 = vmatpush1.xpose.msra.mxu0 %v2999
        %3031 = vmatprep.subr.mxu0 0.0
        %3032 = vmatpush1.xpose.msra.mxu0 %v3000
        %3033 = vmatprep.subr.mxu0 0.0
        %3034 = vmatpush1.xpose.msra.mxu0 0.0
        %3035 = vmatprep.subr.mxu0 0.0
        %3036 = vmatpush1.xpose.msra.mxu0 0.0
        %3037 = vmatprep.subr.mxu0 0.0
        %3038 = vmatpush1.xpose.msra.mxu0 0.0
        %3039 = vmatprep.subr.mxu0 0.0
        %3040 = vmatpush1.xpose.msra.mxu0 0.0
        %3041 = vmatprep.subr.mxu0 0.0
        %3042 = vmatpush1.xpose.msra.mxu0 0.0
        %3043 = vmatprep.subr.mxu0 0.0
        %3044 = vmatpush1.xpose.msra.mxu0 0.0
        %3045 = vmatprep.subr.mxu0 0.0
        %3046 = vmatpush1.xpose.msra.mxu0 0.0
        %3047 = vmatprep.subr.mxu0 0.0
        %3048 = vmatpush1.xpose.msra.mxu0 0.0
        %3049 = vmatprep.subr.mxu0 0.0
        %3050 = vmatpush1.xpose.msra.mxu0 0.0
        %3051 = vmatprep.subr.mxu0 0.0
        %3052 = vmatpush1.xpose.msra.mxu0 0.0
        %3053 = vmatprep.subr.mxu0 0.0
        %3054 = vmatpush1.xpose.msra.mxu0 0.0
        %3055 = vmatprep.subr.mxu0 0.0
        %3056 = vmatpush1.xpose.msra.mxu0 0.0
        %3057 = vmatprep.subr.mxu0 0.0
        %3058 = vmatpush1.xpose.msra.mxu0 0.0
        %3059 = vmatprep.subr.mxu0 0.0
        %3060 = vmatpush1.xpose.msra.mxu0 0.0
        %3061 = vmatprep.subr.mxu0 0.0
        %3062 = vmatpush1.xpose.msra.mxu0 0.0
        %3063 = vmatprep.subr.mxu0 0.0
        %3064 = vmatpush1.xpose.msra.mxu0 0.0
        %3065 = vmatprep.mubr.f32.mxu0 0.0
        %3066 = vmatmul.mubr.f32.gmra.mrb[0].mxu0 %v200
        %v3067 = vpop.f32.mrb[0].mxu0
        %v3068 = vadd.f32 %v619, %v3067
        %v3069 = vpop.f32.mrb[0].mxu0
        %3070 = vdwg.mxu0
        %3071 = vst [vmem:[%s191 + $0x5] sm:$0x1] %v3068
        %v3072 = vld [vmem:[%s196 + $0x300] sm:$0xff]
        %v3073 = vld [vmem:[%s196 + $0x308] sm:$0xff]
        %v3074 = vld [vmem:[%s196 + $0x310] sm:$0xff]
        %v3075 = vld [vmem:[%s196 + $0x318] sm:$0xff]
        %v3076 = vld [vmem:[%s196 + $0x320] sm:$0xff]
        %v3077 = vld [vmem:[%s196 + $0x328] sm:$0xff]
        %v3078 = vld [vmem:[%s196 + $0x330] sm:$0xff]
        %v3079 = vld [vmem:[%s196 + $0x338] sm:$0xff]
        %v3080 = vld [vmem:[%s196 + $0x340] sm:$0xff]
        %v3081 = vld [vmem:[%s196 + $0x348] sm:$0xff]
        %v3082 = vld [vmem:[%s196 + $0x350] sm:$0xff]
        %v3083 = vld [vmem:[%s196 + $0x358] sm:$0xff]
        %v3084 = vld [vmem:[%s196 + $0x360] sm:$0xff]
        %v3085 = vld [vmem:[%s196 + $0x368] sm:$0xff]
        %v3086 = vld [vmem:[%s196 + $0x370] sm:$0xff]
        %v3087 = vld [vmem:[%s196 + $0x378] sm:$0xff]
        %v3088 = vld [vmem:[%s1] sm:$0xff]
        %v3089 = vld [vmem:[%s1 + $0x8] sm:$0xff]
        %v3090 = vld [vmem:[%s1 + $0x10] sm:$0xff]
        %v3092 = vsel %vm225, %v3072, 0
        %v3095 = vsel %vm225, %v3073, 0
        %v3098 = vsel %vm225, %v3074, 0
        %v3101 = vsel %vm225, %v3075, 0
        %v3104 = vsel %vm225, %v3076, 0
        %v3107 = vsel %vm225, %v3077, 0
        %v3110 = vsel %vm225, %v3078, 0
        %v3113 = vsel %vm225, %v3079, 0
        %v3116 = vsel %vm225, %v3080, 0
        %v3119 = vsel %vm225, %v3081, 0
        %v3122 = vsel %vm225, %v3082, 0
        %v3125 = vsel %vm225, %v3083, 0
        %v3128 = vsel %vm225, %v3084, 0
        %v3131 = vsel %vm225, %v3085, 0
        %v3134 = vsel %vm225, %v3086, 0
        %v3137 = vsel %vm225, %v3087, 0
        %3139 = vmatprep.subr.mxu0 0.0
        %3140 = vmatpush1.msra.mxu0 %v3088
        %3141 = vmatprep.subr.mxu0 0.0
        %3142 = vmatpush1.msra.mxu0 %v3089
        %3143 = vmatprep.subr.mxu0 0.0
        %3144 = vmatpush1.msra.mxu0 %v3090
        %3145 = vmatprep.subr.mxu0 0.0
        %3146 = vmatpush1.msra.mxu0 0.0
        %3147 = vmatprep.subr.mxu0 0.0
        %3148 = vmatpush1.msra.mxu0 0.0
        %3149 = vmatprep.subr.mxu0 0.0
        %3150 = vmatpush1.msra.mxu0 0.0
        %3151 = vmatprep.subr.mxu0 0.0
        %3152 = vmatpush1.msra.mxu0 0.0
        %3153 = vmatprep.subr.mxu0 0.0
        %3154 = vmatpush1.msra.mxu0 0.0
        %3155 = vmatprep.subr.mxu0 0.0
        %3156 = vmatpush1.msra.mxu0 0.0
        %3157 = vmatprep.subr.mxu0 0.0
        %3158 = vmatpush1.msra.mxu0 0.0
        %3159 = vmatprep.subr.mxu0 0.0
        %3160 = vmatpush1.msra.mxu0 0.0
        %3161 = vmatprep.subr.mxu0 0.0
        %3162 = vmatpush1.msra.mxu0 0.0
        %3163 = vmatprep.subr.mxu0 0.0
        %3164 = vmatpush1.msra.mxu0 0.0
        %3165 = vmatprep.subr.mxu0 0.0
        %3166 = vmatpush1.msra.mxu0 0.0
        %3167 = vmatprep.subr.mxu0 0.0
        %3168 = vmatpush1.msra.mxu0 0.0
        %3169 = vmatprep.subr.mxu0 0.0
        %3170 = vmatpush1.msra.mxu0 0.0
        %3171 = vmatprep.subr.mxu0 0.0
        %3172 = vmatpush1.msra.mxu0 0.0
        %3173 = vmatprep.subr.mxu0 0.0
        %3174 = vmatpush1.msra.mxu0 0.0
        %3175 = vmatprep.subr.mxu0 0.0
        %3176 = vmatpush1.msra.mxu0 0.0
        %3177 = vmatprep.subr.mxu0 0.0
        %3178 = vmatpush1.msra.mxu0 0.0
        %3179 = vmatprep.subr.mxu0 0.0
        %3180 = vmatpush1.msra.mxu0 0.0
        %3181 = vmatprep.subr.mxu0 0.0
        %3182 = vmatpush1.msra.mxu0 0.0
        %3183 = vmatprep.subr.mxu0 0.0
        %3184 = vmatpush1.msra.mxu0 0.0
        %3185 = vmatprep.subr.mxu0 0.0
        %3186 = vmatpush1.msra.mxu0 0.0
        %3187 = vmatprep.subr.mxu0 0.0
        %3188 = vmatpush1.msra.mxu0 0.0
        %3189 = vmatprep.subr.mxu0 0.0
        %3190 = vmatpush1.msra.mxu0 0.0
        %3191 = vmatprep.subr.mxu0 0.0
        %3192 = vmatpush1.msra.mxu0 0.0
        %3193 = vmatprep.subr.mxu0 0.0
        %3194 = vmatpush1.msra.mxu0 0.0
        %3195 = vmatprep.subr.mxu0 0.0
        %3196 = vmatpush1.msra.mxu0 0.0
        %3197 = vmatprep.subr.mxu0 0.0
        %3198 = vmatpush1.msra.mxu0 0.0
        %3199 = vmatprep.subr.mxu0 0.0
        %3200 = vmatpush1.msra.mxu0 0.0
        %3201 = vmatprep.subr.mxu0 0.0
        %3202 = vmatpush1.msra.mxu0 0.0
        %3203 = vmatprep.mubr.f32.mxu0 0.0
        %3204 = vmatmul.mubr.f32.gmra.mrb[0].mxu0 %v3092
        %v3205 = vpop.f32.mrb[0].mxu0
        %v3206 = vadd.f32 %v224, %v3205
        %v3207 = vpop.f32.mrb[0].mxu0
        %3208 = vmatprep.mubr.f32.mxu0 0.0
        %3209 = vmatmul.mubr.f32.gmra.mrb[0].mxu0 %v3095
        %v3210 = vpop.f32.mrb[0].mxu0
        %v3211 = vadd.f32 %v224, %v3210
        %v3212 = vpop.f32.mrb[0].mxu0
        %3213 = vmatprep.mubr.f32.mxu0 0.0
        %3214 = vmatmul.mubr.f32.gmra.mrb[0].mxu0 %v3098
        %v3215 = vpop.f32.mrb[0].mxu0
        %v3216 = vadd.f32 %v224, %v3215
        %v3217 = vpop.f32.mrb[0].mxu0
        %3218 = vmatprep.mubr.f32.mxu0 0.0
        %3219 = vmatmul.mubr.f32.gmra.mrb[0].mxu0 %v3101
        %v3220 = vpop.f32.mrb[0].mxu0
        %v3221 = vadd.f32 %v224, %v3220
        %v3222 = vpop.f32.mrb[0].mxu0
        %3223 = vmatprep.mubr.f32.mxu0 0.0
        %3224 = vmatmul.mubr.f32.gmra.mrb[0].mxu0 %v3104
        %v3225 = vpop.f32.mrb[0].mxu0
        %v3226 = vadd.f32 %v224, %v3225
        %v3227 = vpop.f32.mrb[0].mxu0
        %3228 = vmatprep.mubr.f32.mxu0 0.0
        %3229 = vmatmul.mubr.f32.gmra.mrb[0].mxu0 %v3107
        %v3230 = vpop.f32.mrb[0].mxu0
        %v3231 = vadd.f32 %v224, %v3230
        %v3232 = vpop.f32.mrb[0].mxu0
        %3233 = vmatprep.mubr.f32.mxu0 0.0
        %3234 = vmatmul.mubr.f32.gmra.mrb[0].mxu0 %v3110
        %v3235 = vpop.f32.mrb[0].mxu0
        %v3236 = vadd.f32 %v224, %v3235
        %v3237 = vpop.f32.mrb[0].mxu0
        %3238 = vmatprep.mubr.f32.mxu0 0.0
        %3239 = vmatmul.mubr.f32.gmra.mrb[0].mxu0 %v3113
        %v3240 = vpop.f32.mrb[0].mxu0
        %v3241 = vadd.f32 %v224, %v3240
        %v3242 = vpop.f32.mrb[0].mxu0
        %3243 = vmatprep.mubr.f32.mxu0 0.0
        %3244 = vmatmul.mubr.f32.gmra.mrb[0].mxu0 %v3116
        %v3245 = vpop.f32.mrb[0].mxu0
        %v3246 = vadd.f32 %v224, %v3245
        %v3247 = vpop.f32.mrb[0].mxu0
        %3248 = vmatprep.mubr.f32.mxu0 0.0
        %3249 = vmatmul.mubr.f32.gmra.mrb[0].mxu0 %v3119
        %v3250 = vpop.f32.mrb[0].mxu0
        %v3251 = vadd.f32 %v224, %v3250
        %v3252 = vpop.f32.mrb[0].mxu0
        %3253 = vmatprep.mubr.f32.mxu0 0.0
        %3254 = vmatmul.mubr.f32.gmra.mrb[0].mxu0 %v3122
        %v3255 = vpop.f32.mrb[0].mxu0
        %v3256 = vadd.f32 %v224, %v3255
        %v3257 = vpop.f32.mrb[0].mxu0
        %3258 = vmatprep.mubr.f32.mxu0 0.0
        %3259 = vmatmul.mubr.f32.gmra.mrb[0].mxu0 %v3125
        %v3260 = vpop.f32.mrb[0].mxu0
        %v3261 = vadd.f32 %v224, %v3260
        %v3262 = vpop.f32.mrb[0].mxu0
        %3263 = vmatprep.mubr.f32.mxu0 0.0
        %3264 = vmatmul.mubr.f32.gmra.mrb[0].mxu0 %v3128
        %v3265 = vpop.f32.mrb[0].mxu0
        %v3266 = vadd.f32 %v224, %v3265
        %v3267 = vpop.f32.mrb[0].mxu0
        %3268 = vmatprep.mubr.f32.mxu0 0.0
        %3269 = vmatmul.mubr.f32.gmra.mrb[0].mxu0 %v3131
        %v3270 = vpop.f32.mrb[0].mxu0
        %v3271 = vadd.f32 %v224, %v3270
        %v3272 = vpop.f32.mrb[0].mxu0
        %3273 = vmatprep.mubr.f32.mxu0 0.0
        %3274 = vmatmul.mubr.f32.gmra.mrb[0].mxu0 %v3134
        %v3275 = vpop.f32.mrb[0].mxu0
        %v3276 = vadd.f32 %v224, %v3275
        %v3277 = vpop.f32.mrb[0].mxu0
        %3278 = vmatprep.mubr.f32.mxu0 0.0
        %3279 = vmatmul.mubr.f32.gmra.mrb[0].mxu0 %v3137
        %v3280 = vpop.f32.mrb[0].mxu0
        %v3281 = vadd.f32 %v224, %v3280
        %v3282 = vpop.f32.mrb[0].mxu0
        %3283 = vdwg.mxu0
        %v3284 = vmax.f32 %v3206, 0.0
        %v3285 = vmax.f32 %v3211, 0.0
        %v3286 = vmax.f32 %v3216, 0.0
        %v3287 = vmax.f32 %v3221, 0.0
        %v3288 = vmax.f32 %v3226, 0.0
        %v3289 = vmax.f32 %v3231, 0.0
        %v3290 = vmax.f32 %v3236, 0.0
        %v3291 = vmax.f32 %v3241, 0.0
        %v3292 = vmax.f32 %v3246, 0.0
        %v3293 = vmax.f32 %v3251, 0.0
        %v3294 = vmax.f32 %v3256, 0.0
        %v3295 = vmax.f32 %v3261, 0.0
        %v3296 = vmax.f32 %v3266, 0.0
        %v3297 = vmax.f32 %v3271, 0.0
        %v3298 = vmax.f32 %v3276, 0.0
        %v3299 = vmax.f32 %v3281, 0.0
        %v3300 = vld [vmem:[%s2] sm:$0xff]
        %v3301 = vld [vmem:[%s2 + $0x8] sm:$0xff]
        %v3302 = vld [vmem:[%s2 + $0x10] sm:$0xff]
        %v3303 = vld [vmem:[%s2 + $0x18] sm:$0xff]
        %v3304 = vld [vmem:[%s2 + $0x20] sm:$0xff]
        %v3305 = vld [vmem:[%s2 + $0x28] sm:$0xff]
        %v3306 = vld [vmem:[%s2 + $0x30] sm:$0xff]
        %v3307 = vld [vmem:[%s2 + $0x38] sm:$0xff]
        %v3308 = vld [vmem:[%s2 + $0x40] sm:$0xff]
        %v3309 = vld [vmem:[%s2 + $0x48] sm:$0xff]
        %v3310 = vld [vmem:[%s2 + $0x50] sm:$0xff]
        %v3311 = vld [vmem:[%s2 + $0x58] sm:$0xff]
        %v3312 = vld [vmem:[%s2 + $0x60] sm:$0xff]
        %v3313 = vld [vmem:[%s2 + $0x68] sm:$0xff]
        %v3314 = vld [vmem:[%s2 + $0x70] sm:$0xff]
        %v3315 = vld [vmem:[%s2 + $0x78] sm:$0xff]
        %3316 = vmatprep.subr.mxu0 0.0
        %3317 = vmatpush1.msra.mxu0 %v3300
        %3318 = vmatprep.subr.mxu0 0.0
        %3319 = vmatpush1.msra.mxu0 %v3301
        %3320 = vmatprep.subr.mxu0 0.0
        %3321 = vmatpush1.msra.mxu0 %v3302
        %3322 = vmatprep.subr.mxu0 0.0
        %3323 = vmatpush1.msra.mxu0 %v3303
        %3324 = vmatprep.subr.mxu0 0.0
        %3325 = vmatpush1.msra.mxu0 %v3304
        %3326 = vmatprep.subr.mxu0 0.0
        %3327 = vmatpush1.msra.mxu0 %v3305
        %3328 = vmatprep.subr.mxu0 0.0
        %3329 = vmatpush1.msra.mxu0 %v3306
        %3330 = vmatprep.subr.mxu0 0.0
        %3331 = vmatpush1.msra.mxu0 %v3307
        %3332 = vmatprep.subr.mxu0 0.0
        %3333 = vmatpush1.msra.mxu0 %v3308
        %3334 = vmatprep.subr.mxu0 0.0
        %3335 = vmatpush1.msra.mxu0 %v3309
        %3336 = vmatprep.subr.mxu0 0.0
        %3337 = vmatpush1.msra.mxu0 %v3310
        %3338 = vmatprep.subr.mxu0 0.0
        %3339 = vmatpush1.msra.mxu0 %v3311
        %3340 = vmatprep.subr.mxu0 0.0
        %3341 = vmatpush1.msra.mxu0 %v3312
        %3342 = vmatprep.subr.mxu0 0.0
        %3343 = vmatpush1.msra.mxu0 %v3313
        %3344 = vmatprep.subr.mxu0 0.0
        %3345 = vmatpush1.msra.mxu0 %v3314
        %3346 = vmatprep.subr.mxu0 0.0
        %3347 = vmatpush1.msra.mxu0 %v3315
        %3348 = vmatprep.subr.mxu0 0.0
        %3349 = vmatpush1.msra.mxu0 0.0
        %3350 = vmatprep.subr.mxu0 0.0
        %3351 = vmatpush1.msra.mxu0 0.0
        %3352 = vmatprep.subr.mxu0 0.0
        %3353 = vmatpush1.msra.mxu0 0.0
        %3354 = vmatprep.subr.mxu0 0.0
        %3355 = vmatpush1.msra.mxu0 0.0
        %3356 = vmatprep.subr.mxu0 0.0
        %3357 = vmatpush1.msra.mxu0 0.0
        %3358 = vmatprep.subr.mxu0 0.0
        %3359 = vmatpush1.msra.mxu0 0.0
        %3360 = vmatprep.subr.mxu0 0.0
        %3361 = vmatpush1.msra.mxu0 0.0
        %3362 = vmatprep.subr.mxu0 0.0
        %3363 = vmatpush1.msra.mxu0 0.0
        %3364 = vmatprep.subr.mxu0 0.0
        %3365 = vmatpush1.msra.mxu0 0.0
        %3366 = vmatprep.subr.mxu0 0.0
        %3367 = vmatpush1.msra.mxu0 0.0
        %3368 = vmatprep.subr.mxu0 0.0
        %3369 = vmatpush1.msra.mxu0 0.0
        %3370 = vmatprep.subr.mxu0 0.0
        %3371 = vmatpush1.msra.mxu0 0.0
        %3372 = vmatprep.subr.mxu0 0.0
        %3373 = vmatpush1.msra.mxu0 0.0
        %3374 = vmatprep.subr.mxu0 0.0
        %3375 = vmatpush1.msra.mxu0 0.0
        %3376 = vmatprep.subr.mxu0 0.0
        %3377 = vmatpush1.msra.mxu0 0.0
        %3378 = vmatprep.subr.mxu0 0.0
        %3379 = vmatpush1.msra.mxu0 0.0
        %3380 = vmatprep.mubr.f32.mxu0 0.0
        %3381 = vmatmul.mubr.f32.gmra.mrb[0].mxu0 %v3284
        %v3382 = vpop.f32.mrb[0].mxu0
        %v3383 = vadd.f32 %v454, %v3382
        %v3384 = vpop.f32.mrb[0].mxu0
        %3385 = vmatprep.mubr.f32.mxu0 0.0
        %3386 = vmatmul.mubr.f32.gmra.mrb[0].mxu0 %v3285
        %v3387 = vpop.f32.mrb[0].mxu0
        %v3388 = vadd.f32 %v454, %v3387
        %v3389 = vpop.f32.mrb[0].mxu0
        %3390 = vmatprep.mubr.f32.mxu0 0.0
        %3391 = vmatmul.mubr.f32.gmra.mrb[0].mxu0 %v3286
        %v3392 = vpop.f32.mrb[0].mxu0
        %v3393 = vadd.f32 %v454, %v3392
        %v3394 = vpop.f32.mrb[0].mxu0
        %3395 = vmatprep.mubr.f32.mxu0 0.0
        %3396 = vmatmul.mubr.f32.gmra.mrb[0].mxu0 %v3287
        %v3397 = vpop.f32.mrb[0].mxu0
        %v3398 = vadd.f32 %v454, %v3397
        %v3399 = vpop.f32.mrb[0].mxu0
        %3400 = vmatprep.mubr.f32.mxu0 0.0
        %3401 = vmatmul.mubr.f32.gmra.mrb[0].mxu0 %v3288
        %v3402 = vpop.f32.mrb[0].mxu0
        %v3403 = vadd.f32 %v454, %v3402
        %v3404 = vpop.f32.mrb[0].mxu0
        %3405 = vmatprep.mubr.f32.mxu0 0.0
        %3406 = vmatmul.mubr.f32.gmra.mrb[0].mxu0 %v3289
        %v3407 = vpop.f32.mrb[0].mxu0
        %v3408 = vadd.f32 %v454, %v3407
        %v3409 = vpop.f32.mrb[0].mxu0
        %3410 = vmatprep.mubr.f32.mxu0 0.0
        %3411 = vmatmul.mubr.f32.gmra.mrb[0].mxu0 %v3290
        %v3412 = vpop.f32.mrb[0].mxu0
        %v3413 = vadd.f32 %v454, %v3412
        %v3414 = vpop.f32.mrb[0].mxu0
        %3415 = vmatprep.mubr.f32.mxu0 0.0
        %3416 = vmatmul.mubr.f32.gmra.mrb[0].mxu0 %v3291
        %v3417 = vpop.f32.mrb[0].mxu0
        %v3418 = vadd.f32 %v454, %v3417
        %v3419 = vpop.f32.mrb[0].mxu0
        %3420 = vmatprep.mubr.f32.mxu0 0.0
        %3421 = vmatmul.mubr.f32.gmra.mrb[0].mxu0 %v3292
        %v3422 = vpop.f32.mrb[0].mxu0
        %v3423 = vadd.f32 %v454, %v3422
        %v3424 = vpop.f32.mrb[0].mxu0
        %3425 = vmatprep.mubr.f32.mxu0 0.0
        %3426 = vmatmul.mubr.f32.gmra.mrb[0].mxu0 %v3293
        %v3427 = vpop.f32.mrb[0].mxu0
        %v3428 = vadd.f32 %v454, %v3427
        %v3429 = vpop.f32.mrb[0].mxu0
        %3430 = vmatprep.mubr.f32.mxu0 0.0
        %3431 = vmatmul.mubr.f32.gmra.mrb[0].mxu0 %v3294
        %v3432 = vpop.f32.mrb[0].mxu0
        %v3433 = vadd.f32 %v454, %v3432
        %v3434 = vpop.f32.mrb[0].mxu0
        %3435 = vmatprep.mubr.f32.mxu0 0.0
        %3436 = vmatmul.mubr.f32.gmra.mrb[0].mxu0 %v3295
        %v3437 = vpop.f32.mrb[0].mxu0
        %v3438 = vadd.f32 %v454, %v3437
        %v3439 = vpop.f32.mrb[0].mxu0
        %3440 = vmatprep.mubr.f32.mxu0 0.0
        %3441 = vmatmul.mubr.f32.gmra.mrb[0].mxu0 %v3296
        %v3442 = vpop.f32.mrb[0].mxu0
        %v3443 = vadd.f32 %v454, %v3442
        %v3444 = vpop.f32.mrb[0].mxu0
        %3445 = vmatprep.mubr.f32.mxu0 0.0
        %3446 = vmatmul.mubr.f32.gmra.mrb[0].mxu0 %v3297
        %v3447 = vpop.f32.mrb[0].mxu0
        %v3448 = vadd.f32 %v454, %v3447
        %v3449 = vpop.f32.mrb[0].mxu0
        %3450 = vmatprep.mubr.f32.mxu0 0.0
        %3451 = vmatmul.mubr.f32.gmra.mrb[0].mxu0 %v3298
        %v3452 = vpop.f32.mrb[0].mxu0
        %v3453 = vadd.f32 %v454, %v3452
        %v3454 = vpop.f32.mrb[0].mxu0
        %3455 = vmatprep.mubr.f32.mxu0 0.0
        %3456 = vmatmul.mubr.f32.gmra.mrb[0].mxu0 %v3299
        %v3457 = vpop.f32.mrb[0].mxu0
        %v3458 = vadd.f32 %v454, %v3457
        %v3459 = vpop.f32.mrb[0].mxu0
        %3460 = vdwg.mxu0
        %v3461 = vmax.f32 %v3383, 0.0
        %v3462 = vmax.f32 %v3388, 0.0
        %v3463 = vmax.f32 %v3393, 0.0
        %v3464 = vmax.f32 %v3398, 0.0
        %v3465 = vmax.f32 %v3403, 0.0
        %v3466 = vmax.f32 %v3408, 0.0
        %v3467 = vmax.f32 %v3413, 0.0
        %v3468 = vmax.f32 %v3418, 0.0
        %v3469 = vmax.f32 %v3423, 0.0
        %v3470 = vmax.f32 %v3428, 0.0
        %v3471 = vmax.f32 %v3433, 0.0
        %v3472 = vmax.f32 %v3438, 0.0
        %v3473 = vmax.f32 %v3443, 0.0
        %v3474 = vmax.f32 %v3448, 0.0
        %v3475 = vmax.f32 %v3453, 0.0
        %v3476 = vmax.f32 %v3458, 0.0
        %3477 = vmatprep.subr.mxu0 0.0
        %3478 = vmatpush1.xpose.msra.mxu0 %v3461
        %3479 = vmatprep.subr.mxu0 0.0
        %3480 = vmatpush1.xpose.msra.mxu0 %v3462
        %3481 = vmatprep.subr.mxu0 0.0
        %3482 = vmatpush1.xpose.msra.mxu0 %v3463
        %3483 = vmatprep.subr.mxu0 0.0
        %3484 = vmatpush1.xpose.msra.mxu0 %v3464
        %3485 = vmatprep.subr.mxu0 0.0
        %3486 = vmatpush1.xpose.msra.mxu0 %v3465
        %3487 = vmatprep.subr.mxu0 0.0
        %3488 = vmatpush1.xpose.msra.mxu0 %v3466
        %3489 = vmatprep.subr.mxu0 0.0
        %3490 = vmatpush1.xpose.msra.mxu0 %v3467
        %3491 = vmatprep.subr.mxu0 0.0
        %3492 = vmatpush1.xpose.msra.mxu0 %v3468
        %3493 = vmatprep.subr.mxu0 0.0
        %3494 = vmatpush1.xpose.msra.mxu0 %v3469
        %3495 = vmatprep.subr.mxu0 0.0
        %3496 = vmatpush1.xpose.msra.mxu0 %v3470
        %3497 = vmatprep.subr.mxu0 0.0
        %3498 = vmatpush1.xpose.msra.mxu0 %v3471
        %3499 = vmatprep.subr.mxu0 0.0
        %3500 = vmatpush1.xpose.msra.mxu0 %v3472
        %3501 = vmatprep.subr.mxu0 0.0
        %3502 = vmatpush1.xpose.msra.mxu0 %v3473
        %3503 = vmatprep.subr.mxu0 0.0
        %3504 = vmatpush1.xpose.msra.mxu0 %v3474
        %3505 = vmatprep.subr.mxu0 0.0
        %3506 = vmatpush1.xpose.msra.mxu0 %v3475
        %3507 = vmatprep.subr.mxu0 0.0
        %3508 = vmatpush1.xpose.msra.mxu0 %v3476
        %3509 = vmatprep.subr.mxu0 0.0
        %3510 = vmatpush1.xpose.msra.mxu0 0.0
        %3511 = vmatprep.subr.mxu0 0.0
        %3512 = vmatpush1.xpose.msra.mxu0 0.0
        %3513 = vmatprep.subr.mxu0 0.0
        %3514 = vmatpush1.xpose.msra.mxu0 0.0
        %3515 = vmatprep.subr.mxu0 0.0
        %3516 = vmatpush1.xpose.msra.mxu0 0.0
        %3517 = vmatprep.subr.mxu0 0.0
        %3518 = vmatpush1.xpose.msra.mxu0 0.0
        %3519 = vmatprep.subr.mxu0 0.0
        %3520 = vmatpush1.xpose.msra.mxu0 0.0
        %3521 = vmatprep.subr.mxu0 0.0
        %3522 = vmatpush1.xpose.msra.mxu0 0.0
        %3523 = vmatprep.subr.mxu0 0.0
        %3524 = vmatpush1.xpose.msra.mxu0 0.0
        %3525 = vmatprep.subr.mxu0 0.0
        %3526 = vmatpush1.xpose.msra.mxu0 0.0
        %3527 = vmatprep.subr.mxu0 0.0
        %3528 = vmatpush1.xpose.msra.mxu0 0.0
        %3529 = vmatprep.subr.mxu0 0.0
        %3530 = vmatpush1.xpose.msra.mxu0 0.0
        %3531 = vmatprep.subr.mxu0 0.0
        %3532 = vmatpush1.xpose.msra.mxu0 0.0
        %3533 = vmatprep.subr.mxu0 0.0
        %3534 = vmatpush1.xpose.msra.mxu0 0.0
        %3535 = vmatprep.subr.mxu0 0.0
        %3536 = vmatpush1.xpose.msra.mxu0 0.0
        %3537 = vmatprep.subr.mxu0 0.0
        %3538 = vmatpush1.xpose.msra.mxu0 0.0
        %3539 = vmatprep.subr.mxu0 0.0
        %3540 = vmatpush1.xpose.msra.mxu0 0.0
        %3541 = vmatprep.mubr.f32.mxu0 0.0
        %3542 = vmatmul.mubr.f32.gmra.mrb[0].mxu0 %v200
        %v3543 = vpop.f32.mrb[0].mxu0
        %v3544 = vadd.f32 %v619, %v3543
        %v3545 = vpop.f32.mrb[0].mxu0
        %3546 = vdwg.mxu0
        %3547 = vst [vmem:[%s191 + $0x6] sm:$0x1] %v3544
        %v3548 = vld [vmem:[%s196 + $0x380] sm:$0xff]
        %v3549 = vld [vmem:[%s196 + $0x388] sm:$0xff]
        %v3550 = vld [vmem:[%s196 + $0x390] sm:$0xff]
        %v3551 = vld [vmem:[%s196 + $0x398] sm:$0xff]
        %v3552 = vld [vmem:[%s196 + $0x3a0] sm:$0xff]
        %v3553 = vld [vmem:[%s196 + $0x3a8] sm:$0xff]
        %v3554 = vld [vmem:[%s196 + $0x3b0] sm:$0xff]
        %v3555 = vld [vmem:[%s196 + $0x3b8] sm:$0xff]
        %v3556 = vld [vmem:[%s196 + $0x3c0] sm:$0xff]
        %v3557 = vld [vmem:[%s196 + $0x3c8] sm:$0xff]
        %v3558 = vld [vmem:[%s196 + $0x3d0] sm:$0xff]
        %v3559 = vld [vmem:[%s196 + $0x3d8] sm:$0xff]
        %v3560 = vld [vmem:[%s196 + $0x3e0] sm:$0xff]
        %v3561 = vld [vmem:[%s196 + $0x3e8] sm:$0xff]
        %v3562 = vld [vmem:[%s196 + $0x3f0] sm:$0xff]
        %v3563 = vld [vmem:[%s196 + $0x3f8] sm:$0xff]
        %v3564 = vld [vmem:[%s1] sm:$0xff]
        %v3565 = vld [vmem:[%s1 + $0x8] sm:$0xff]
        %v3566 = vld [vmem:[%s1 + $0x10] sm:$0xff]
        %v3568 = vsel %vm225, %v3548, 0
        %v3571 = vsel %vm225, %v3549, 0
        %v3574 = vsel %vm225, %v3550, 0
        %v3577 = vsel %vm225, %v3551, 0
        %v3580 = vsel %vm225, %v3552, 0
        %v3583 = vsel %vm225, %v3553, 0
        %v3586 = vsel %vm225, %v3554, 0
        %v3589 = vsel %vm225, %v3555, 0
        %v3592 = vsel %vm225, %v3556, 0
        %v3595 = vsel %vm225, %v3557, 0
        %v3598 = vsel %vm225, %v3558, 0
        %v3601 = vsel %vm225, %v3559, 0
        %v3604 = vsel %vm225, %v3560, 0
        %v3607 = vsel %vm225, %v3561, 0
        %v3610 = vsel %vm225, %v3562, 0
        %v3613 = vsel %vm225, %v3563, 0
        %3615 = vmatprep.subr.mxu0 0.0
        %3616 = vmatpush1.msra.mxu0 %v3564
        %3617 = vmatprep.subr.mxu0 0.0
        %3618 = vmatpush1.msra.mxu0 %v3565
        %3619 = vmatprep.subr.mxu0 0.0
        %3620 = vmatpush1.msra.mxu0 %v3566
        %3621 = vmatprep.subr.mxu0 0.0
        %3622 = vmatpush1.msra.mxu0 0.0
        %3623 = vmatprep.subr.mxu0 0.0
        %3624 = vmatpush1.msra.mxu0 0.0
        %3625 = vmatprep.subr.mxu0 0.0
        %3626 = vmatpush1.msra.mxu0 0.0
        %3627 = vmatprep.subr.mxu0 0.0
        %3628 = vmatpush1.msra.mxu0 0.0
        %3629 = vmatprep.subr.mxu0 0.0
        %3630 = vmatpush1.msra.mxu0 0.0
        %3631 = vmatprep.subr.mxu0 0.0
        %3632 = vmatpush1.msra.mxu0 0.0
        %3633 = vmatprep.subr.mxu0 0.0
        %3634 = vmatpush1.msra.mxu0 0.0
        %3635 = vmatprep.subr.mxu0 0.0
        %3636 = vmatpush1.msra.mxu0 0.0
        %3637 = vmatprep.subr.mxu0 0.0
        %3638 = vmatpush1.msra.mxu0 0.0
        %3639 = vmatprep.subr.mxu0 0.0
        %3640 = vmatpush1.msra.mxu0 0.0
        %3641 = vmatprep.subr.mxu0 0.0
        %3642 = vmatpush1.msra.mxu0 0.0
        %3643 = vmatprep.subr.mxu0 0.0
        %3644 = vmatpush1.msra.mxu0 0.0
        %3645 = vmatprep.subr.mxu0 0.0
        %3646 = vmatpush1.msra.mxu0 0.0
        %3647 = vmatprep.subr.mxu0 0.0
        %3648 = vmatpush1.msra.mxu0 0.0
        %3649 = vmatprep.subr.mxu0 0.0
        %3650 = vmatpush1.msra.mxu0 0.0
        %3651 = vmatprep.subr.mxu0 0.0
        %3652 = vmatpush1.msra.mxu0 0.0
        %3653 = vmatprep.subr.mxu0 0.0
        %3654 = vmatpush1.msra.mxu0 0.0
        %3655 = vmatprep.subr.mxu0 0.0
        %3656 = vmatpush1.msra.mxu0 0.0
        %3657 = vmatprep.subr.mxu0 0.0
        %3658 = vmatpush1.msra.mxu0 0.0
        %3659 = vmatprep.subr.mxu0 0.0
        %3660 = vmatpush1.msra.mxu0 0.0
        %3661 = vmatprep.subr.mxu0 0.0
        %3662 = vmatpush1.msra.mxu0 0.0
        %3663 = vmatprep.subr.mxu0 0.0
        %3664 = vmatpush1.msra.mxu0 0.0
        %3665 = vmatprep.subr.mxu0 0.0
        %3666 = vmatpush1.msra.mxu0 0.0
        %3667 = vmatprep.subr.mxu0 0.0
        %3668 = vmatpush1.msra.mxu0 0.0
        %3669 = vmatprep.subr.mxu0 0.0
        %3670 = vmatpush1.msra.mxu0 0.0
        %3671 = vmatprep.subr.mxu0 0.0
        %3672 = vmatpush1.msra.mxu0 0.0
        %3673 = vmatprep.subr.mxu0 0.0
        %3674 = vmatpush1.msra.mxu0 0.0
        %3675 = vmatprep.subr.mxu0 0.0
        %3676 = vmatpush1.msra.mxu0 0.0
        %3677 = vmatprep.subr.mxu0 0.0
        %3678 = vmatpush1.msra.mxu0 0.0
        %3679 = vmatprep.mubr.f32.mxu0 0.0
        %3680 = vmatmul.mubr.f32.gmra.mrb[0].mxu0 %v3568
        %v3681 = vpop.f32.mrb[0].mxu0
        %v3682 = vadd.f32 %v224, %v3681
        %v3683 = vpop.f32.mrb[0].mxu0
        %3684 = vmatprep.mubr.f32.mxu0 0.0
        %3685 = vmatmul.mubr.f32.gmra.mrb[0].mxu0 %v3571
        %v3686 = vpop.f32.mrb[0].mxu0
        %v3687 = vadd.f32 %v224, %v3686
        %v3688 = vpop.f32.mrb[0].mxu0
        %3689 = vmatprep.mubr.f32.mxu0 0.0
        %3690 = vmatmul.mubr.f32.gmra.mrb[0].mxu0 %v3574
        %v3691 = vpop.f32.mrb[0].mxu0
        %v3692 = vadd.f32 %v224, %v3691
        %v3693 = vpop.f32.mrb[0].mxu0
        %3694 = vmatprep.mubr.f32.mxu0 0.0
        %3695 = vmatmul.mubr.f32.gmra.mrb[0].mxu0 %v3577
        %v3696 = vpop.f32.mrb[0].mxu0
        %v3697 = vadd.f32 %v224, %v3696
        %v3698 = vpop.f32.mrb[0].mxu0
        %3699 = vmatprep.mubr.f32.mxu0 0.0
        %3700 = vmatmul.mubr.f32.gmra.mrb[0].mxu0 %v3580
        %v3701 = vpop.f32.mrb[0].mxu0
        %v3702 = vadd.f32 %v224, %v3701
        %v3703 = vpop.f32.mrb[0].mxu0
        %3704 = vmatprep.mubr.f32.mxu0 0.0
        %3705 = vmatmul.mubr.f32.gmra.mrb[0].mxu0 %v3583
        %v3706 = vpop.f32.mrb[0].mxu0
        %v3707 = vadd.f32 %v224, %v3706
        %v3708 = vpop.f32.mrb[0].mxu0
        %3709 = vmatprep.mubr.f32.mxu0 0.0
        %3710 = vmatmul.mubr.f32.gmra.mrb[0].mxu0 %v3586
        %v3711 = vpop.f32.mrb[0].mxu0
        %v3712 = vadd.f32 %v224, %v3711
        %v3713 = vpop.f32.mrb[0].mxu0
        %3714 = vmatprep.mubr.f32.mxu0 0.0
        %3715 = vmatmul.mubr.f32.gmra.mrb[0].mxu0 %v3589
        %v3716 = vpop.f32.mrb[0].mxu0
        %v3717 = vadd.f32 %v224, %v3716
        %v3718 = vpop.f32.mrb[0].mxu0
        %3719 = vmatprep.mubr.f32.mxu0 0.0
        %3720 = vmatmul.mubr.f32.gmra.mrb[0].mxu0 %v3592
        %v3721 = vpop.f32.mrb[0].mxu0
        %v3722 = vadd.f32 %v224, %v3721
        %v3723 = vpop.f32.mrb[0].mxu0
        %3724 = vmatprep.mubr.f32.mxu0 0.0
        %3725 = vmatmul.mubr.f32.gmra.mrb[0].mxu0 %v3595
        %v3726 = vpop.f32.mrb[0].mxu0
        %v3727 = vadd.f32 %v224, %v3726
        %v3728 = vpop.f32.mrb[0].mxu0
        %3729 = vmatprep.mubr.f32.mxu0 0.0
        %3730 = vmatmul.mubr.f32.gmra.mrb[0].mxu0 %v3598
        %v3731 = vpop.f32.mrb[0].mxu0
        %v3732 = vadd.f32 %v224, %v3731
        %v3733 = vpop.f32.mrb[0].mxu0
        %3734 = vmatprep.mubr.f32.mxu0 0.0
        %3735 = vmatmul.mubr.f32.gmra.mrb[0].mxu0 %v3601
        %v3736 = vpop.f32.mrb[0].mxu0
        %v3737 = vadd.f32 %v224, %v3736
        %v3738 = vpop.f32.mrb[0].mxu0
        %3739 = vmatprep.mubr.f32.mxu0 0.0
        %3740 = vmatmul.mubr.f32.gmra.mrb[0].mxu0 %v3604
        %v3741 = vpop.f32.mrb[0].mxu0
        %v3742 = vadd.f32 %v224, %v3741
        %v3743 = vpop.f32.mrb[0].mxu0
        %3744 = vmatprep.mubr.f32.mxu0 0.0
        %3745 = vmatmul.mubr.f32.gmra.mrb[0].mxu0 %v3607
        %v3746 = vpop.f32.mrb[0].mxu0
        %v3747 = vadd.f32 %v224, %v3746
        %v3748 = vpop.f32.mrb[0].mxu0
        %3749 = vmatprep.mubr.f32.mxu0 0.0
        %3750 = vmatmul.mubr.f32.gmra.mrb[0].mxu0 %v3610
        %v3751 = vpop.f32.mrb[0].mxu0
        %v3752 = vadd.f32 %v224, %v3751
        %v3753 = vpop.f32.mrb[0].mxu0
        %3754 = vmatprep.mubr.f32.mxu0 0.0
        %3755 = vmatmul.mubr.f32.gmra.mrb[0].mxu0 %v3613
        %v3756 = vpop.f32.mrb[0].mxu0
        %v3757 = vadd.f32 %v224, %v3756
        %v3758 = vpop.f32.mrb[0].mxu0
        %3759 = vdwg.mxu0
        %v3760 = vmax.f32 %v3682, 0.0
        %v3761 = vmax.f32 %v3687, 0.0
        %v3762 = vmax.f32 %v3692, 0.0
        %v3763 = vmax.f32 %v3697, 0.0
        %v3764 = vmax.f32 %v3702, 0.0
        %v3765 = vmax.f32 %v3707, 0.0
        %v3766 = vmax.f32 %v3712, 0.0
        %v3767 = vmax.f32 %v3717, 0.0
        %v3768 = vmax.f32 %v3722, 0.0
        %v3769 = vmax.f32 %v3727, 0.0
        %v3770 = vmax.f32 %v3732, 0.0
        %v3771 = vmax.f32 %v3737, 0.0
        %v3772 = vmax.f32 %v3742, 0.0
        %v3773 = vmax.f32 %v3747, 0.0
        %v3774 = vmax.f32 %v3752, 0.0
        %v3775 = vmax.f32 %v3757, 0.0
        %v3776 = vld [vmem:[%s2] sm:$0xff]
        %v3777 = vld [vmem:[%s2 + $0x8] sm:$0xff]
        %v3778 = vld [vmem:[%s2 + $0x10] sm:$0xff]
        %v3779 = vld [vmem:[%s2 + $0x18] sm:$0xff]
        %v3780 = vld [vmem:[%s2 + $0x20] sm:$0xff]
        %v3781 = vld [vmem:[%s2 + $0x28] sm:$0xff]
        %v3782 = vld [vmem:[%s2 + $0x30] sm:$0xff]
        %v3783 = vld [vmem:[%s2 + $0x38] sm:$0xff]
        %v3784 = vld [vmem:[%s2 + $0x40] sm:$0xff]
        %v3785 = vld [vmem:[%s2 + $0x48] sm:$0xff]
        %v3786 = vld [vmem:[%s2 + $0x50] sm:$0xff]
        %v3787 = vld [vmem:[%s2 + $0x58] sm:$0xff]
        %v3788 = vld [vmem:[%s2 + $0x60] sm:$0xff]
        %v3789 = vld [vmem:[%s2 + $0x68] sm:$0xff]
        %v3790 = vld [vmem:[%s2 + $0x70] sm:$0xff]
        %v3791 = vld [vmem:[%s2 + $0x78] sm:$0xff]
        %3792 = vmatprep.subr.mxu0 0.0
        %3793 = vmatpush1.msra.mxu0 %v3776
        %3794 = vmatprep.subr.mxu0 0.0
        %3795 = vmatpush1.msra.mxu0 %v3777
        %3796 = vmatprep.subr.mxu0 0.0
        %3797 = vmatpush1.msra.mxu0 %v3778
        %3798 = vmatprep.subr.mxu0 0.0
        %3799 = vmatpush1.msra.mxu0 %v3779
        %3800 = vmatprep.subr.mxu0 0.0
        %3801 = vmatpush1.msra.mxu0 %v3780
        %3802 = vmatprep.subr.mxu0 0.0
        %3803 = vmatpush1.msra.mxu0 %v3781
        %3804 = vmatprep.subr.mxu0 0.0
        %3805 = vmatpush1.msra.mxu0 %v3782
        %3806 = vmatprep.subr.mxu0 0.0
        %3807 = vmatpush1.msra.mxu0 %v3783
        %3808 = vmatprep.subr.mxu0 0.0
        %3809 = vmatpush1.msra.mxu0 %v3784
        %3810 = vmatprep.subr.mxu0 0.0
        %3811 = vmatpush1.msra.mxu0 %v3785
        %3812 = vmatprep.subr.mxu0 0.0
        %3813 = vmatpush1.msra.mxu0 %v3786
        %3814 = vmatprep.subr.mxu0 0.0
        %3815 = vmatpush1.msra.mxu0 %v3787
        %3816 = vmatprep.subr.mxu0 0.0
        %3817 = vmatpush1.msra.mxu0 %v3788
        %3818 = vmatprep.subr.mxu0 0.0
        %3819 = vmatpush1.msra.mxu0 %v3789
        %3820 = vmatprep.subr.mxu0 0.0
        %3821 = vmatpush1.msra.mxu0 %v3790
        %3822 = vmatprep.subr.mxu0 0.0
        %3823 = vmatpush1.msra.mxu0 %v3791
        %3824 = vmatprep.subr.mxu0 0.0
        %3825 = vmatpush1.msra.mxu0 0.0
        %3826 = vmatprep.subr.mxu0 0.0
        %3827 = vmatpush1.msra.mxu0 0.0
        %3828 = vmatprep.subr.mxu0 0.0
        %3829 = vmatpush1.msra.mxu0 0.0
        %3830 = vmatprep.subr.mxu0 0.0
        %3831 = vmatpush1.msra.mxu0 0.0
        %3832 = vmatprep.subr.mxu0 0.0
        %3833 = vmatpush1.msra.mxu0 0.0
        %3834 = vmatprep.subr.mxu0 0.0
        %3835 = vmatpush1.msra.mxu0 0.0
        %3836 = vmatprep.subr.mxu0 0.0
        %3837 = vmatpush1.msra.mxu0 0.0
        %3838 = vmatprep.subr.mxu0 0.0
        %3839 = vmatpush1.msra.mxu0 0.0
        %3840 = vmatprep.subr.mxu0 0.0
        %3841 = vmatpush1.msra.mxu0 0.0
        %3842 = vmatprep.subr.mxu0 0.0
        %3843 = vmatpush1.msra.mxu0 0.0
        %3844 = vmatprep.subr.mxu0 0.0
        %3845 = vmatpush1.msra.mxu0 0.0
        %3846 = vmatprep.subr.mxu0 0.0
        %3847 = vmatpush1.msra.mxu0 0.0
        %3848 = vmatprep.subr.mxu0 0.0
        %3849 = vmatpush1.msra.mxu0 0.0
        %3850 = vmatprep.subr.mxu0 0.0
        %3851 = vmatpush1.msra.mxu0 0.0
        %3852 = vmatprep.subr.mxu0 0.0
        %3853 = vmatpush1.msra.mxu0 0.0
        %3854 = vmatprep.subr.mxu0 0.0
        %3855 = vmatpush1.msra.mxu0 0.0
        %3856 = vmatprep.mubr.f32.mxu0 0.0
        %3857 = vmatmul.mubr.f32.gmra.mrb[0].mxu0 %v3760
        %v3858 = vpop.f32.mrb[0].mxu0
        %v3859 = vadd.f32 %v454, %v3858
        %v3860 = vpop.f32.mrb[0].mxu0
        %3861 = vmatprep.mubr.f32.mxu0 0.0
        %3862 = vmatmul.mubr.f32.gmra.mrb[0].mxu0 %v3761
        %v3863 = vpop.f32.mrb[0].mxu0
        %v3864 = vadd.f32 %v454, %v3863
        %v3865 = vpop.f32.mrb[0].mxu0
        %3866 = vmatprep.mubr.f32.mxu0 0.0
        %3867 = vmatmul.mubr.f32.gmra.mrb[0].mxu0 %v3762
        %v3868 = vpop.f32.mrb[0].mxu0
        %v3869 = vadd.f32 %v454, %v3868
        %v3870 = vpop.f32.mrb[0].mxu0
        %3871 = vmatprep.mubr.f32.mxu0 0.0
        %3872 = vmatmul.mubr.f32.gmra.mrb[0].mxu0 %v3763
        %v3873 = vpop.f32.mrb[0].mxu0
        %v3874 = vadd.f32 %v454, %v3873
        %v3875 = vpop.f32.mrb[0].mxu0
        %3876 = vmatprep.mubr.f32.mxu0 0.0
        %3877 = vmatmul.mubr.f32.gmra.mrb[0].mxu0 %v3764
        %v3878 = vpop.f32.mrb[0].mxu0
        %v3879 = vadd.f32 %v454, %v3878
        %v3880 = vpop.f32.mrb[0].mxu0
        %3881 = vmatprep.mubr.f32.mxu0 0.0
        %3882 = vmatmul.mubr.f32.gmra.mrb[0].mxu0 %v3765
        %v3883 = vpop.f32.mrb[0].mxu0
        %v3884 = vadd.f32 %v454, %v3883
        %v3885 = vpop.f32.mrb[0].mxu0
        %3886 = vmatprep.mubr.f32.mxu0 0.0
        %3887 = vmatmul.mubr.f32.gmra.mrb[0].mxu0 %v3766
        %v3888 = vpop.f32.mrb[0].mxu0
        %v3889 = vadd.f32 %v454, %v3888
        %v3890 = vpop.f32.mrb[0].mxu0
        %3891 = vmatprep.mubr.f32.mxu0 0.0
        %3892 = vmatmul.mubr.f32.gmra.mrb[0].mxu0 %v3767
        %v3893 = vpop.f32.mrb[0].mxu0
        %v3894 = vadd.f32 %v454, %v3893
        %v3895 = vpop.f32.mrb[0].mxu0
        %3896 = vmatprep.mubr.f32.mxu0 0.0
        %3897 = vmatmul.mubr.f32.gmra.mrb[0].mxu0 %v3768
        %v3898 = vpop.f32.mrb[0].mxu0
        %v3899 = vadd.f32 %v454, %v3898
        %v3900 = vpop.f32.mrb[0].mxu0
        %3901 = vmatprep.mubr.f32.mxu0 0.0
        %3902 = vmatmul.mubr.f32.gmra.mrb[0].mxu0 %v3769
        %v3903 = vpop.f32.mrb[0].mxu0
        %v3904 = vadd.f32 %v454, %v3903
        %v3905 = vpop.f32.mrb[0].mxu0
        %3906 = vmatprep.mubr.f32.mxu0 0.0
        %3907 = vmatmul.mubr.f32.gmra.mrb[0].mxu0 %v3770
        %v3908 = vpop.f32.mrb[0].mxu0
        %v3909 = vadd.f32 %v454, %v3908
        %v3910 = vpop.f32.mrb[0].mxu0
        %3911 = vmatprep.mubr.f32.mxu0 0.0
        %3912 = vmatmul.mubr.f32.gmra.mrb[0].mxu0 %v3771
        %v3913 = vpop.f32.mrb[0].mxu0
        %v3914 = vadd.f32 %v454, %v3913
        %v3915 = vpop.f32.mrb[0].mxu0
        %3916 = vmatprep.mubr.f32.mxu0 0.0
        %3917 = vmatmul.mubr.f32.gmra.mrb[0].mxu0 %v3772
        %v3918 = vpop.f32.mrb[0].mxu0
        %v3919 = vadd.f32 %v454, %v3918
        %v3920 = vpop.f32.mrb[0].mxu0
        %3921 = vmatprep.mubr.f32.mxu0 0.0
        %3922 = vmatmul.mubr.f32.gmra.mrb[0].mxu0 %v3773
        %v3923 = vpop.f32.mrb[0].mxu0
        %v3924 = vadd.f32 %v454, %v3923
        %v3925 = vpop.f32.mrb[0].mxu0
        %3926 = vmatprep.mubr.f32.mxu0 0.0
        %3927 = vmatmul.mubr.f32.gmra.mrb[0].mxu0 %v3774
        %v3928 = vpop.f32.mrb[0].mxu0
        %v3929 = vadd.f32 %v454, %v3928
        %v3930 = vpop.f32.mrb[0].mxu0
        %3931 = vmatprep.mubr.f32.mxu0 0.0
        %3932 = vmatmul.mubr.f32.gmra.mrb[0].mxu0 %v3775
        %v3933 = vpop.f32.mrb[0].mxu0
        %v3934 = vadd.f32 %v454, %v3933
        %v3935 = vpop.f32.mrb[0].mxu0
        %3936 = vdwg.mxu0
        %v3937 = vmax.f32 %v3859, 0.0
        %v3938 = vmax.f32 %v3864, 0.0
        %v3939 = vmax.f32 %v3869, 0.0
        %v3940 = vmax.f32 %v3874, 0.0
        %v3941 = vmax.f32 %v3879, 0.0
        %v3942 = vmax.f32 %v3884, 0.0
        %v3943 = vmax.f32 %v3889, 0.0
        %v3944 = vmax.f32 %v3894, 0.0
        %v3945 = vmax.f32 %v3899, 0.0
        %v3946 = vmax.f32 %v3904, 0.0
        %v3947 = vmax.f32 %v3909, 0.0
        %v3948 = vmax.f32 %v3914, 0.0
        %v3949 = vmax.f32 %v3919, 0.0
        %v3950 = vmax.f32 %v3924, 0.0
        %v3951 = vmax.f32 %v3929, 0.0
        %v3952 = vmax.f32 %v3934, 0.0
        %3953 = vmatprep.subr.mxu0 0.0
        %3954 = vmatpush1.xpose.msra.mxu0 %v3937
        %3955 = vmatprep.subr.mxu0 0.0
        %3956 = vmatpush1.xpose.msra.mxu0 %v3938
        %3957 = vmatprep.subr.mxu0 0.0
        %3958 = vmatpush1.xpose.msra.mxu0 %v3939
        %3959 = vmatprep.subr.mxu0 0.0
        %3960 = vmatpush1.xpose.msra.mxu0 %v3940
        %3961 = vmatprep.subr.mxu0 0.0
        %3962 = vmatpush1.xpose.msra.mxu0 %v3941
        %3963 = vmatprep.subr.mxu0 0.0
        %3964 = vmatpush1.xpose.msra.mxu0 %v3942
        %3965 = vmatprep.subr.mxu0 0.0
        %3966 = vmatpush1.xpose.msra.mxu0 %v3943
        %3967 = vmatprep.subr.mxu0 0.0
        %3968 = vmatpush1.xpose.msra.mxu0 %v3944
        %3969 = vmatprep.subr.mxu0 0.0
        %3970 = vmatpush1.xpose.msra.mxu0 %v3945
        %3971 = vmatprep.subr.mxu0 0.0
        %3972 = vmatpush1.xpose.msra.mxu0 %v3946
        %3973 = vmatprep.subr.mxu0 0.0
        %3974 = vmatpush1.xpose.msra.mxu0 %v3947
        %3975 = vmatprep.subr.mxu0 0.0
        %3976 = vmatpush1.xpose.msra.mxu0 %v3948
        %3977 = vmatprep.subr.mxu0 0.0
        %3978 = vmatpush1.xpose.msra.mxu0 %v3949
        %3979 = vmatprep.subr.mxu0 0.0
        %3980 = vmatpush1.xpose.msra.mxu0 %v3950
        %3981 = vmatprep.subr.mxu0 0.0
        %3982 = vmatpush1.xpose.msra.mxu0 %v3951
        %3983 = vmatprep.subr.mxu0 0.0
        %3984 = vmatpush1.xpose.msra.mxu0 %v3952
        %3985 = vmatprep.subr.mxu0 0.0
        %3986 = vmatpush1.xpose.msra.mxu0 0.0
        %3987 = vmatprep.subr.mxu0 0.0
        %3988 = vmatpush1.xpose.msra.mxu0 0.0
        %3989 = vmatprep.subr.mxu0 0.0
        %3990 = vmatpush1.xpose.msra.mxu0 0.0
        %3991 = vmatprep.subr.mxu0 0.0
        %3992 = vmatpush1.xpose.msra.mxu0 0.0
        %3993 = vmatprep.subr.mxu0 0.0
        %3994 = vmatpush1.xpose.msra.mxu0 0.0
        %3995 = vmatprep.subr.mxu0 0.0
        %3996 = vmatpush1.xpose.msra.mxu0 0.0
        %3997 = vmatprep.subr.mxu0 0.0
        %3998 = vmatpush1.xpose.msra.mxu0 0.0
        %3999 = vmatprep.subr.mxu0 0.0
        %4000 = vmatpush1.xpose.msra.mxu0 0.0
        %4001 = vmatprep.subr.mxu0 0.0
        %4002 = vmatpush1.xpose.msra.mxu0 0.0
        %4003 = vmatprep.subr.mxu0 0.0
        %4004 = vmatpush1.xpose.msra.mxu0 0.0
        %4005 = vmatprep.subr.mxu0 0.0
        %4006 = vmatpush1.xpose.msra.mxu0 0.0
        %4007 = vmatprep.subr.mxu0 0.0
        %4008 = vmatpush1.xpose.msra.mxu0 0.0
        %4009 = vmatprep.subr.mxu0 0.0
        %4010 = vmatpush1.xpose.msra.mxu0 0.0
        %4011 = vmatprep.subr.mxu0 0.0
        %4012 = vmatpush1.xpose.msra.mxu0 0.0
        %4013 = vmatprep.subr.mxu0 0.0
        %4014 = vmatpush1.xpose.msra.mxu0 0.0
        %4015 = vmatprep.subr.mxu0 0.0
        %4016 = vmatpush1.xpose.msra.mxu0 0.0
        %4017 = vmatprep.mubr.f32.mxu0 0.0
        %4018 = vmatmul.mubr.f32.gmra.mrb[0].mxu0 %v200
        %v4019 = vpop.f32.mrb[0].mxu0
        %v4020 = vadd.f32 %v619, %v4019
        %v4021 = vpop.f32.mrb[0].mxu0
        %4022 = vdwg.mxu0
        %4023 = vst [vmem:[%s191 + $0x7] sm:$0x1] %v4020
        %s4024 = sand.u32 %s115, 1
        %s4025 = scalar_lea.sflag [#allocation3], %s4024
        %s4026 = sand.u32 %s115, 1
        %s4027 = smul.addr %s4026, 8
        %s4028 = scalar_lea.vmem [#allocation2], %s4027
        // Predicated region
        $region37: #{tpu_custom_call.1} parent=35 // pred_check
          %p4029 = pneg %p125
        $region38: #{tpu_custom_call.1} parent=35 // pred_check_branch
          %4031 = sbr.rel (%p4029) target = $region40
        $region39: #{tpu_custom_call.1} parent=35 // pred_region
          %s4033 = ssub.s32 128, 128
          %4034 = vsyncadd %s4025, %s4033
          %s4035 = smul.addr %s18, 128
          %s4036 = scalar_lea.hbm %s4, %s4035
          %s4038 = sshll.u32 %s4028, 4
          %s4039 = int_to_ptr.vmem [resolvable:$true] %s4038
          %4041 = dma.vmem_to_hbm [thread:$0]  %s4039, 128, %s4036, %s4025
        $region40: #{tpu_custom_call.1} parent=35 // pred_fallthru
          _
      $region36: #{tpu_custom_call.1} parent=5 // pred_fallthru
        _
      %p4042 = scmp.le.s32.totalorder 2, %s13
      // Predicated region
      $region41: #{tpu_custom_call.1} parent=5 // pred_check
        %p4043 = pneg %p4042
      $region42: #{tpu_custom_call.1} parent=5 // pred_check_branch
        %4045 = sbr.rel (%p4043) target = $region44
      $region43: #{tpu_custom_call.1} parent=5 // pred_region
        %s4046 = ssub.s32 %s13, 2
        // Predicated region
        $region45: #{tpu_custom_call.1} parent=43 // pred_check
          %p4047 = pneg %p131
        $region46: #{tpu_custom_call.1} parent=43 // pred_check_branch
          %4049 = sbr.rel (%p4047) target = $region48
        $region47: #{tpu_custom_call.1} parent=43 // pred_region
          %s4050 = sand.u32 %s116, 1
          %s4051 = scalar_lea.sflag [#allocation3], %s4050
          %s4052 = sand.u32 %s116, 1
          %s4053 = smul.addr %s4052, 8
          %s4054 = scalar_lea.vmem [#allocation2], %s4053
          %4055 = dma.done %s4051, 128
        $region48: #{tpu_custom_call.1} parent=43 // pred_fallthru
          _
      $region44: #{tpu_custom_call.1} parent=5 // pred_fallthru
        _
    $region6: #{tpu_custom_call.1} parent=1 // loop_footer
      %s17 = sadd.s32 1, %s13
    $region7: #{tpu_custom_call.1} parent=1 // loop_footer_branch
      %12 = sbr.rel target = $region3
    $region8: #{tpu_custom_call.1} parent=1 // loop_exit
      _
    %4056 = vsyncpa [#allocation3], 1
    %s4057 = scalar_lea.sflag [#allocation3], 1
    %4058 = vsyncpa %s4057, 1

</llo_original>
